<compile_context>
chip_gen: v6e
topology: v6e:2x2x1
jax: 0.10.0
libtpu: 0.0.40
codegen_flags: <defaults>
</compile_context>

<pallas_src>
import functools

import jax
import jax.numpy as jnp
from jax.experimental import pallas as pl
from jax.experimental.pallas import tpu as pltpu


# ---------------------------------------------------------------------------
# Fused Pallas kernel: entire forward pass on one (TM, ...) row tile
# ---------------------------------------------------------------------------
def _fused_kernel(x_ref, w_ref, o_ref, *, action_size, dims):
    din_p, c1_p, c2_p, c_p, head_w = dims        # static Python ints (padded widths)
    r2 = din_p                                   # static row offsets into the weight slab
    r3 = r2 + c1_p
    rf = r3 + c2_p
    rh = rf + c_p

    # torch: s[s == 2] = -1 (on raw input), then straight into the bf16 matmul chain.
    x = x_ref[...]
    xb = jnp.where(x == 2.0, -1.0, x).astype(jnp.bfloat16)

    def mm(a_bf16, row, k, n):
        # bf16 operands into the MXU, f32 accumulation; biases are already folded into
        # the weight rows (ones-column trick), so there is no broadcast-add here.
        return jnp.dot(a_bf16, w_ref[row:row + k, :n],
                       preferred_element_type=jnp.float32)

    # conv1/2/3 (+BN) and fc1 (+BN) as dense matmuls; ReLU in f32, carry bf16 activations.
    a1 = jnp.maximum(mm(xb, 0, din_p, c1_p), 0.0).astype(jnp.bfloat16)   # (TM, 896)
    a2 = jnp.maximum(mm(a1, r2, c1_p, c2_p), 0.0).astype(jnp.bfloat16)   # (TM, 896)
    a3 = jnp.maximum(mm(a2, r3, c2_p, c_p), 0.0).astype(jnp.bfloat16)    # (TM, 128)
    h = jnp.maximum(mm(a3, rf, c_p, c_p), 0.0).astype(jnp.bfloat16)      # (TM, 128)
    # TODO(synk): dropout is identity (eval mode); training-mode dropout not implemented.

    head = mm(h, rh, c_p, head_w)                # (TM, 128): [:,:A]=logits, [:,A]=v, rest 0

    col = jax.lax.broadcasted_iota(jnp.int32, head.shape, 1)
    is_logit = col < action_size
    masked = jnp.where(is_logit, head, jnp.float32(-1e30))
    m = jnp.max(masked, axis=-1, keepdims=True)
    lse = jnp.log(jnp.sum(jnp.exp(masked - m), axis=-1, keepdims=True)) + m

    # Single lane-dense (TM, 128) store: [log_softmax | tanh(v) | zeros]
    o_ref[...] = jnp.where(is_logit, head - lse,
                           jnp.where(col == action_size, jnp.tanh(head), 0.0))


# ---------------------------------------------------------------------------
# Wrapper-side, one-time weight preparation (conv unfolding + BN/bias folding)
# ---------------------------------------------------------------------------
def _round_up(x, m):
    return (x + m - 1) // m * m


def _cdiv(a, b):
    return -(-a // b)


def _unfold_conv(w_oihw, in_chw, pad):
    """Dense M with conv(x).reshape(-1) == x.reshape(-1) @ M (single sample, no bias).

    Built by applying the conv to the identity batch, so input/output flattening orders
    are consistent (NCHW row-major, channel-major output columns) by construction.
    """
    cin, hin, win = in_chw
    din = cin * hin * win
    eye = jnp.eye(din, dtype=jnp.float32).reshape(din, cin, hin, win)
    out = jax.lax.conv_general_dilated(
        eye, w_oihw.astype(jnp.float32), (1, 1), ((pad, pad), (pad, pad)),
        dimension_numbers=("NCHW", "OIHW", "NCHW"))
    return out.reshape(din, -1), out.shape[2:]      # (din, cout*ho*wo), (ho, wo)


def prepare_weights(params, width, height, num_channels, action_size, eps=1e-5):
    """Fold conv-bias + BatchNorm into unfolded matrices, fold every bias into an extra
    weight row (fed by a carried ones-column), pad to 128-lane widths and pack the whole
    network into ONE bf16 slab.  Returns (slab, dims) with dims static Python ints."""
    C = num_channels
    A = action_size
    din = 3 * height * width

    def bn_fold(lin_b, bn):
        gamma, beta, mean, var = bn
        scale = gamma / jnp.sqrt(var + eps)
        return scale, (lin_b - mean) * scale + beta

    def conv_block(w, b, bn, in_chw, pad):
        m, out_hw = _unfold_conv(w, in_chw, pad)
        cout = w.shape[0]
        rep = m.shape[1] // cout                    # spatial positions per output channel
        scale, bias = bn_fold(b, bn)                # unfolded cols are channel-major
        return m * jnp.repeat(scale, rep)[None, :], jnp.repeat(bias, rep), \
            (cout,) + tuple(out_hw)

    w1, b1, s1 = conv_block(params["conv1_w"], params["conv1_b"], params["bn1"],
                            (3, height, width), 2)
    w2, b2, s2 = conv_block(params["conv2_w"], params["conv2_b"], params["bn2"], s1, 2)
    w3, b3, s3 = conv_block(params["conv3_w"], params["conv3_b"], params["bn3"], s2, 0)

    # torch's `s.view(-1, num_channels)` relies on conv3 producing 1x1 spatial output,
    # which holds for the 3x3 board with these kernel/pad sizes.
    # TODO(synk): generalize the flatten for boards where conv3 output is not 1x1.
    assert s3[1] * s3[2] == 1, "conv3 output must be 1x1 spatial (3x3 board assumption)"

    scale, bias = bn_fold(params["fc1_b"], params["fc_bn1"])
    wf, bf = params["fc1_w"].T * scale[None, :], bias

    # head packs fc2 (logits) and fc3 (value) side by side
    wh = jnp.concatenate([params["fc2_w"].T, params["fc3_w"].T], axis=1)   # (C, A+1)
    bh = jnp.concatenate([params["fc2_b"], params["fc3_b"]])               # (A+1,)

    c1, c2 = int(w1.shape[1]), int(w2.shape[1])     # 800 = C*25 for the 3x3 board
    din_p = _round_up(din + 1, 16)                  # +1 ones column; bf16 sublane aligned
    c1_p = _round_up(c1 + 1, 128)                   # 800 -> 896 (lane-dense intermediates)
    c2_p = _round_up(c2 + 1, 128)
    c_p = _round_up(C + 1, 128)                     # 32 -> 128
    head_w = _round_up(A + 1, 128)                  # lane-dense head output width

    def block(w, b, k_true, k_pad, n_true, n_pad, carry_one):
        """(k_pad, n_pad) block: real weights, bias folded into the last row (fed by the
        ones column of the previous activation), and (optionally) a 1.0 that regenerates
        the ones column of the next activation (ReLU(1) == 1)."""
        blk = jnp.zeros((k_pad, n_pad), jnp.float32)
        blk = blk.at[:k_true, :n_true].set(w)
        blk = blk.at[k_pad - 1, :n_true].set(b)
        if carry_one:
            blk = blk.at[k_pad - 1, n_pad - 1].set(1.0)
        return blk

    blocks = [
        block(w1, b1, din, din_p, c1, c1_p, True),
        block(w2, b2, c1, c1_p, c2, c2_p, True),
        block(w3, b3, c2, c2_p, C, c_p, True),
        block(wf, bf, C, c_p, C, c_p, True),
        block(wh, bh, C, c_p, A + 1, head_w, False),   # head padding must stay exactly 0
    ]
    slab_w = max(c1_p, c2_p, c_p, head_w)
    slab = jnp.concatenate(
        [jnp.pad(b, ((0, 0), (0, slab_w - b.shape[1]))) for b in blocks], axis=0)
    return slab.astype(jnp.bfloat16), (din_p, c1_p, c2_p, c_p, head_w)


# ---------------------------------------------------------------------------
# Forward pass (single pallas_call)
# ---------------------------------------------------------------------------
def _choose_tiling(n):
    """Row tile (multiple of 8), padded row count, and grid size.

    - cap tm at 512 (per-step MXU work >> per-step grid overhead on all generations)
    - force >= 2 grid steps whenever the batch spans more than one 8-row group so the
      second TensorCore on v7x gets work ("parallel" grid axis)
    - pick the tile count first so row padding stays minimal."""
    n8 = _round_up(max(n, 1), 8)
    min_tiles = 1 if n8 <= 8 else 2
    tiles = max(min_tiles, _cdiv(n8, 512))
    tm = _round_up(_cdiv(n8, tiles), 8)
    return tm, tm * tiles, tiles


def fused_forward(wslab, s, *, width, height, action_size, dims):
    din = 3 * height * width
    din_p, _, _, _, head_w = dims

    xf = s.reshape(-1, din).astype(jnp.float32)      # torch view(-1,3,H,W), NCHW-flattened
    n = xf.shape[0]
    tm, rows, tiles = _choose_tiling(n)

    # [real board cols | zeros | ones column] — the ones column feeds the folded-bias rows.
    x = jnp.zeros((rows, din_p), jnp.float32)
    x = x.at[:n, :din].set(xf)
    x = x.at[:n, din_p - 1].set(1.0)

    out = pl.pallas_call(
        functools.partial(_fused_kernel, action_size=action_size, dims=dims),
        out_shape=jax.ShapeDtypeStruct((rows, head_w), jnp.float32),
        grid=(tiles,),
        in_specs=[
            pl.BlockSpec((tm, din_p), lambda i: (i, 0)),       # row tile of inputs
            pl.BlockSpec(wslab.shape, lambda i: (0, 0)),       # weight slab: VMEM-resident
        ],
        out_specs=pl.BlockSpec((tm, head_w), lambda i: (i, 0)),
        compiler_params=pltpu.CompilerParams(
            dimension_semantics=("parallel",),
            vmem_limit_bytes=32 * 1024 * 1024),                # v5e default scope is 16 MiB
    )(x, wslab)

    return out[:n, :action_size], out[:n, action_size:action_size + 1]


# ---------------------------------------------------------------------------
# Pure-JAX reference (mirrors the PyTorch forward, eval mode) + parameter init
# ---------------------------------------------------------------------------
def reference_forward(params, s, height, width, num_channels, eps=1e-5):
    x = jnp.where(s == 2.0, -1.0, s).astype(jnp.float32).reshape(-1, 3, height, width)

    def conv_bn_relu(x, w, b, bn, pad):
        y = jax.lax.conv_general_dilated(
            x, w, (1, 1), ((pad, pad), (pad, pad)),
            dimension_numbers=("NCHW", "OIHW", "NCHW"))
        y = y + b[None, :, None, None]
        g, be, mu, var = bn
        sc = (g / jnp.sqrt(var + eps))[None, :, None, None]
        y = (y - mu[None, :, None, None]) * sc + be[None, :, None, None]
        return jnp.maximum(y, 0.0)

    x = conv_bn_relu(x, params["conv1_w"], params["conv1_b"], params["bn1"], 2)
    x = conv_bn_relu(x, params["conv2_w"], params["conv2_b"], params["bn2"], 2)
    x = conv_bn_relu(x, params["conv3_w"], params["conv3_b"], params["bn3"], 0)

    h = x.reshape(-1, num_channels)
    h = h @ params["fc1_w"].T + params["fc1_b"]
    g, be, mu, var = params["fc_bn1"]
    h = jnp.maximum((h - mu) * (g / jnp.sqrt(var + eps)) + be, 0.0)

    logits = h @ params["fc2_w"].T + params["fc2_b"]
    m = jnp.max(logits, axis=1, keepdims=True)
    logp = logits - (jnp.log(jnp.sum(jnp.exp(logits - m), axis=1, keepdims=True)) + m)
    v = jnp.tanh(h @ params["fc3_w"].T + params["fc3_b"])
    return logp, v


def init_params(key, action_size, C):
    ks = iter(jax.random.split(key, 40))

    def rnd(shape, s=0.1):
        return s * jax.random.normal(next(ks), shape, jnp.float32)

    def bn():
        gamma = 1.0 + rnd((C,))
        beta = rnd((C,))
        mean = rnd((C,))
        var = 1.0 + 0.1 * jnp.abs(jax.random.normal(next(ks), (C,), jnp.float32))
        return (gamma, beta, mean, var)

    return {
        "conv1_w": rnd((C, 3, 3, 3)), "conv1_b": rnd((C,)),
        "conv2_w": rnd((C, C, 5, 5)), "conv2_b": rnd((C,)),
        "conv3_w": rnd((C, C, 5, 5)), "conv3_b": rnd((C,)),
        "bn1": bn(), "bn2": bn(), "bn3": bn(),
        "fc1_w": rnd((C, C)), "fc1_b": rnd((C,)),
        "fc_bn1": bn(),
        "fc2_w": rnd((action_size, C)), "fc2_b": rnd((action_size,)),
        "fc3_w": rnd((1, C)), "fc3_b": rnd((1,)),
    }


if __name__ == "__main__":
    width, height = 3, 3          # tic-tac-toe board: conv3 output spatial is 1x1
    action_size = 9
    num_channels = 32
    batch = 2

    key = jax.random.PRNGKey(0)
    pkey, xkey = jax.random.split(key)
    params = init_params(pkey, action_size, num_channels)

    # board encoded with values {0, 1, 2}, PyTorch NCHW layout
    x = jax.random.randint(xkey, (batch, 3, height, width), 0, 3).astype(jnp.float32)

    # one-time weight prep (unfold convs, fold BN + biases, pack one bf16 slab)
    wslab, dims = prepare_weights(params, width, height, num_channels, action_size)
    fwd = jax.jit(functools.partial(fused_forward, width=width, height=height,
                                    action_size=action_size, dims=dims))

    logp, v = fwd(wslab, x)
    jax.block_until_ready((logp, v))
    assert logp.shape == (batch, action_size) and v.shape == (batch, 1)

    # sanity check vs f32 pure-JAX reference (loose tol: kernel matmuls use bf16 operands)
    ref_logp, ref_v = reference_forward(params, x, height, width, num_channels)
    err = max(float(jnp.max(jnp.abs(logp - ref_logp))),
              float(jnp.max(jnp.abs(v - ref_v))))
    assert err < 0.1, f"mismatch vs reference: max abs err = {err}"

    print("KERNEL_OK")
</pallas_src>

<mosaic_0001>
module attributes {stable_mosaic.version = 11 : i64} {
  func.func @_fused_kernel(%arg0: i32, %arg1: memref<8x32xf32, #tpu.memory_space<vmem>>, %arg2: memref<2080x896xbf16, #tpu.memory_space<vmem>>, %arg3: memref<8x128xf32, #tpu.memory_space<vmem>>) attributes {dimension_semantics = [#tpu.dimension_semantics<parallel>], iteration_bounds = array<i64: 1>, scalar_prefetch = 0 : i64, scratch_operands = 0 : i64, tpu.core_type = #tpu.core_type<tc>, window_params = [{transform_indices = @transform_0, window_bounds = array<i64: 8, 32>}, {pipeline_mode = #tpu.pipeline_mode<synchronous>, transform_indices = @transform_1, window_bounds = array<i64: 2080, 896>}, {transform_indices = @transform_2, window_bounds = array<i64: 8, 128>}]} {
    %c0 = arith.constant 0 : index
    %c0_0 = arith.constant 0 : index
    %0 = vector.load %arg1[%c0, %c0_0] : memref<8x32xf32, #tpu.memory_space<vmem>>, vector<8x32xf32>
    %cst = arith.constant 2.000000e+00 : f32
    %1 = vector.broadcast %cst : f32 to vector<8x32xf32>
    %2 = arith.cmpf oeq, %0, %1 : vector<8x32xf32>
    %cst_1 = arith.constant -1.000000e+00 : f32
    %3 = vector.broadcast %cst_1 : f32 to vector<8x32xf32>
    %4 = arith.select %2, %3, %0 : vector<8x32xi1>, vector<8x32xf32>
    %5 = arith.truncf %4 : vector<8x32xf32> to vector<8x32xbf16>
    %c0_2 = arith.constant 0 : index
    %c0_3 = arith.constant 0 : index
    %6 = vector.load %arg2[%c0_2, %c0_3] : memref<2080x896xbf16, #tpu.memory_space<vmem>>, vector<32x896xbf16>
    %cst_4 = arith.constant dense<0.000000e+00> : vector<8x896xf32>
    %7 = tpu.matmul %5, %6, %cst_4 {dimension_numbers = #tpu.dot_dimension_numbers<[1], [0], [0], [1], [0, 0, 1, 1], [], []>} : vector<8x32xbf16>, vector<32x896xbf16>, vector<8x896xf32> -> vector<8x896xf32>
    %cst_5 = arith.constant 0.000000e+00 : f32
    %8 = vector.broadcast %cst_5 : f32 to vector<8x896xf32>
    %9 = arith.maximumf %7, %8 : vector<8x896xf32>
    %10 = arith.truncf %9 : vector<8x896xf32> to vector<8x896xbf16>
    %c32 = arith.constant 32 : index
    %c0_6 = arith.constant 0 : index
    %11 = vector.load %arg2[%c32, %c0_6] : memref<2080x896xbf16, #tpu.memory_space<vmem>>, vector<896x896xbf16>
    %cst_7 = arith.constant dense<0.000000e+00> : vector<8x896xf32>
    %12 = tpu.matmul %10, %11, %cst_7 {dimension_numbers = #tpu.dot_dimension_numbers<[1], [0], [0], [1], [0, 0, 1, 1], [], []>} : vector<8x896xbf16>, vector<896x896xbf16>, vector<8x896xf32> -> vector<8x896xf32>
    %cst_8 = arith.constant 0.000000e+00 : f32
    %13 = vector.broadcast %cst_8 : f32 to vector<8x896xf32>
    %14 = arith.maximumf %12, %13 : vector<8x896xf32>
    %15 = arith.truncf %14 : vector<8x896xf32> to vector<8x896xbf16>
    %c928 = arith.constant 928 : index
    %c0_9 = arith.constant 0 : index
    %16 = vector.load %arg2[%c928, %c0_9] : memref<2080x896xbf16, #tpu.memory_space<vmem>>, vector<896x128xbf16>
    %cst_10 = arith.constant dense<0.000000e+00> : vector<8x128xf32>
    %17 = tpu.matmul %15, %16, %cst_10 {dimension_numbers = #tpu.dot_dimension_numbers<[1], [0], [0], [1], [0, 0, 1, 1], [], []>} : vector<8x896xbf16>, vector<896x128xbf16>, vector<8x128xf32> -> vector<8x128xf32>
    %cst_11 = arith.constant 0.000000e+00 : f32
    %18 = vector.broadcast %cst_11 : f32 to vector<8x128xf32>
    %19 = arith.maximumf %17, %18 : vector<8x128xf32>
    %20 = arith.truncf %19 : vector<8x128xf32> to vector<8x128xbf16>
    %c1824 = arith.constant 1824 : index
    %c0_12 = arith.constant 0 : index
    %21 = vector.load %arg2[%c1824, %c0_12] : memref<2080x896xbf16, #tpu.memory_space<vmem>>, vector<128x128xbf16>
    %cst_13 = arith.constant dense<0.000000e+00> : vector<8x128xf32>
    %22 = tpu.matmul %20, %21, %cst_13 {dimension_numbers = #tpu.dot_dimension_numbers<[1], [0], [0], [1], [0, 0, 1, 1], [], []>} : vector<8x128xbf16>, vector<128x128xbf16>, vector<8x128xf32> -> vector<8x128xf32>
    %cst_14 = arith.constant 0.000000e+00 : f32
    %23 = vector.broadcast %cst_14 : f32 to vector<8x128xf32>
    %24 = arith.maximumf %22, %23 : vector<8x128xf32>
    %25 = arith.truncf %24 : vector<8x128xf32> to vector<8x128xbf16>
    %c1952 = arith.constant 1952 : index
    %c0_15 = arith.constant 0 : index
    %26 = vector.load %arg2[%c1952, %c0_15] : memref<2080x896xbf16, #tpu.memory_space<vmem>>, vector<128x128xbf16>
    %cst_16 = arith.constant dense<0.000000e+00> : vector<8x128xf32>
    %27 = tpu.matmul %25, %26, %cst_16 {dimension_numbers = #tpu.dot_dimension_numbers<[1], [0], [0], [1], [0, 0, 1, 1], [], []>} : vector<8x128xbf16>, vector<128x128xbf16>, vector<8x128xf32> -> vector<8x128xf32>
    %28 = tpu.iota {dimensions = array<i32: 1>} : vector<8x128xi32>
    %c9_i32 = arith.constant 9 : i32
    %29 = vector.broadcast %c9_i32 : i32 to vector<8x128xi32>
    %30 = arith.cmpi slt, %28, %29 : vector<8x128xi32>
    %cst_17 = arith.constant -1.000000e+30 : f32
    %31 = vector.broadcast %cst_17 : f32 to vector<8x128xf32>
    %32 = arith.select %30, %27, %31 : vector<8x128xi1>, vector<8x128xf32>
    %cst_18 = arith.constant dense<0xFF800000> : vector<8xf32>
    %33 = vector.multi_reduction <maximumf>, %32, %cst_18 [1] : vector<8x128xf32> to vector<8xf32>
    %34 = vector.shape_cast %33 : vector<8xf32> to vector<8x1xf32>
    %35 = vector.broadcast %34 : vector<8x1xf32> to vector<8x128xf32>
    %36 = arith.subf %32, %35 : vector<8x128xf32>
    %37 = math.exp %36 : vector<8x128xf32>
    %cst_19 = arith.constant dense<0.000000e+00> : vector<8xf32>
    %38 = vector.multi_reduction <add>, %37, %cst_19 [1] : vector<8x128xf32> to vector<8xf32>
    %39 = vector.shape_cast %38 : vector<8xf32> to vector<8x1xf32>
    %40 = math.log %39 : vector<8x1xf32>
    %41 = arith.addf %40, %34 : vector<8x1xf32>
    %42 = vector.broadcast %41 : vector<8x1xf32> to vector<8x128xf32>
    %43 = arith.subf %27, %42 : vector<8x128xf32>
    %c9_i32_20 = arith.constant 9 : i32
    %44 = vector.broadcast %c9_i32_20 : i32 to vector<8x128xi32>
    %45 = arith.cmpi eq, %28, %44 : vector<8x128xi32>
    %46 = math.tanh %27 : vector<8x128xf32>
    %cst_21 = arith.constant 0.000000e+00 : f32
    %47 = vector.broadcast %cst_21 : f32 to vector<8x128xf32>
    %48 = arith.select %45, %46, %47 : vector<8x128xi1>, vector<8x128xf32>
    %49 = arith.select %30, %43, %48 : vector<8x128xi1>, vector<8x128xf32>
    %c0_22 = arith.constant 0 : index
    %c0_23 = arith.constant 0 : index
    %50 = vector.load %arg3[%c0_22, %c0_23] : memref<8x128xf32, #tpu.memory_space<vmem>>, vector<8x128xf32>
    tpu.vector_store %arg3[%c0_22, %c0_23], %49 {strides = array<i32>} : memref<8x128xf32, #tpu.memory_space<vmem>>, vector<8x128xf32>,
    return
  }
  func.func @transform_0(%arg0: i32) -> (i32, i32) {
    %c0_i32 = arith.constant 0 : i32
    %c0_i32_0 = arith.constant 0 : i32
    return %arg0, %c0_i32 : i32, i32
  }
  func.func @transform_1(%arg0: i32) -> (i32, i32) {
    %c0_i32 = arith.constant 0 : i32
    %c0_i32_0 = arith.constant 0 : i32
    %c0_i32_1 = arith.constant 0 : i32
    return %c0_i32, %c0_i32_0 : i32, i32
  }
  func.func @transform_2(%arg0: i32) -> (i32, i32) {
    %c0_i32 = arith.constant 0 : i32
    %c0_i32_0 = arith.constant 0 : i32
    return %arg0, %c0_i32 : i32, i32
  }
}

</mosaic_0001>

<llo_original>
// kernel: fused_forward.1
$region0: #{fused_forward.1}
  #allocation0 [shape = 'u32[]', space=smem, size = 0x4, offset = 0x4, fixed_abs, tag = 'smem constant byte address 0x4 - core index']
  #allocation1 [shape = 'u32[144,128]{1,0:T(1,128)}', space=vmem, size = 0x12000, scoped, tag = 'internal scratch']
  %s0 = inlined_call_operand.vmem [shape: f32[8,32], index: 0, kind: input, shape index: {}]
  %s1 = inlined_call_operand.hbm [shape: bf16[2080,896], index: 1, kind: input, shape index: {}]
  %s2 = inlined_call_operand.vmem [shape: f32[8,128], index: 2, kind: output, shape index: {}]
  %s3 = sld [smem:[#allocation0]]
  $region22: #{fused_forward.1} parent=0
    _
  %s5 = ssub.s32 1, %s3
  %s6 = scalar_select 0, %s5, %s3
  $region1: #{fused_forward.1} parent=0
    #allocation2 [shape = 'u8[3727360]{0}', space=vmem, size = 0x38e000, scoped, tag = 'input window, operand 1, single buffered']
    #allocation3 [shape = 's32[1]{0}', space=sflag, size = 0x4, scoped, tag = 'scoped memory for fused_forward.1']
    %7 = vsyncpa [#allocation3], 0
    // Predicated region
    $region2: #{fused_forward.1} parent=1 // pred_check
      _
    $region3: #{fused_forward.1} parent=1 // pred_check_branch
      %9 = sbr.rel (0) target = $region5
    $region4: #{fused_forward.1} parent=1 // pred_region
      _
    $region5: #{fused_forward.1} parent=1 // pred_fallthru
      _
    // Predicated region
    $region6: #{fused_forward.1} parent=1 // pred_check
      _
    $region7: #{fused_forward.1} parent=1 // pred_check_branch
      %11 = sbr.rel (0) target = $region9
    $region8: #{fused_forward.1} parent=1 // pred_region
      %s13 = ssub.s32 116480, 116480
      %14 = vsyncadd [#allocation3], %s13
      %s15 = sshll.u32 [#allocation2], 4
      %s16 = int_to_ptr.vmem [resolvable:$true] %s15
      %21 = dma.hbm_to_vmem [thread:$0]  %s1, 116480, %s16, [#allocation3], 448, 448, 28
    $region9: #{fused_forward.1} parent=1 // pred_fallthru
      _
    // Predicated region
    $region10: #{fused_forward.1} parent=1 // pred_check
      _
    $region11: #{fused_forward.1} parent=1 // pred_check_branch
      %23 = sbr.rel (0) target = $region13
    $region12: #{fused_forward.1} parent=1 // pred_region
      %24 = dma.done [#allocation3], 116480
    $region13: #{fused_forward.1} parent=1 // pred_fallthru
      _
    %v26 = vld [vmem:[%s0] sm:$0xff]
    %vm27 = vcmp.eq.f32.partialorder %v26, 2.0
    %v28 = vsel %vm27, -1.0, %v26
    %v29 = vpack.c.bf16 %v28, %v28
    %v30 = vld [vmem:[#allocation2] sm:$0xff]
    %v31 = vld [vmem:[#allocation2 + $0x8] sm:$0xff]
    %v32 = vld [vmem:[#allocation2 + $0x10] sm:$0xff]
    %v33 = vld [vmem:[#allocation2 + $0x18] sm:$0xf]
    %v34 = vld [vmem:[#allocation2 + $0x1c] sm:$0xff]
    %v35 = vld [vmem:[#allocation2 + $0x24] sm:$0xff]
    %v36 = vld [vmem:[#allocation2 + $0x2c] sm:$0xff]
    %v37 = vld [vmem:[#allocation2 + $0x34] sm:$0xf]
    %v38 = vld [vmem:[#allocation2 + $0x38] sm:$0xff]
    %v39 = vld [vmem:[#allocation2 + $0x40] sm:$0xff]
    %v40 = vld [vmem:[#allocation2 + $0x48] sm:$0xff]
    %v41 = vld [vmem:[#allocation2 + $0x50] sm:$0xf]
    %v42 = vld [vmem:[#allocation2 + $0x54] sm:$0xff]
    %v43 = vld [vmem:[#allocation2 + $0x5c] sm:$0xff]
    %v44 = vld [vmem:[#allocation2 + $0x64] sm:$0xff]
    %v45 = vld [vmem:[#allocation2 + $0x6c] sm:$0xf]
    %v62 = vunpack.c.l.b16 %v30
    %v63 = vunpack.c.h.b16 %v30
    %v64 = vunpack.c.l.b16 %v31
    %v65 = vunpack.c.h.b16 %v31
    %v66 = vunpack.c.l.b16 %v32
    %v67 = vunpack.c.h.b16 %v32
    %v68 = vunpack.c.l.b16 %v33
    %v69 = vunpack.c.l.b16 %v34
    %v70 = vunpack.c.h.b16 %v34
    %v71 = vunpack.c.l.b16 %v35
    %v72 = vunpack.c.h.b16 %v35
    %v73 = vunpack.c.l.b16 %v36
    %v74 = vunpack.c.h.b16 %v36
    %v75 = vunpack.c.l.b16 %v37
    %v76 = vunpack.c.l.b16 %v38
    %v77 = vunpack.c.h.b16 %v38
    %v78 = vunpack.c.l.b16 %v39
    %v79 = vunpack.c.h.b16 %v39
    %v80 = vunpack.c.l.b16 %v40
    %v81 = vunpack.c.h.b16 %v40
    %v82 = vunpack.c.l.b16 %v41
    %v83 = vunpack.c.l.b16 %v42
    %v84 = vunpack.c.h.b16 %v42
    %v85 = vunpack.c.l.b16 %v43
    %v86 = vunpack.c.h.b16 %v43
    %v87 = vunpack.c.l.b16 %v44
    %v88 = vunpack.c.h.b16 %v44
    %v89 = vunpack.c.l.b16 %v45
    %v90 = vpack.c.b16 %v69, %v62
    %v91 = vpack.c.b16 %v70, %v63
    %v92 = vpack.c.b16 %v71, %v64
    %v93 = vpack.c.b16 %v72, %v65
    %v94 = vpack.c.b16 %v73, %v66
    %v95 = vpack.c.b16 %v74, %v67
    %v96 = vpack.c.b16 %v75, %v68
    %v97 = vpack.c.b16 %v83, %v76
    %v98 = vpack.c.b16 %v84, %v77
    %v99 = vpack.c.b16 %v85, %v78
    %v100 = vpack.c.b16 %v86, %v79
    %v101 = vpack.c.b16 %v87, %v80
    %v102 = vpack.c.b16 %v88, %v81
    %v103 = vpack.c.b16 %v89, %v82
    %vm118 = vcmask 261120
    %v120 = vsel %vm118, %v29, 0
    %122 = vmatprep.subr.bf16.mxu0 0
    %123 = vmatpush1.bf16.msra.mxu0 0
    %124 = vmatprep.subr.bf16.mxu0 0
    %125 = vmatpush1.bf16.msra.mxu0 0
    %126 = vmatprep.subr.bf16.mxu0 0
    %127 = vmatpush1.bf16.msra.mxu0 0
    %128 = vmatprep.subr.bf16.mxu0 0
    %129 = vmatpush1.bf16.msra.mxu0 0
    %130 = vmatprep.subr.bf16.mxu0 0
    %131 = vmatpush1.bf16.msra.mxu0 0
    %132 = vmatprep.subr.bf16.mxu0 0
    %133 = vmatpush1.bf16.msra.mxu0 0
    %134 = vmatprep.subr.bf16.mxu0 %v98
    %135 = vmatpush1.bf16.msra.mxu0 %v97
    %136 = vmatprep.subr.bf16.mxu0 %v91
    %137 = vmatpush1.bf16.msra.mxu0 %v90
    %138 = vmatprep.subr.bf16.mxu0 0
    %139 = vmatpush2.bf16.msra.mxu0 0
    %140 = vmatprep.subr.bf16.mxu0 0
    %141 = vmatpush2.bf16.msra.mxu0 0
    %142 = vmatprep.subr.bf16.mxu0 0
    %143 = vmatpush2.bf16.msra.mxu0 0
    %144 = vmatprep.subr.bf16.mxu0 0
    %145 = vmatpush2.bf16.msra.mxu0 0
    %146 = vmatprep.subr.bf16.mxu0 0
    %147 = vmatpush2.bf16.msra.mxu0 0
    %148 = vmatprep.subr.bf16.mxu0 0
    %149 = vmatpush2.bf16.msra.mxu0 0
    %150 = vmatprep.subr.bf16.mxu0 0
    %151 = vmatpush2.bf16.msra.mxu0 0
    %152 = vmatprep.subr.bf16.mxu0 0
    %153 = vmatpush2.bf16.msra.mxu0 0
    %154 = vmatprep.mubr.bf16.mxu0 0
    %155 = vmatmul.mubr.bf16.gmra.mxu0 %v120
    %v156 = vpop.f32.mrf.mxu0
    %v157 = vadd.f32 0.0, %v156
    %v158 = vpop.f32.mrf.mxu0
    %v159 = vadd.f32 0.0, %v158
    %v160 = vpop.f32.mrf.mxu0
    %v161 = vpop.f32.mrf.mxu0
    %162 = vdwg.mxu0
    %163 = vmatprep.subr.bf16.mxu0 0
    %164 = vmatpush1.bf16.msra.mxu0 0
    %165 = vmatprep.subr.bf16.mxu0 0
    %166 = vmatpush1.bf16.msra.mxu0 0
    %167 = vmatprep.subr.bf16.mxu0 0
    %168 = vmatpush1.bf16.msra.mxu0 0
    %169 = vmatprep.subr.bf16.mxu0 0
    %170 = vmatpush1.bf16.msra.mxu0 0
    %171 = vmatprep.subr.bf16.mxu0 0
    %172 = vmatpush1.bf16.msra.mxu0 0
    %173 = vmatprep.subr.bf16.mxu0 0
    %174 = vmatpush1.bf16.msra.mxu0 0
    %175 = vmatprep.subr.bf16.mxu0 %v100
    %176 = vmatpush1.bf16.msra.mxu0 %v99
    %177 = vmatprep.subr.bf16.mxu0 %v93
    %178 = vmatpush1.bf16.msra.mxu0 %v92
    %179 = vmatprep.subr.bf16.mxu0 0
    %180 = vmatpush2.bf16.msra.mxu0 0
    %181 = vmatprep.subr.bf16.mxu0 0
    %182 = vmatpush2.bf16.msra.mxu0 0
    %183 = vmatprep.subr.bf16.mxu0 0
    %184 = vmatpush2.bf16.msra.mxu0 0
    %185 = vmatprep.subr.bf16.mxu0 0
    %186 = vmatpush2.bf16.msra.mxu0 0
    %187 = vmatprep.subr.bf16.mxu0 0
    %188 = vmatpush2.bf16.msra.mxu0 0
    %189 = vmatprep.subr.bf16.mxu0 0
    %190 = vmatpush2.bf16.msra.mxu0 0
    %191 = vmatprep.subr.bf16.mxu0 0
    %192 = vmatpush2.bf16.msra.mxu0 0
    %193 = vmatprep.subr.bf16.mxu0 0
    %194 = vmatpush2.bf16.msra.mxu0 0
    %195 = vmatprep.mubr.bf16.mxu0 0
    %196 = vmatmul.mubr.bf16.gmra.mxu0 %v120
    %v197 = vpop.f32.mrf.mxu0
    %v198 = vadd.f32 0.0, %v197
    %v199 = vpop.f32.mrf.mxu0
    %v200 = vadd.f32 0.0, %v199
    %v201 = vpop.f32.mrf.mxu0
    %v202 = vpop.f32.mrf.mxu0
    %203 = vdwg.mxu0
    %204 = vmatprep.subr.bf16.mxu0 0
    %205 = vmatpush1.bf16.msra.mxu0 0
    %206 = vmatprep.subr.bf16.mxu0 0
    %207 = vmatpush1.bf16.msra.mxu0 0
    %208 = vmatprep.subr.bf16.mxu0 0
    %209 = vmatpush1.bf16.msra.mxu0 0
    %210 = vmatprep.subr.bf16.mxu0 0
    %211 = vmatpush1.bf16.msra.mxu0 0
    %212 = vmatprep.subr.bf16.mxu0 0
    %213 = vmatpush1.bf16.msra.mxu0 0
    %214 = vmatprep.subr.bf16.mxu0 0
    %215 = vmatpush1.bf16.msra.mxu0 0
    %216 = vmatprep.subr.bf16.mxu0 %v102
    %217 = vmatpush1.bf16.msra.mxu0 %v101
    %218 = vmatprep.subr.bf16.mxu0 %v95
    %219 = vmatpush1.bf16.msra.mxu0 %v94
    %220 = vmatprep.subr.bf16.mxu0 0
    %221 = vmatpush2.bf16.msra.mxu0 0
    %222 = vmatprep.subr.bf16.mxu0 0
    %223 = vmatpush2.bf16.msra.mxu0 0
    %224 = vmatprep.subr.bf16.mxu0 0
    %225 = vmatpush2.bf16.msra.mxu0 0
    %226 = vmatprep.subr.bf16.mxu0 0
    %227 = vmatpush2.bf16.msra.mxu0 0
    %228 = vmatprep.subr.bf16.mxu0 0
    %229 = vmatpush2.bf16.msra.mxu0 0
    %230 = vmatprep.subr.bf16.mxu0 0
    %231 = vmatpush2.bf16.msra.mxu0 0
    %232 = vmatprep.subr.bf16.mxu0 0
    %233 = vmatpush2.bf16.msra.mxu0 0
    %234 = vmatprep.subr.bf16.mxu0 0
    %235 = vmatpush2.bf16.msra.mxu0 0
    %236 = vmatprep.mubr.bf16.mxu0 0
    %237 = vmatmul.mubr.bf16.gmra.mxu0 %v120
    %v238 = vpop.f32.mrf.mxu0
    %v239 = vadd.f32 0.0, %v238
    %v240 = vpop.f32.mrf.mxu0
    %v241 = vadd.f32 0.0, %v240
    %v242 = vpop.f32.mrf.mxu0
    %v243 = vpop.f32.mrf.mxu0
    %244 = vdwg.mxu0
    %245 = vmatprep.subr.bf16.mxu0 0
    %246 = vmatpush1.bf16.msra.mxu0 0
    %247 = vmatprep.subr.bf16.mxu0 0
    %248 = vmatpush1.bf16.msra.mxu0 0
    %249 = vmatprep.subr.bf16.mxu0 0
    %250 = vmatpush1.bf16.msra.mxu0 0
    %251 = vmatprep.subr.bf16.mxu0 0
    %252 = vmatpush1.bf16.msra.mxu0 0
    %253 = vmatprep.subr.bf16.mxu0 0
    %254 = vmatpush1.bf16.msra.mxu0 0
    %255 = vmatprep.subr.bf16.mxu0 0
    %256 = vmatpush1.bf16.msra.mxu0 0
    %257 = vmatprep.subr.bf16.mxu0 0
    %258 = vmatpush1.bf16.msra.mxu0 %v103
    %259 = vmatprep.subr.bf16.mxu0 0
    %260 = vmatpush1.bf16.msra.mxu0 %v96
    %261 = vmatprep.subr.bf16.mxu0 0
    %262 = vmatpush2.bf16.msra.mxu0 0
    %263 = vmatprep.subr.bf16.mxu0 0
    %264 = vmatpush2.bf16.msra.mxu0 0
    %265 = vmatprep.subr.bf16.mxu0 0
    %266 = vmatpush2.bf16.msra.mxu0 0
    %267 = vmatprep.subr.bf16.mxu0 0
    %268 = vmatpush2.bf16.msra.mxu0 0
    %269 = vmatprep.subr.bf16.mxu0 0
    %270 = vmatpush2.bf16.msra.mxu0 0
    %271 = vmatprep.subr.bf16.mxu0 0
    %272 = vmatpush2.bf16.msra.mxu0 0
    %273 = vmatprep.subr.bf16.mxu0 0
    %274 = vmatpush2.bf16.msra.mxu0 0
    %275 = vmatprep.subr.bf16.mxu0 0
    %276 = vmatpush2.bf16.msra.mxu0 0
    %277 = vmatprep.mubr.bf16.mxu0 0
    %278 = vmatmul.mubr.bf16.gmra.mxu0 %v120
    %v279 = vpop.f32.mrf.mxu0
    %v280 = vadd.f32 0.0, %v279
    %v281 = vpop.f32.mrf.mxu0
    %v282 = vpop.f32.mrf.mxu0
    %v283 = vpop.f32.mrf.mxu0
    %284 = vdwg.mxu0
    %v285 = vmax.f32 %v157, 0.0
    %v286 = vmax.f32 %v159, 0.0
    %v287 = vmax.f32 %v198, 0.0
    %v288 = vmax.f32 %v200, 0.0
    %v289 = vmax.f32 %v239, 0.0
    %v290 = vmax.f32 %v241, 0.0
    %v291 = vmax.f32 %v280, 0.0
    %v292 = vpack.c.bf16 %v285, %v285
    %v293 = vpack.c.bf16 %v286, %v286
    %v294 = vpack.c.bf16 %v287, %v287
    %v295 = vpack.c.bf16 %v288, %v288
    %v296 = vpack.c.bf16 %v289, %v289
    %v297 = vpack.c.bf16 %v290, %v290
    %v298 = vpack.c.bf16 %v291, %v291
    %v299 = vld [vmem:[#allocation2 + $0x70] sm:$0xff]
    %v300 = vld [vmem:[#allocation2 + $0x78] sm:$0xff]
    %v301 = vld [vmem:[#allocation2 + $0x80] sm:$0xff]
    %v302 = vld [vmem:[#allocation2 + $0x88] sm:$0xf]
    %v303 = vld [vmem:[#allocation2 + $0x8c] sm:$0xff]
    %v304 = vld [vmem:[#allocation2 + $0x94] sm:$0xff]
    %v305 = vld [vmem:[#allocation2 + $0x9c] sm:$0xff]
    %v306 = vld [vmem:[#allocation2 + $0xa4] sm:$0xf]
    %v307 = vld [vmem:[#allocation2 + $0xa8] sm:$0xff]
    %v308 = vld [vmem:[#allocation2 + $0xb0] sm:$0xff]
    %v309 = vld [vmem:[#allocation2 + $0xb8] sm:$0xff]
    %v310 = vld [vmem:[#allocation2 + $0xc0] sm:$0xf]
    %v311 = vld [vmem:[#allocation2 + $0xc4] sm:$0xff]
    %v312 = vld [vmem:[#allocation2 + $0xcc] sm:$0xff]
    %v313 = vld [vmem:[#allocation2 + $0xd4] sm:$0xff]
    %v314 = vld [vmem:[#allocation2 + $0xdc] sm:$0xf]
    %v315 = vld [vmem:[#allocation2 + $0xe0] sm:$0xff]
    %v316 = vld [vmem:[#allocation2 + $0xe8] sm:$0xff]
    %v317 = vld [vmem:[#allocation2 + $0xf0] sm:$0xff]
    %v318 = vld [vmem:[#allocation2 + $0xf8] sm:$0xf]
    %v319 = vld [vmem:[#allocation2 + $0xfc] sm:$0xff]
    %v320 = vld [vmem:[#allocation2 + $0x104] sm:$0xff]
    %v321 = vld [vmem:[#allocation2 + $0x10c] sm:$0xff]
    %v322 = vld [vmem:[#allocation2 + $0x114] sm:$0xf]
    %v323 = vld [vmem:[#allocation2 + $0x118] sm:$0xff]
    %v324 = vld [vmem:[#allocation2 + $0x120] sm:$0xff]
    %v325 = vld [vmem:[#allocation2 + $0x128] sm:$0xff]
    %v326 = vld [vmem:[#allocation2 + $0x130] sm:$0xf]
    %v327 = vld [vmem:[#allocation2 + $0x134] sm:$0xff]
    %v328 = vld [vmem:[#allocation2 + $0x13c] sm:$0xff]
    %v329 = vld [vmem:[#allocation2 + $0x144] sm:$0xff]
    %v330 = vld [vmem:[#allocation2 + $0x14c] sm:$0xf]
    %v331 = vld [vmem:[#allocation2 + $0x150] sm:$0xff]
    %v332 = vld [vmem:[#allocation2 + $0x158] sm:$0xff]
    %v333 = vld [vmem:[#allocation2 + $0x160] sm:$0xff]
    %v334 = vld [vmem:[#allocation2 + $0x168] sm:$0xf]
    %v335 = vld [vmem:[#allocation2 + $0x16c] sm:$0xff]
    %v336 = vld [vmem:[#allocation2 + $0x174] sm:$0xff]
    %v337 = vld [vmem:[#allocation2 + $0x17c] sm:$0xff]
    %v338 = vld [vmem:[#allocation2 + $0x184] sm:$0xf]
    %v339 = vld [vmem:[#allocation2 + $0x188] sm:$0xff]
    %v340 = vld [vmem:[#allocation2 + $0x190] sm:$0xff]
    %v341 = vld [vmem:[#allocation2 + $0x198] sm:$0xff]
    %v342 = vld [vmem:[#allocation2 + $0x1a0] sm:$0xf]
    %v343 = vld [vmem:[#allocation2 + $0x1a4] sm:$0xff]
    %v344 = vld [vmem:[#allocation2 + $0x1ac] sm:$0xff]
    %v345 = vld [vmem:[#allocation2 + $0x1b4] sm:$0xff]
    %v346 = vld [vmem:[#allocation2 + $0x1bc] sm:$0xf]
    %v347 = vld [vmem:[#allocation2 + $0x1c0] sm:$0xff]
    %v348 = vld [vmem:[#allocation2 + $0x1c8] sm:$0xff]
    %v349 = vld [vmem:[#allocation2 + $0x1d0] sm:$0xff]
    %v350 = vld [vmem:[#allocation2 + $0x1d8] sm:$0xf]
    %v351 = vld [vmem:[#allocation2 + $0x1dc] sm:$0xff]
    %v352 = vld [vmem:[#allocation2 + $0x1e4] sm:$0xff]
    %v353 = vld [vmem:[#allocation2 + $0x1ec] sm:$0xff]
    %v354 = vld [vmem:[#allocation2 + $0x1f4] sm:$0xf]
    %v355 = vld [vmem:[#allocation2 + $0x1f8] sm:$0xff]
    %v356 = vld [vmem:[#allocation2 + $0x200] sm:$0xff]
    %v357 = vld [vmem:[#allocation2 + $0x208] sm:$0xff]
    %v358 = vld [vmem:[#allocation2 + $0x210] sm:$0xf]
    %v359 = vld [vmem:[#allocation2 + $0x214] sm:$0xff]
    %v360 = vld [vmem:[#allocation2 + $0x21c] sm:$0xff]
    %v361 = vld [vmem:[#allocation2 + $0x224] sm:$0xff]
    %v362 = vld [vmem:[#allocation2 + $0x22c] sm:$0xf]
    %v363 = vld [vmem:[#allocation2 + $0x230] sm:$0xff]
    %v364 = vld [vmem:[#allocation2 + $0x238] sm:$0xff]
    %v365 = vld [vmem:[#allocation2 + $0x240] sm:$0xff]
    %v366 = vld [vmem:[#allocation2 + $0x248] sm:$0xf]
    %v367 = vld [vmem:[#allocation2 + $0x24c] sm:$0xff]
    %v368 = vld [vmem:[#allocation2 + $0x254] sm:$0xff]
    %v369 = vld [vmem:[#allocation2 + $0x25c] sm:$0xff]
    %v370 = vld [vmem:[#allocation2 + $0x264] sm:$0xf]
    %v371 = vld [vmem:[#allocation2 + $0x268] sm:$0xff]
    %v372 = vld [vmem:[#allocation2 + $0x270] sm:$0xff]
    %v373 = vld [vmem:[#allocation2 + $0x278] sm:$0xff]
    %v374 = vld [vmem:[#allocation2 + $0x280] sm:$0xf]
    %v375 = vld [vmem:[#allocation2 + $0x284] sm:$0xff]
    %v376 = vld [vmem:[#allocation2 + $0x28c] sm:$0xff]
    %v377 = vld [vmem:[#allocation2 + $0x294] sm:$0xff]
    %v378 = vld [vmem:[#allocation2 + $0x29c] sm:$0xf]
    %v379 = vld [vmem:[#allocation2 + $0x2a0] sm:$0xff]
    %v380 = vld [vmem:[#allocation2 + $0x2a8] sm:$0xff]
    %v381 = vld [vmem:[#allocation2 + $0x2b0] sm:$0xff]
    %v382 = vld [vmem:[#allocation2 + $0x2b8] sm:$0xf]
    %v383 = vld [vmem:[#allocation2 + $0x2bc] sm:$0xff]
    %v384 = vld [vmem:[#allocation2 + $0x2c4] sm:$0xff]
    %v385 = vld [vmem:[#allocation2 + $0x2cc] sm:$0xff]
    %v386 = vld [vmem:[#allocation2 + $0x2d4] sm:$0xf]
    %v387 = vld [vmem:[#allocation2 + $0x2d8] sm:$0xff]
    %v388 = vld [vmem:[#allocation2 + $0x2e0] sm:$0xff]
    %v389 = vld [vmem:[#allocation2 + $0x2e8] sm:$0xff]
    %v390 = vld [vmem:[#allocation2 + $0x2f0] sm:$0xf]
    %v391 = vld [vmem:[#allocation2 + $0x2f4] sm:$0xff]
    %v392 = vld [vmem:[#allocation2 + $0x2fc] sm:$0xff]
    %v393 = vld [vmem:[#allocation2 + $0x304] sm:$0xff]
    %v394 = vld [vmem:[#allocation2 + $0x30c] sm:$0xf]
    %v395 = vld [vmem:[#allocation2 + $0x310] sm:$0xff]
    %v396 = vld [vmem:[#allocation2 + $0x318] sm:$0xff]
    %v397 = vld [vmem:[#allocation2 + $0x320] sm:$0xff]
    %v398 = vld [vmem:[#allocation2 + $0x328] sm:$0xf]
    %v399 = vld [vmem:[#allocation2 + $0x32c] sm:$0xff]
    %v400 = vld [vmem:[#allocation2 + $0x334] sm:$0xff]
    %v401 = vld [vmem:[#allocation2 + $0x33c] sm:$0xff]
    %v402 = vld [vmem:[#allocation2 + $0x344] sm:$0xf]
    %v403 = vld [vmem:[#allocation2 + $0x348] sm:$0xff]
    %v404 = vld [vmem:[#allocation2 + $0x350] sm:$0xff]
    %v405 = vld [vmem:[#allocation2 + $0x358] sm:$0xff]
    %v406 = vld [vmem:[#allocation2 + $0x360] sm:$0xf]
    %v407 = vld [vmem:[#allocation2 + $0x364] sm:$0xff]
    %v408 = vld [vmem:[#allocation2 + $0x36c] sm:$0xff]
    %v409 = vld [vmem:[#allocation2 + $0x374] sm:$0xff]
    %v410 = vld [vmem:[#allocation2 + $0x37c] sm:$0xf]
    %v411 = vld [vmem:[#allocation2 + $0x380] sm:$0xff]
    %v412 = vld [vmem:[#allocation2 + $0x388] sm:$0xff]
    %v413 = vld [vmem:[#allocation2 + $0x390] sm:$0xff]
    %v414 = vld [vmem:[#allocation2 + $0x398] sm:$0xf]
    %v415 = vld [vmem:[#allocation2 + $0x39c] sm:$0xff]
    %v416 = vld [vmem:[#allocation2 + $0x3a4] sm:$0xff]
    %v417 = vld [vmem:[#allocation2 + $0x3ac] sm:$0xff]
    %v418 = vld [vmem:[#allocation2 + $0x3b4] sm:$0xf]
    %v419 = vld [vmem:[#allocation2 + $0x3b8] sm:$0xff]
    %v420 = vld [vmem:[#allocation2 + $0x3c0] sm:$0xff]
    %v421 = vld [vmem:[#allocation2 + $0x3c8] sm:$0xff]
    %v422 = vld [vmem:[#allocation2 + $0x3d0] sm:$0xf]
    %v423 = vld [vmem:[#allocation2 + $0x3d4] sm:$0xff]
    %v424 = vld [vmem:[#allocation2 + $0x3dc] sm:$0xff]
    %v425 = vld [vmem:[#allocation2 + $0x3e4] sm:$0xff]
    %v426 = vld [vmem:[#allocation2 + $0x3ec] sm:$0xf]
    %v427 = vld [vmem:[#allocation2 + $0x3f0] sm:$0xff]
    %v428 = vld [vmem:[#allocation2 + $0x3f8] sm:$0xff]
    %v429 = vld [vmem:[#allocation2 + $0x400] sm:$0xff]
    %v430 = vld [vmem:[#allocation2 + $0x408] sm:$0xf]
    %v431 = vld [vmem:[#allocation2 + $0x40c] sm:$0xff]
    %v432 = vld [vmem:[#allocation2 + $0x414] sm:$0xff]
    %v433 = vld [vmem:[#allocation2 + $0x41c] sm:$0xff]
    %v434 = vld [vmem:[#allocation2 + $0x424] sm:$0xf]
    %v435 = vld [vmem:[#allocation2 + $0x428] sm:$0xff]
    %v436 = vld [vmem:[#allocation2 + $0x430] sm:$0xff]
    %v437 = vld [vmem:[#allocation2 + $0x438] sm:$0xff]
    %v438 = vld [vmem:[#allocation2 + $0x440] sm:$0xf]
    %v439 = vld [vmem:[#allocation2 + $0x444] sm:$0xff]
    %v440 = vld [vmem:[#allocation2 + $0x44c] sm:$0xff]
    %v441 = vld [vmem:[#allocation2 + $0x454] sm:$0xff]
    %v442 = vld [vmem:[#allocation2 + $0x45c] sm:$0xf]
    %v443 = vld [vmem:[#allocation2 + $0x460] sm:$0xff]
    %v444 = vld [vmem:[#allocation2 + $0x468] sm:$0xff]
    %v445 = vld [vmem:[#allocation2 + $0x470] sm:$0xff]
    %v446 = vld [vmem:[#allocation2 + $0x478] sm:$0xf]
    %v447 = vld [vmem:[#allocation2 + $0x47c] sm:$0xff]
    %v448 = vld [vmem:[#allocation2 + $0x484] sm:$0xff]
    %v449 = vld [vmem:[#allocation2 + $0x48c] sm:$0xff]
    %v450 = vld [vmem:[#allocation2 + $0x494] sm:$0xf]
    %v451 = vld [vmem:[#allocation2 + $0x498] sm:$0xff]
    %v452 = vld [vmem:[#allocation2 + $0x4a0] sm:$0xff]
    %v453 = vld [vmem:[#allocation2 + $0x4a8] sm:$0xff]
    %v454 = vld [vmem:[#allocation2 + $0x4b0] sm:$0xf]
    %v455 = vld [vmem:[#allocation2 + $0x4b4] sm:$0xff]
    %v456 = vld [vmem:[#allocation2 + $0x4bc] sm:$0xff]
    %v457 = vld [vmem:[#allocation2 + $0x4c4] sm:$0xff]
    %v458 = vld [vmem:[#allocation2 + $0x4cc] sm:$0xf]
    %v459 = vld [vmem:[#allocation2 + $0x4d0] sm:$0xff]
    %v460 = vld [vmem:[#allocation2 + $0x4d8] sm:$0xff]
    %v461 = vld [vmem:[#allocation2 + $0x4e0] sm:$0xff]
    %v462 = vld [vmem:[#allocation2 + $0x4e8] sm:$0xf]
    %v463 = vld [vmem:[#allocation2 + $0x4ec] sm:$0xff]
    %v464 = vld [vmem:[#allocation2 + $0x4f4] sm:$0xff]
    %v465 = vld [vmem:[#allocation2 + $0x4fc] sm:$0xff]
    %v466 = vld [vmem:[#allocation2 + $0x504] sm:$0xf]
    %v467 = vld [vmem:[#allocation2 + $0x508] sm:$0xff]
    %v468 = vld [vmem:[#allocation2 + $0x510] sm:$0xff]
    %v469 = vld [vmem:[#allocation2 + $0x518] sm:$0xff]
    %v470 = vld [vmem:[#allocation2 + $0x520] sm:$0xf]
    %v471 = vld [vmem:[#allocation2 + $0x524] sm:$0xff]
    %v472 = vld [vmem:[#allocation2 + $0x52c] sm:$0xff]
    %v473 = vld [vmem:[#allocation2 + $0x534] sm:$0xff]
    %v474 = vld [vmem:[#allocation2 + $0x53c] sm:$0xf]
    %v475 = vld [vmem:[#allocation2 + $0x540] sm:$0xff]
    %v476 = vld [vmem:[#allocation2 + $0x548] sm:$0xff]
    %v477 = vld [vmem:[#allocation2 + $0x550] sm:$0xff]
    %v478 = vld [vmem:[#allocation2 + $0x558] sm:$0xf]
    %v479 = vld [vmem:[#allocation2 + $0x55c] sm:$0xff]
    %v480 = vld [vmem:[#allocation2 + $0x564] sm:$0xff]
    %v481 = vld [vmem:[#allocation2 + $0x56c] sm:$0xff]
    %v482 = vld [vmem:[#allocation2 + $0x574] sm:$0xf]
    %v483 = vld [vmem:[#allocation2 + $0x578] sm:$0xff]
    %v484 = vld [vmem:[#allocation2 + $0x580] sm:$0xff]
    %v485 = vld [vmem:[#allocation2 + $0x588] sm:$0xff]
    %v486 = vld [vmem:[#allocation2 + $0x590] sm:$0xf]
    %v487 = vld [vmem:[#allocation2 + $0x594] sm:$0xff]
    %v488 = vld [vmem:[#allocation2 + $0x59c] sm:$0xff]
    %v489 = vld [vmem:[#allocation2 + $0x5a4] sm:$0xff]
    %v490 = vld [vmem:[#allocation2 + $0x5ac] sm:$0xf]
    %v491 = vld [vmem:[#allocation2 + $0x5b0] sm:$0xff]
    %v492 = vld [vmem:[#allocation2 + $0x5b8] sm:$0xff]
    %v493 = vld [vmem:[#allocation2 + $0x5c0] sm:$0xff]
    %v494 = vld [vmem:[#allocation2 + $0x5c8] sm:$0xf]
    %v495 = vld [vmem:[#allocation2 + $0x5cc] sm:$0xff]
    %v496 = vld [vmem:[#allocation2 + $0x5d4] sm:$0xff]
    %v497 = vld [vmem:[#allocation2 + $0x5dc] sm:$0xff]
    %v498 = vld [vmem:[#allocation2 + $0x5e4] sm:$0xf]
    %v499 = vld [vmem:[#allocation2 + $0x5e8] sm:$0xff]
    %v500 = vld [vmem:[#allocation2 + $0x5f0] sm:$0xff]
    %v501 = vld [vmem:[#allocation2 + $0x5f8] sm:$0xff]
    %v502 = vld [vmem:[#allocation2 + $0x600] sm:$0xf]
    %v503 = vld [vmem:[#allocation2 + $0x604] sm:$0xff]
    %v504 = vld [vmem:[#allocation2 + $0x60c] sm:$0xff]
    %v505 = vld [vmem:[#allocation2 + $0x614] sm:$0xff]
    %v506 = vld [vmem:[#allocation2 + $0x61c] sm:$0xf]
    %v507 = vld [vmem:[#allocation2 + $0x620] sm:$0xff]
    %v508 = vld [vmem:[#allocation2 + $0x628] sm:$0xff]
    %v509 = vld [vmem:[#allocation2 + $0x630] sm:$0xff]
    %v510 = vld [vmem:[#allocation2 + $0x638] sm:$0xf]
    %v511 = vld [vmem:[#allocation2 + $0x63c] sm:$0xff]
    %v512 = vld [vmem:[#allocation2 + $0x644] sm:$0xff]
    %v513 = vld [vmem:[#allocation2 + $0x64c] sm:$0xff]
    %v514 = vld [vmem:[#allocation2 + $0x654] sm:$0xf]
    %v515 = vld [vmem:[#allocation2 + $0x658] sm:$0xff]
    %v516 = vld [vmem:[#allocation2 + $0x660] sm:$0xff]
    %v517 = vld [vmem:[#allocation2 + $0x668] sm:$0xff]
    %v518 = vld [vmem:[#allocation2 + $0x670] sm:$0xf]
    %v519 = vld [vmem:[#allocation2 + $0x674] sm:$0xff]
    %v520 = vld [vmem:[#allocation2 + $0x67c] sm:$0xff]
    %v521 = vld [vmem:[#allocation2 + $0x684] sm:$0xff]
    %v522 = vld [vmem:[#allocation2 + $0x68c] sm:$0xf]
    %v523 = vld [vmem:[#allocation2 + $0x690] sm:$0xff]
    %v524 = vld [vmem:[#allocation2 + $0x698] sm:$0xff]
    %v525 = vld [vmem:[#allocation2 + $0x6a0] sm:$0xff]
    %v526 = vld [vmem:[#allocation2 + $0x6a8] sm:$0xf]
    %v527 = vld [vmem:[#allocation2 + $0x6ac] sm:$0xff]
    %v528 = vld [vmem:[#allocation2 + $0x6b4] sm:$0xff]
    %v529 = vld [vmem:[#allocation2 + $0x6bc] sm:$0xff]
    %v530 = vld [vmem:[#allocation2 + $0x6c4] sm:$0xf]
    %v531 = vld [vmem:[#allocation2 + $0x6c8] sm:$0xff]
    %v532 = vld [vmem:[#allocation2 + $0x6d0] sm:$0xff]
    %v533 = vld [vmem:[#allocation2 + $0x6d8] sm:$0xff]
    %v534 = vld [vmem:[#allocation2 + $0x6e0] sm:$0xf]
    %v535 = vld [vmem:[#allocation2 + $0x6e4] sm:$0xff]
    %v536 = vld [vmem:[#allocation2 + $0x6ec] sm:$0xff]
    %v537 = vld [vmem:[#allocation2 + $0x6f4] sm:$0xff]
    %v538 = vld [vmem:[#allocation2 + $0x6fc] sm:$0xf]
    %v539 = vld [vmem:[#allocation2 + $0x700] sm:$0xff]
    %v540 = vld [vmem:[#allocation2 + $0x708] sm:$0xff]
    %v541 = vld [vmem:[#allocation2 + $0x710] sm:$0xff]
    %v542 = vld [vmem:[#allocation2 + $0x718] sm:$0xf]
    %v543 = vld [vmem:[#allocation2 + $0x71c] sm:$0xff]
    %v544 = vld [vmem:[#allocation2 + $0x724] sm:$0xff]
    %v545 = vld [vmem:[#allocation2 + $0x72c] sm:$0xff]
    %v546 = vld [vmem:[#allocation2 + $0x734] sm:$0xf]
    %v547 = vld [vmem:[#allocation2 + $0x738] sm:$0xff]
    %v548 = vld [vmem:[#allocation2 + $0x740] sm:$0xff]
    %v549 = vld [vmem:[#allocation2 + $0x748] sm:$0xff]
    %v550 = vld [vmem:[#allocation2 + $0x750] sm:$0xf]
    %v551 = vld [vmem:[#allocation2 + $0x754] sm:$0xff]
    %v552 = vld [vmem:[#allocation2 + $0x75c] sm:$0xff]
    %v553 = vld [vmem:[#allocation2 + $0x764] sm:$0xff]
    %v554 = vld [vmem:[#allocation2 + $0x76c] sm:$0xf]
    %v555 = vld [vmem:[#allocation2 + $0x770] sm:$0xff]
    %v556 = vld [vmem:[#allocation2 + $0x778] sm:$0xff]
    %v557 = vld [vmem:[#allocation2 + $0x780] sm:$0xff]
    %v558 = vld [vmem:[#allocation2 + $0x788] sm:$0xf]
    %v559 = vld [vmem:[#allocation2 + $0x78c] sm:$0xff]
    %v560 = vld [vmem:[#allocation2 + $0x794] sm:$0xff]
    %v561 = vld [vmem:[#allocation2 + $0x79c] sm:$0xff]
    %v562 = vld [vmem:[#allocation2 + $0x7a4] sm:$0xf]
    %v563 = vld [vmem:[#allocation2 + $0x7a8] sm:$0xff]
    %v564 = vld [vmem:[#allocation2 + $0x7b0] sm:$0xff]
    %v565 = vld [vmem:[#allocation2 + $0x7b8] sm:$0xff]
    %v566 = vld [vmem:[#allocation2 + $0x7c0] sm:$0xf]
    %v567 = vld [vmem:[#allocation2 + $0x7c4] sm:$0xff]
    %v568 = vld [vmem:[#allocation2 + $0x7cc] sm:$0xff]
    %v569 = vld [vmem:[#allocation2 + $0x7d4] sm:$0xff]
    %v570 = vld [vmem:[#allocation2 + $0x7dc] sm:$0xf]
    %v571 = vld [vmem:[#allocation2 + $0x7e0] sm:$0xff]
    %v572 = vld [vmem:[#allocation2 + $0x7e8] sm:$0xff]
    %v573 = vld [vmem:[#allocation2 + $0x7f0] sm:$0xff]
    %v574 = vld [vmem:[#allocation2 + $0x7f8] sm:$0xf]
    %v575 = vld [vmem:[#allocation2 + $0x7fc] sm:$0xff]
    %v576 = vld [vmem:[#allocation2 + $0x804] sm:$0xff]
    %v577 = vld [vmem:[#allocation2 + $0x80c] sm:$0xff]
    %v578 = vld [vmem:[#allocation2 + $0x814] sm:$0xf]
    %v579 = vld [vmem:[#allocation2 + $0x818] sm:$0xff]
    %v580 = vld [vmem:[#allocation2 + $0x820] sm:$0xff]
    %v581 = vld [vmem:[#allocation2 + $0x828] sm:$0xff]
    %v582 = vld [vmem:[#allocation2 + $0x830] sm:$0xf]
    %v583 = vld [vmem:[#allocation2 + $0x834] sm:$0xff]
    %v584 = vld [vmem:[#allocation2 + $0x83c] sm:$0xff]
    %v585 = vld [vmem:[#allocation2 + $0x844] sm:$0xff]
    %v586 = vld [vmem:[#allocation2 + $0x84c] sm:$0xf]
    %v587 = vld [vmem:[#allocation2 + $0x850] sm:$0xff]
    %v588 = vld [vmem:[#allocation2 + $0x858] sm:$0xff]
    %v589 = vld [vmem:[#allocation2 + $0x860] sm:$0xff]
    %v590 = vld [vmem:[#allocation2 + $0x868] sm:$0xf]
    %v591 = vld [vmem:[#allocation2 + $0x86c] sm:$0xff]
    %v592 = vld [vmem:[#allocation2 + $0x874] sm:$0xff]
    %v593 = vld [vmem:[#allocation2 + $0x87c] sm:$0xff]
    %v594 = vld [vmem:[#allocation2 + $0x884] sm:$0xf]
    %v595 = vld [vmem:[#allocation2 + $0x888] sm:$0xff]
    %v596 = vld [vmem:[#allocation2 + $0x890] sm:$0xff]
    %v597 = vld [vmem:[#allocation2 + $0x898] sm:$0xff]
    %v598 = vld [vmem:[#allocation2 + $0x8a0] sm:$0xf]
    %v599 = vld [vmem:[#allocation2 + $0x8a4] sm:$0xff]
    %v600 = vld [vmem:[#allocation2 + $0x8ac] sm:$0xff]
    %v601 = vld [vmem:[#allocation2 + $0x8b4] sm:$0xff]
    %v602 = vld [vmem:[#allocation2 + $0x8bc] sm:$0xf]
    %v603 = vld [vmem:[#allocation2 + $0x8c0] sm:$0xff]
    %v604 = vld [vmem:[#allocation2 + $0x8c8] sm:$0xff]
    %v605 = vld [vmem:[#allocation2 + $0x8d0] sm:$0xff]
    %v606 = vld [vmem:[#allocation2 + $0x8d8] sm:$0xf]
    %v607 = vld [vmem:[#allocation2 + $0x8dc] sm:$0xff]
    %v608 = vld [vmem:[#allocation2 + $0x8e4] sm:$0xff]
    %v609 = vld [vmem:[#allocation2 + $0x8ec] sm:$0xff]
    %v610 = vld [vmem:[#allocation2 + $0x8f4] sm:$0xf]
    %v611 = vld [vmem:[#allocation2 + $0x8f8] sm:$0xff]
    %v612 = vld [vmem:[#allocation2 + $0x900] sm:$0xff]
    %v613 = vld [vmem:[#allocation2 + $0x908] sm:$0xff]
    %v614 = vld [vmem:[#allocation2 + $0x910] sm:$0xf]
    %v615 = vld [vmem:[#allocation2 + $0x914] sm:$0xff]
    %v616 = vld [vmem:[#allocation2 + $0x91c] sm:$0xff]
    %v617 = vld [vmem:[#allocation2 + $0x924] sm:$0xff]
    %v618 = vld [vmem:[#allocation2 + $0x92c] sm:$0xf]
    %v619 = vld [vmem:[#allocation2 + $0x930] sm:$0xff]
    %v620 = vld [vmem:[#allocation2 + $0x938] sm:$0xff]
    %v621 = vld [vmem:[#allocation2 + $0x940] sm:$0xff]
    %v622 = vld [vmem:[#allocation2 + $0x948] sm:$0xf]
    %v623 = vld [vmem:[#allocation2 + $0x94c] sm:$0xff]
    %v624 = vld [vmem:[#allocation2 + $0x954] sm:$0xff]
    %v625 = vld [vmem:[#allocation2 + $0x95c] sm:$0xff]
    %v626 = vld [vmem:[#allocation2 + $0x964] sm:$0xf]
    %v627 = vld [vmem:[#allocation2 + $0x968] sm:$0xff]
    %v628 = vld [vmem:[#allocation2 + $0x970] sm:$0xff]
    %v629 = vld [vmem:[#allocation2 + $0x978] sm:$0xff]
    %v630 = vld [vmem:[#allocation2 + $0x980] sm:$0xf]
    %v631 = vld [vmem:[#allocation2 + $0x984] sm:$0xff]
    %v632 = vld [vmem:[#allocation2 + $0x98c] sm:$0xff]
    %v633 = vld [vmem:[#allocation2 + $0x994] sm:$0xff]
    %v634 = vld [vmem:[#allocation2 + $0x99c] sm:$0xf]
    %v635 = vld [vmem:[#allocation2 + $0x9a0] sm:$0xff]
    %v636 = vld [vmem:[#allocation2 + $0x9a8] sm:$0xff]
    %v637 = vld [vmem:[#allocation2 + $0x9b0] sm:$0xff]
    %v638 = vld [vmem:[#allocation2 + $0x9b8] sm:$0xf]
    %v639 = vld [vmem:[#allocation2 + $0x9bc] sm:$0xff]
    %v640 = vld [vmem:[#allocation2 + $0x9c4] sm:$0xff]
    %v641 = vld [vmem:[#allocation2 + $0x9cc] sm:$0xff]
    %v642 = vld [vmem:[#allocation2 + $0x9d4] sm:$0xf]
    %v643 = vld [vmem:[#allocation2 + $0x9d8] sm:$0xff]
    %v644 = vld [vmem:[#allocation2 + $0x9e0] sm:$0xff]
    %v645 = vld [vmem:[#allocation2 + $0x9e8] sm:$0xff]
    %v646 = vld [vmem:[#allocation2 + $0x9f0] sm:$0xf]
    %v647 = vld [vmem:[#allocation2 + $0x9f4] sm:$0xff]
    %v648 = vld [vmem:[#allocation2 + $0x9fc] sm:$0xff]
    %v649 = vld [vmem:[#allocation2 + $0xa04] sm:$0xff]
    %v650 = vld [vmem:[#allocation2 + $0xa0c] sm:$0xf]
    %v651 = vld [vmem:[#allocation2 + $0xa10] sm:$0xff]
    %v652 = vld [vmem:[#allocation2 + $0xa18] sm:$0xff]
    %v653 = vld [vmem:[#allocation2 + $0xa20] sm:$0xff]
    %v654 = vld [vmem:[#allocation2 + $0xa28] sm:$0xf]
    %v655 = vld [vmem:[#allocation2 + $0xa2c] sm:$0xff]
    %v656 = vld [vmem:[#allocation2 + $0xa34] sm:$0xff]
    %v657 = vld [vmem:[#allocation2 + $0xa3c] sm:$0xff]
    %v658 = vld [vmem:[#allocation2 + $0xa44] sm:$0xf]
    %v659 = vld [vmem:[#allocation2 + $0xa48] sm:$0xff]
    %v660 = vld [vmem:[#allocation2 + $0xa50] sm:$0xff]
    %v661 = vld [vmem:[#allocation2 + $0xa58] sm:$0xff]
    %v662 = vld [vmem:[#allocation2 + $0xa60] sm:$0xf]
    %v663 = vld [vmem:[#allocation2 + $0xa64] sm:$0xff]
    %v664 = vld [vmem:[#allocation2 + $0xa6c] sm:$0xff]
    %v665 = vld [vmem:[#allocation2 + $0xa74] sm:$0xff]
    %v666 = vld [vmem:[#allocation2 + $0xa7c] sm:$0xf]
    %v667 = vld [vmem:[#allocation2 + $0xa80] sm:$0xff]
    %v668 = vld [vmem:[#allocation2 + $0xa88] sm:$0xff]
    %v669 = vld [vmem:[#allocation2 + $0xa90] sm:$0xff]
    %v670 = vld [vmem:[#allocation2 + $0xa98] sm:$0xf]
    %v671 = vld [vmem:[#allocation2 + $0xa9c] sm:$0xff]
    %v672 = vld [vmem:[#allocation2 + $0xaa4] sm:$0xff]
    %v673 = vld [vmem:[#allocation2 + $0xaac] sm:$0xff]
    %v674 = vld [vmem:[#allocation2 + $0xab4] sm:$0xf]
    %v675 = vld [vmem:[#allocation2 + $0xab8] sm:$0xff]
    %v676 = vld [vmem:[#allocation2 + $0xac0] sm:$0xff]
    %v677 = vld [vmem:[#allocation2 + $0xac8] sm:$0xff]
    %v678 = vld [vmem:[#allocation2 + $0xad0] sm:$0xf]
    %v679 = vld [vmem:[#allocation2 + $0xad4] sm:$0xff]
    %v680 = vld [vmem:[#allocation2 + $0xadc] sm:$0xff]
    %v681 = vld [vmem:[#allocation2 + $0xae4] sm:$0xff]
    %v682 = vld [vmem:[#allocation2 + $0xaec] sm:$0xf]
    %v683 = vld [vmem:[#allocation2 + $0xaf0] sm:$0xff]
    %v684 = vld [vmem:[#allocation2 + $0xaf8] sm:$0xff]
    %v685 = vld [vmem:[#allocation2 + $0xb00] sm:$0xff]
    %v686 = vld [vmem:[#allocation2 + $0xb08] sm:$0xf]
    %v687 = vld [vmem:[#allocation2 + $0xb0c] sm:$0xff]
    %v688 = vld [vmem:[#allocation2 + $0xb14] sm:$0xff]
    %v689 = vld [vmem:[#allocation2 + $0xb1c] sm:$0xff]
    %v690 = vld [vmem:[#allocation2 + $0xb24] sm:$0xf]
    %v691 = vld [vmem:[#allocation2 + $0xb28] sm:$0xff]
    %v692 = vld [vmem:[#allocation2 + $0xb30] sm:$0xff]
    %v693 = vld [vmem:[#allocation2 + $0xb38] sm:$0xff]
    %v694 = vld [vmem:[#allocation2 + $0xb40] sm:$0xf]
    %v695 = vld [vmem:[#allocation2 + $0xb44] sm:$0xff]
    %v696 = vld [vmem:[#allocation2 + $0xb4c] sm:$0xff]
    %v697 = vld [vmem:[#allocation2 + $0xb54] sm:$0xff]
    %v698 = vld [vmem:[#allocation2 + $0xb5c] sm:$0xf]
    %v699 = vld [vmem:[#allocation2 + $0xb60] sm:$0xff]
    %v700 = vld [vmem:[#allocation2 + $0xb68] sm:$0xff]
    %v701 = vld [vmem:[#allocation2 + $0xb70] sm:$0xff]
    %v702 = vld [vmem:[#allocation2 + $0xb78] sm:$0xf]
    %v703 = vld [vmem:[#allocation2 + $0xb7c] sm:$0xff]
    %v704 = vld [vmem:[#allocation2 + $0xb84] sm:$0xff]
    %v705 = vld [vmem:[#allocation2 + $0xb8c] sm:$0xff]
    %v706 = vld [vmem:[#allocation2 + $0xb94] sm:$0xf]
    %v707 = vld [vmem:[#allocation2 + $0xb98] sm:$0xff]
    %v708 = vld [vmem:[#allocation2 + $0xba0] sm:$0xff]
    %v709 = vld [vmem:[#allocation2 + $0xba8] sm:$0xff]
    %v710 = vld [vmem:[#allocation2 + $0xbb0] sm:$0xf]
    %v711 = vld [vmem:[#allocation2 + $0xbb4] sm:$0xff]
    %v712 = vld [vmem:[#allocation2 + $0xbbc] sm:$0xff]
    %v713 = vld [vmem:[#allocation2 + $0xbc4] sm:$0xff]
    %v714 = vld [vmem:[#allocation2 + $0xbcc] sm:$0xf]
    %v715 = vld [vmem:[#allocation2 + $0xbd0] sm:$0xff]
    %v716 = vld [vmem:[#allocation2 + $0xbd8] sm:$0xff]
    %v717 = vld [vmem:[#allocation2 + $0xbe0] sm:$0xff]
    %v718 = vld [vmem:[#allocation2 + $0xbe8] sm:$0xf]
    %v719 = vld [vmem:[#allocation2 + $0xbec] sm:$0xff]
    %v720 = vld [vmem:[#allocation2 + $0xbf4] sm:$0xff]
    %v721 = vld [vmem:[#allocation2 + $0xbfc] sm:$0xff]
    %v722 = vld [vmem:[#allocation2 + $0xc04] sm:$0xf]
    %v723 = vld [vmem:[#allocation2 + $0xc08] sm:$0xff]
    %v724 = vld [vmem:[#allocation2 + $0xc10] sm:$0xff]
    %v725 = vld [vmem:[#allocation2 + $0xc18] sm:$0xff]
    %v726 = vld [vmem:[#allocation2 + $0xc20] sm:$0xf]
    %v727 = vld [vmem:[#allocation2 + $0xc24] sm:$0xff]
    %v728 = vld [vmem:[#allocation2 + $0xc2c] sm:$0xff]
    %v729 = vld [vmem:[#allocation2 + $0xc34] sm:$0xff]
    %v730 = vld [vmem:[#allocation2 + $0xc3c] sm:$0xf]
    %v731 = vld [vmem:[#allocation2 + $0xc40] sm:$0xff]
    %v732 = vld [vmem:[#allocation2 + $0xc48] sm:$0xff]
    %v733 = vld [vmem:[#allocation2 + $0xc50] sm:$0xff]
    %v734 = vld [vmem:[#allocation2 + $0xc58] sm:$0xf]
    %v735 = vld [vmem:[#allocation2 + $0xc5c] sm:$0xff]
    %v736 = vld [vmem:[#allocation2 + $0xc64] sm:$0xff]
    %v737 = vld [vmem:[#allocation2 + $0xc6c] sm:$0xff]
    %v738 = vld [vmem:[#allocation2 + $0xc74] sm:$0xf]
    %v739 = vld [vmem:[#allocation2 + $0xc78] sm:$0xff]
    %v740 = vld [vmem:[#allocation2 + $0xc80] sm:$0xff]
    %v741 = vld [vmem:[#allocation2 + $0xc88] sm:$0xff]
    %v742 = vld [vmem:[#allocation2 + $0xc90] sm:$0xf]
    %v743 = vld [vmem:[#allocation2 + $0xc94] sm:$0xff]
    %v744 = vld [vmem:[#allocation2 + $0xc9c] sm:$0xff]
    %v745 = vld [vmem:[#allocation2 + $0xca4] sm:$0xff]
    %v746 = vld [vmem:[#allocation2 + $0xcac] sm:$0xf]
    %v1195 = vunpack.c.l.b16 %v299
    %v1196 = vunpack.c.h.b16 %v299
    %v1197 = vunpack.c.l.b16 %v300
    %v1198 = vunpack.c.h.b16 %v300
    %v1199 = vunpack.c.l.b16 %v301
    %v1200 = vunpack.c.h.b16 %v301
    %v1201 = vunpack.c.l.b16 %v302
    %v1202 = vunpack.c.l.b16 %v303
    %v1203 = vunpack.c.h.b16 %v303
    %v1204 = vunpack.c.l.b16 %v304
    %v1205 = vunpack.c.h.b16 %v304
    %v1206 = vunpack.c.l.b16 %v305
    %v1207 = vunpack.c.h.b16 %v305
    %v1208 = vunpack.c.l.b16 %v306
    %v1209 = vunpack.c.l.b16 %v307
    %v1210 = vunpack.c.h.b16 %v307
    %v1211 = vunpack.c.l.b16 %v308
    %v1212 = vunpack.c.h.b16 %v308
    %v1213 = vunpack.c.l.b16 %v309
    %v1214 = vunpack.c.h.b16 %v309
    %v1215 = vunpack.c.l.b16 %v310
    %v1216 = vunpack.c.l.b16 %v311
    %v1217 = vunpack.c.h.b16 %v311
    %v1218 = vunpack.c.l.b16 %v312
    %v1219 = vunpack.c.h.b16 %v312
    %v1220 = vunpack.c.l.b16 %v313
    %v1221 = vunpack.c.h.b16 %v313
    %v1222 = vunpack.c.l.b16 %v314
    %v1223 = vunpack.c.l.b16 %v315
    %v1224 = vunpack.c.h.b16 %v315
    %v1225 = vunpack.c.l.b16 %v316
    %v1226 = vunpack.c.h.b16 %v316
    %v1227 = vunpack.c.l.b16 %v317
    %v1228 = vunpack.c.h.b16 %v317
    %v1229 = vunpack.c.l.b16 %v318
    %v1230 = vunpack.c.l.b16 %v319
    %v1231 = vunpack.c.h.b16 %v319
    %v1232 = vunpack.c.l.b16 %v320
    %v1233 = vunpack.c.h.b16 %v320
    %v1234 = vunpack.c.l.b16 %v321
    %v1235 = vunpack.c.h.b16 %v321
    %v1236 = vunpack.c.l.b16 %v322
    %v1237 = vunpack.c.l.b16 %v323
    %v1238 = vunpack.c.h.b16 %v323
    %v1239 = vunpack.c.l.b16 %v324
    %v1240 = vunpack.c.h.b16 %v324
    %v1241 = vunpack.c.l.b16 %v325
    %v1242 = vunpack.c.h.b16 %v325
    %v1243 = vunpack.c.l.b16 %v326
    %v1244 = vunpack.c.l.b16 %v327
    %v1245 = vunpack.c.h.b16 %v327
    %v1246 = vunpack.c.l.b16 %v328
    %v1247 = vunpack.c.h.b16 %v328
    %v1248 = vunpack.c.l.b16 %v329
    %v1249 = vunpack.c.h.b16 %v329
    %v1250 = vunpack.c.l.b16 %v330
    %v1251 = vunpack.c.l.b16 %v331
    %v1252 = vunpack.c.h.b16 %v331
    %v1253 = vunpack.c.l.b16 %v332
    %v1254 = vunpack.c.h.b16 %v332
    %v1255 = vunpack.c.l.b16 %v333
    %v1256 = vunpack.c.h.b16 %v333
    %v1257 = vunpack.c.l.b16 %v334
    %v1258 = vunpack.c.l.b16 %v335
    %v1259 = vunpack.c.h.b16 %v335
    %v1260 = vunpack.c.l.b16 %v336
    %v1261 = vunpack.c.h.b16 %v336
    %v1262 = vunpack.c.l.b16 %v337
    %v1263 = vunpack.c.h.b16 %v337
    %v1264 = vunpack.c.l.b16 %v338
    %v1265 = vunpack.c.l.b16 %v339
    %v1266 = vunpack.c.h.b16 %v339
    %v1267 = vunpack.c.l.b16 %v340
    %v1268 = vunpack.c.h.b16 %v340
    %v1269 = vunpack.c.l.b16 %v341
    %v1270 = vunpack.c.h.b16 %v341
    %v1271 = vunpack.c.l.b16 %v342
    %v1272 = vunpack.c.l.b16 %v343
    %v1273 = vunpack.c.h.b16 %v343
    %v1274 = vunpack.c.l.b16 %v344
    %v1275 = vunpack.c.h.b16 %v344
    %v1276 = vunpack.c.l.b16 %v345
    %v1277 = vunpack.c.h.b16 %v345
    %v1278 = vunpack.c.l.b16 %v346
    %v1279 = vunpack.c.l.b16 %v347
    %v1280 = vunpack.c.h.b16 %v347
    %v1281 = vunpack.c.l.b16 %v348
    %v1282 = vunpack.c.h.b16 %v348
    %v1283 = vunpack.c.l.b16 %v349
    %v1284 = vunpack.c.h.b16 %v349
    %v1285 = vunpack.c.l.b16 %v350
    %v1286 = vunpack.c.l.b16 %v351
    %v1287 = vunpack.c.h.b16 %v351
    %v1288 = vunpack.c.l.b16 %v352
    %v1289 = vunpack.c.h.b16 %v352
    %v1290 = vunpack.c.l.b16 %v353
    %v1291 = vunpack.c.h.b16 %v353
    %v1292 = vunpack.c.l.b16 %v354
    %v1293 = vunpack.c.l.b16 %v355
    %v1294 = vunpack.c.h.b16 %v355
    %v1295 = vunpack.c.l.b16 %v356
    %v1296 = vunpack.c.h.b16 %v356
    %v1297 = vunpack.c.l.b16 %v357
    %v1298 = vunpack.c.h.b16 %v357
    %v1299 = vunpack.c.l.b16 %v358
    %v1300 = vunpack.c.l.b16 %v359
    %v1301 = vunpack.c.h.b16 %v359
    %v1302 = vunpack.c.l.b16 %v360
    %v1303 = vunpack.c.h.b16 %v360
    %v1304 = vunpack.c.l.b16 %v361
    %v1305 = vunpack.c.h.b16 %v361
    %v1306 = vunpack.c.l.b16 %v362
    %v1307 = vunpack.c.l.b16 %v363
    %v1308 = vunpack.c.h.b16 %v363
    %v1309 = vunpack.c.l.b16 %v364
    %v1310 = vunpack.c.h.b16 %v364
    %v1311 = vunpack.c.l.b16 %v365
    %v1312 = vunpack.c.h.b16 %v365
    %v1313 = vunpack.c.l.b16 %v366
    %v1314 = vunpack.c.l.b16 %v367
    %v1315 = vunpack.c.h.b16 %v367
    %v1316 = vunpack.c.l.b16 %v368
    %v1317 = vunpack.c.h.b16 %v368
    %v1318 = vunpack.c.l.b16 %v369
    %v1319 = vunpack.c.h.b16 %v369
    %v1320 = vunpack.c.l.b16 %v370
    %v1321 = vunpack.c.l.b16 %v371
    %v1322 = vunpack.c.h.b16 %v371
    %v1323 = vunpack.c.l.b16 %v372
    %v1324 = vunpack.c.h.b16 %v372
    %v1325 = vunpack.c.l.b16 %v373
    %v1326 = vunpack.c.h.b16 %v373
    %v1327 = vunpack.c.l.b16 %v374
    %v1328 = vunpack.c.l.b16 %v375
    %v1329 = vunpack.c.h.b16 %v375
    %v1330 = vunpack.c.l.b16 %v376
    %v1331 = vunpack.c.h.b16 %v376
    %v1332 = vunpack.c.l.b16 %v377
    %v1333 = vunpack.c.h.b16 %v377
    %v1334 = vunpack.c.l.b16 %v378
    %v1335 = vunpack.c.l.b16 %v379
    %v1336 = vunpack.c.h.b16 %v379
    %v1337 = vunpack.c.l.b16 %v380
    %v1338 = vunpack.c.h.b16 %v380
    %v1339 = vunpack.c.l.b16 %v381
    %v1340 = vunpack.c.h.b16 %v381
    %v1341 = vunpack.c.l.b16 %v382
    %v1342 = vunpack.c.l.b16 %v383
    %v1343 = vunpack.c.h.b16 %v383
    %v1344 = vunpack.c.l.b16 %v384
    %v1345 = vunpack.c.h.b16 %v384
    %v1346 = vunpack.c.l.b16 %v385
    %v1347 = vunpack.c.h.b16 %v385
    %v1348 = vunpack.c.l.b16 %v386
    %v1349 = vunpack.c.l.b16 %v387
    %v1350 = vunpack.c.h.b16 %v387
    %v1351 = vunpack.c.l.b16 %v388
    %v1352 = vunpack.c.h.b16 %v388
    %v1353 = vunpack.c.l.b16 %v389
    %v1354 = vunpack.c.h.b16 %v389
    %v1355 = vunpack.c.l.b16 %v390
    %v1356 = vunpack.c.l.b16 %v391
    %v1357 = vunpack.c.h.b16 %v391
    %v1358 = vunpack.c.l.b16 %v392
    %v1359 = vunpack.c.h.b16 %v392
    %v1360 = vunpack.c.l.b16 %v393
    %v1361 = vunpack.c.h.b16 %v393
    %v1362 = vunpack.c.l.b16 %v394
    %v1363 = vunpack.c.l.b16 %v395
    %v1364 = vunpack.c.h.b16 %v395
    %v1365 = vunpack.c.l.b16 %v396
    %v1366 = vunpack.c.h.b16 %v396
    %v1367 = vunpack.c.l.b16 %v397
    %v1368 = vunpack.c.h.b16 %v397
    %v1369 = vunpack.c.l.b16 %v398
    %v1370 = vunpack.c.l.b16 %v399
    %v1371 = vunpack.c.h.b16 %v399
    %v1372 = vunpack.c.l.b16 %v400
    %v1373 = vunpack.c.h.b16 %v400
    %v1374 = vunpack.c.l.b16 %v401
    %v1375 = vunpack.c.h.b16 %v401
    %v1376 = vunpack.c.l.b16 %v402
    %v1377 = vunpack.c.l.b16 %v403
    %v1378 = vunpack.c.h.b16 %v403
    %v1379 = vunpack.c.l.b16 %v404
    %v1380 = vunpack.c.h.b16 %v404
    %v1381 = vunpack.c.l.b16 %v405
    %v1382 = vunpack.c.h.b16 %v405
    %v1383 = vunpack.c.l.b16 %v406
    %v1384 = vunpack.c.l.b16 %v407
    %v1385 = vunpack.c.h.b16 %v407
    %v1386 = vunpack.c.l.b16 %v408
    %v1387 = vunpack.c.h.b16 %v408
    %v1388 = vunpack.c.l.b16 %v409
    %v1389 = vunpack.c.h.b16 %v409
    %v1390 = vunpack.c.l.b16 %v410
    %v1391 = vunpack.c.l.b16 %v411
    %v1392 = vunpack.c.h.b16 %v411
    %v1393 = vunpack.c.l.b16 %v412
    %v1394 = vunpack.c.h.b16 %v412
    %v1395 = vunpack.c.l.b16 %v413
    %v1396 = vunpack.c.h.b16 %v413
    %v1397 = vunpack.c.l.b16 %v414
    %v1398 = vunpack.c.l.b16 %v415
    %v1399 = vunpack.c.h.b16 %v415
    %v1400 = vunpack.c.l.b16 %v416
    %v1401 = vunpack.c.h.b16 %v416
    %v1402 = vunpack.c.l.b16 %v417
    %v1403 = vunpack.c.h.b16 %v417
    %v1404 = vunpack.c.l.b16 %v418
    %v1405 = vunpack.c.l.b16 %v419
    %v1406 = vunpack.c.h.b16 %v419
    %v1407 = vunpack.c.l.b16 %v420
    %v1408 = vunpack.c.h.b16 %v420
    %v1409 = vunpack.c.l.b16 %v421
    %v1410 = vunpack.c.h.b16 %v421
    %v1411 = vunpack.c.l.b16 %v422
    %v1412 = vunpack.c.l.b16 %v423
    %v1413 = vunpack.c.h.b16 %v423
    %v1414 = vunpack.c.l.b16 %v424
    %v1415 = vunpack.c.h.b16 %v424
    %v1416 = vunpack.c.l.b16 %v425
    %v1417 = vunpack.c.h.b16 %v425
    %v1418 = vunpack.c.l.b16 %v426
    %v1419 = vunpack.c.l.b16 %v427
    %v1420 = vunpack.c.h.b16 %v427
    %v1421 = vunpack.c.l.b16 %v428
    %v1422 = vunpack.c.h.b16 %v428
    %v1423 = vunpack.c.l.b16 %v429
    %v1424 = vunpack.c.h.b16 %v429
    %v1425 = vunpack.c.l.b16 %v430
    %v1426 = vunpack.c.l.b16 %v431
    %v1427 = vunpack.c.h.b16 %v431
    %v1428 = vunpack.c.l.b16 %v432
    %v1429 = vunpack.c.h.b16 %v432
    %v1430 = vunpack.c.l.b16 %v433
    %v1431 = vunpack.c.h.b16 %v433
    %v1432 = vunpack.c.l.b16 %v434
    %v1433 = vunpack.c.l.b16 %v435
    %v1434 = vunpack.c.h.b16 %v435
    %v1435 = vunpack.c.l.b16 %v436
    %v1436 = vunpack.c.h.b16 %v436
    %v1437 = vunpack.c.l.b16 %v437
    %v1438 = vunpack.c.h.b16 %v437
    %v1439 = vunpack.c.l.b16 %v438
    %v1440 = vunpack.c.l.b16 %v439
    %v1441 = vunpack.c.h.b16 %v439
    %v1442 = vunpack.c.l.b16 %v440
    %v1443 = vunpack.c.h.b16 %v440
    %v1444 = vunpack.c.l.b16 %v441
    %v1445 = vunpack.c.h.b16 %v441
    %v1446 = vunpack.c.l.b16 %v442
    %v1447 = vunpack.c.l.b16 %v443
    %v1448 = vunpack.c.h.b16 %v443
    %v1449 = vunpack.c.l.b16 %v444
    %v1450 = vunpack.c.h.b16 %v444
    %v1451 = vunpack.c.l.b16 %v445
    %v1452 = vunpack.c.h.b16 %v445
    %v1453 = vunpack.c.l.b16 %v446
    %v1454 = vunpack.c.l.b16 %v447
    %v1455 = vunpack.c.h.b16 %v447
    %v1456 = vunpack.c.l.b16 %v448
    %v1457 = vunpack.c.h.b16 %v448
    %v1458 = vunpack.c.l.b16 %v449
    %v1459 = vunpack.c.h.b16 %v449
    %v1460 = vunpack.c.l.b16 %v450
    %v1461 = vunpack.c.l.b16 %v451
    %v1462 = vunpack.c.h.b16 %v451
    %v1463 = vunpack.c.l.b16 %v452
    %v1464 = vunpack.c.h.b16 %v452
    %v1465 = vunpack.c.l.b16 %v453
    %v1466 = vunpack.c.h.b16 %v453
    %v1467 = vunpack.c.l.b16 %v454
    %v1468 = vunpack.c.l.b16 %v455
    %v1469 = vunpack.c.h.b16 %v455
    %v1470 = vunpack.c.l.b16 %v456
    %v1471 = vunpack.c.h.b16 %v456
    %v1472 = vunpack.c.l.b16 %v457
    %v1473 = vunpack.c.h.b16 %v457
    %v1474 = vunpack.c.l.b16 %v458
    %v1475 = vunpack.c.l.b16 %v459
    %v1476 = vunpack.c.h.b16 %v459
    %v1477 = vunpack.c.l.b16 %v460
    %v1478 = vunpack.c.h.b16 %v460
    %v1479 = vunpack.c.l.b16 %v461
    %v1480 = vunpack.c.h.b16 %v461
    %v1481 = vunpack.c.l.b16 %v462
    %v1482 = vunpack.c.l.b16 %v463
    %v1483 = vunpack.c.h.b16 %v463
    %v1484 = vunpack.c.l.b16 %v464
    %v1485 = vunpack.c.h.b16 %v464
    %v1486 = vunpack.c.l.b16 %v465
    %v1487 = vunpack.c.h.b16 %v465
    %v1488 = vunpack.c.l.b16 %v466
    %v1489 = vunpack.c.l.b16 %v467
    %v1490 = vunpack.c.h.b16 %v467
    %v1491 = vunpack.c.l.b16 %v468
    %v1492 = vunpack.c.h.b16 %v468
    %v1493 = vunpack.c.l.b16 %v469
    %v1494 = vunpack.c.h.b16 %v469
    %v1495 = vunpack.c.l.b16 %v470
    %v1496 = vunpack.c.l.b16 %v471
    %v1497 = vunpack.c.h.b16 %v471
    %v1498 = vunpack.c.l.b16 %v472
    %v1499 = vunpack.c.h.b16 %v472
    %v1500 = vunpack.c.l.b16 %v473
    %v1501 = vunpack.c.h.b16 %v473
    %v1502 = vunpack.c.l.b16 %v474
    %v1503 = vunpack.c.l.b16 %v475
    %v1504 = vunpack.c.h.b16 %v475
    %v1505 = vunpack.c.l.b16 %v476
    %v1506 = vunpack.c.h.b16 %v476
    %v1507 = vunpack.c.l.b16 %v477
    %v1508 = vunpack.c.h.b16 %v477
    %v1509 = vunpack.c.l.b16 %v478
    %v1510 = vunpack.c.l.b16 %v479
    %v1511 = vunpack.c.h.b16 %v479
    %v1512 = vunpack.c.l.b16 %v480
    %v1513 = vunpack.c.h.b16 %v480
    %v1514 = vunpack.c.l.b16 %v481
    %v1515 = vunpack.c.h.b16 %v481
    %v1516 = vunpack.c.l.b16 %v482
    %v1517 = vunpack.c.l.b16 %v483
    %v1518 = vunpack.c.h.b16 %v483
    %v1519 = vunpack.c.l.b16 %v484
    %v1520 = vunpack.c.h.b16 %v484
    %v1521 = vunpack.c.l.b16 %v485
    %v1522 = vunpack.c.h.b16 %v485
    %v1523 = vunpack.c.l.b16 %v486
    %v1524 = vunpack.c.l.b16 %v487
    %v1525 = vunpack.c.h.b16 %v487
    %v1526 = vunpack.c.l.b16 %v488
    %v1527 = vunpack.c.h.b16 %v488
    %v1528 = vunpack.c.l.b16 %v489
    %v1529 = vunpack.c.h.b16 %v489
    %v1530 = vunpack.c.l.b16 %v490
    %v1531 = vunpack.c.l.b16 %v491
    %v1532 = vunpack.c.h.b16 %v491
    %v1533 = vunpack.c.l.b16 %v492
    %v1534 = vunpack.c.h.b16 %v492
    %v1535 = vunpack.c.l.b16 %v493
    %v1536 = vunpack.c.h.b16 %v493
    %v1537 = vunpack.c.l.b16 %v494
    %v1538 = vunpack.c.l.b16 %v495
    %v1539 = vunpack.c.h.b16 %v495
    %v1540 = vunpack.c.l.b16 %v496
    %v1541 = vunpack.c.h.b16 %v496
    %v1542 = vunpack.c.l.b16 %v497
    %v1543 = vunpack.c.h.b16 %v497
    %v1544 = vunpack.c.l.b16 %v498
    %v1545 = vunpack.c.l.b16 %v499
    %v1546 = vunpack.c.h.b16 %v499
    %v1547 = vunpack.c.l.b16 %v500
    %v1548 = vunpack.c.h.b16 %v500
    %v1549 = vunpack.c.l.b16 %v501
    %v1550 = vunpack.c.h.b16 %v501
    %v1551 = vunpack.c.l.b16 %v502
    %v1552 = vunpack.c.l.b16 %v503
    %v1553 = vunpack.c.h.b16 %v503
    %v1554 = vunpack.c.l.b16 %v504
    %v1555 = vunpack.c.h.b16 %v504
    %v1556 = vunpack.c.l.b16 %v505
    %v1557 = vunpack.c.h.b16 %v505
    %v1558 = vunpack.c.l.b16 %v506
    %v1559 = vunpack.c.l.b16 %v507
    %v1560 = vunpack.c.h.b16 %v507
    %v1561 = vunpack.c.l.b16 %v508
    %v1562 = vunpack.c.h.b16 %v508
    %v1563 = vunpack.c.l.b16 %v509
    %v1564 = vunpack.c.h.b16 %v509
    %v1565 = vunpack.c.l.b16 %v510
    %v1566 = vunpack.c.l.b16 %v511
    %v1567 = vunpack.c.h.b16 %v511
    %v1568 = vunpack.c.l.b16 %v512
    %v1569 = vunpack.c.h.b16 %v512
    %v1570 = vunpack.c.l.b16 %v513
    %v1571 = vunpack.c.h.b16 %v513
    %v1572 = vunpack.c.l.b16 %v514
    %v1573 = vunpack.c.l.b16 %v515
    %v1574 = vunpack.c.h.b16 %v515
    %v1575 = vunpack.c.l.b16 %v516
    %v1576 = vunpack.c.h.b16 %v516
    %v1577 = vunpack.c.l.b16 %v517
    %v1578 = vunpack.c.h.b16 %v517
    %v1579 = vunpack.c.l.b16 %v518
    %v1580 = vunpack.c.l.b16 %v519
    %v1581 = vunpack.c.h.b16 %v519
    %v1582 = vunpack.c.l.b16 %v520
    %v1583 = vunpack.c.h.b16 %v520
    %v1584 = vunpack.c.l.b16 %v521
    %v1585 = vunpack.c.h.b16 %v521
    %v1586 = vunpack.c.l.b16 %v522
    %v1587 = vunpack.c.l.b16 %v523
    %v1588 = vunpack.c.h.b16 %v523
    %v1589 = vunpack.c.l.b16 %v524
    %v1590 = vunpack.c.h.b16 %v524
    %v1591 = vunpack.c.l.b16 %v525
    %v1592 = vunpack.c.h.b16 %v525
    %v1593 = vunpack.c.l.b16 %v526
    %v1594 = vunpack.c.l.b16 %v527
    %v1595 = vunpack.c.h.b16 %v527
    %v1596 = vunpack.c.l.b16 %v528
    %v1597 = vunpack.c.h.b16 %v528
    %v1598 = vunpack.c.l.b16 %v529
    %v1599 = vunpack.c.h.b16 %v529
    %v1600 = vunpack.c.l.b16 %v530
    %v1601 = vunpack.c.l.b16 %v531
    %v1602 = vunpack.c.h.b16 %v531
    %v1603 = vunpack.c.l.b16 %v532
    %v1604 = vunpack.c.h.b16 %v532
    %v1605 = vunpack.c.l.b16 %v533
    %v1606 = vunpack.c.h.b16 %v533
    %v1607 = vunpack.c.l.b16 %v534
    %v1608 = vunpack.c.l.b16 %v535
    %v1609 = vunpack.c.h.b16 %v535
    %v1610 = vunpack.c.l.b16 %v536
    %v1611 = vunpack.c.h.b16 %v536
    %v1612 = vunpack.c.l.b16 %v537
    %v1613 = vunpack.c.h.b16 %v537
    %v1614 = vunpack.c.l.b16 %v538
    %v1615 = vunpack.c.l.b16 %v539
    %v1616 = vunpack.c.h.b16 %v539
    %v1617 = vunpack.c.l.b16 %v540
    %v1618 = vunpack.c.h.b16 %v540
    %v1619 = vunpack.c.l.b16 %v541
    %v1620 = vunpack.c.h.b16 %v541
    %v1621 = vunpack.c.l.b16 %v542
    %v1622 = vunpack.c.l.b16 %v543
    %v1623 = vunpack.c.h.b16 %v543
    %v1624 = vunpack.c.l.b16 %v544
    %v1625 = vunpack.c.h.b16 %v544
    %v1626 = vunpack.c.l.b16 %v545
    %v1627 = vunpack.c.h.b16 %v545
    %v1628 = vunpack.c.l.b16 %v546
    %v1629 = vunpack.c.l.b16 %v547
    %v1630 = vunpack.c.h.b16 %v547
    %v1631 = vunpack.c.l.b16 %v548
    %v1632 = vunpack.c.h.b16 %v548
    %v1633 = vunpack.c.l.b16 %v549
    %v1634 = vunpack.c.h.b16 %v549
    %v1635 = vunpack.c.l.b16 %v550
    %v1636 = vunpack.c.l.b16 %v551
    %v1637 = vunpack.c.h.b16 %v551
    %v1638 = vunpack.c.l.b16 %v552
    %v1639 = vunpack.c.h.b16 %v552
    %v1640 = vunpack.c.l.b16 %v553
    %v1641 = vunpack.c.h.b16 %v553
    %v1642 = vunpack.c.l.b16 %v554
    %v1643 = vunpack.c.l.b16 %v555
    %v1644 = vunpack.c.h.b16 %v555
    %v1645 = vunpack.c.l.b16 %v556
    %v1646 = vunpack.c.h.b16 %v556
    %v1647 = vunpack.c.l.b16 %v557
    %v1648 = vunpack.c.h.b16 %v557
    %v1649 = vunpack.c.l.b16 %v558
    %v1650 = vunpack.c.l.b16 %v559
    %v1651 = vunpack.c.h.b16 %v559
    %v1652 = vunpack.c.l.b16 %v560
    %v1653 = vunpack.c.h.b16 %v560
    %v1654 = vunpack.c.l.b16 %v561
    %v1655 = vunpack.c.h.b16 %v561
    %v1656 = vunpack.c.l.b16 %v562
    %v1657 = vunpack.c.l.b16 %v563
    %v1658 = vunpack.c.h.b16 %v563
    %v1659 = vunpack.c.l.b16 %v564
    %v1660 = vunpack.c.h.b16 %v564
    %v1661 = vunpack.c.l.b16 %v565
    %v1662 = vunpack.c.h.b16 %v565
    %v1663 = vunpack.c.l.b16 %v566
    %v1664 = vunpack.c.l.b16 %v567
    %v1665 = vunpack.c.h.b16 %v567
    %v1666 = vunpack.c.l.b16 %v568
    %v1667 = vunpack.c.h.b16 %v568
    %v1668 = vunpack.c.l.b16 %v569
    %v1669 = vunpack.c.h.b16 %v569
    %v1670 = vunpack.c.l.b16 %v570
    %v1671 = vunpack.c.l.b16 %v571
    %v1672 = vunpack.c.h.b16 %v571
    %v1673 = vunpack.c.l.b16 %v572
    %v1674 = vunpack.c.h.b16 %v572
    %v1675 = vunpack.c.l.b16 %v573
    %v1676 = vunpack.c.h.b16 %v573
    %v1677 = vunpack.c.l.b16 %v574
    %v1678 = vunpack.c.l.b16 %v575
    %v1679 = vunpack.c.h.b16 %v575
    %v1680 = vunpack.c.l.b16 %v576
    %v1681 = vunpack.c.h.b16 %v576
    %v1682 = vunpack.c.l.b16 %v577
    %v1683 = vunpack.c.h.b16 %v577
    %v1684 = vunpack.c.l.b16 %v578
    %v1685 = vunpack.c.l.b16 %v579
    %v1686 = vunpack.c.h.b16 %v579
    %v1687 = vunpack.c.l.b16 %v580
    %v1688 = vunpack.c.h.b16 %v580
    %v1689 = vunpack.c.l.b16 %v581
    %v1690 = vunpack.c.h.b16 %v581
    %v1691 = vunpack.c.l.b16 %v582
    %v1692 = vunpack.c.l.b16 %v583
    %v1693 = vunpack.c.h.b16 %v583
    %v1694 = vunpack.c.l.b16 %v584
    %v1695 = vunpack.c.h.b16 %v584
    %v1696 = vunpack.c.l.b16 %v585
    %v1697 = vunpack.c.h.b16 %v585
    %v1698 = vunpack.c.l.b16 %v586
    %v1699 = vunpack.c.l.b16 %v587
    %v1700 = vunpack.c.h.b16 %v587
    %v1701 = vunpack.c.l.b16 %v588
    %v1702 = vunpack.c.h.b16 %v588
    %v1703 = vunpack.c.l.b16 %v589
    %v1704 = vunpack.c.h.b16 %v589
    %v1705 = vunpack.c.l.b16 %v590
    %v1706 = vunpack.c.l.b16 %v591
    %v1707 = vunpack.c.h.b16 %v591
    %v1708 = vunpack.c.l.b16 %v592
    %v1709 = vunpack.c.h.b16 %v592
    %v1710 = vunpack.c.l.b16 %v593
    %v1711 = vunpack.c.h.b16 %v593
    %v1712 = vunpack.c.l.b16 %v594
    %v1713 = vunpack.c.l.b16 %v595
    %v1714 = vunpack.c.h.b16 %v595
    %v1715 = vunpack.c.l.b16 %v596
    %v1716 = vunpack.c.h.b16 %v596
    %v1717 = vunpack.c.l.b16 %v597
    %v1718 = vunpack.c.h.b16 %v597
    %v1719 = vunpack.c.l.b16 %v598
    %v1720 = vunpack.c.l.b16 %v599
    %v1721 = vunpack.c.h.b16 %v599
    %v1722 = vunpack.c.l.b16 %v600
    %v1723 = vunpack.c.h.b16 %v600
    %v1724 = vunpack.c.l.b16 %v601
    %v1725 = vunpack.c.h.b16 %v601
    %v1726 = vunpack.c.l.b16 %v602
    %v1727 = vunpack.c.l.b16 %v603
    %v1728 = vunpack.c.h.b16 %v603
    %v1729 = vunpack.c.l.b16 %v604
    %v1730 = vunpack.c.h.b16 %v604
    %v1731 = vunpack.c.l.b16 %v605
    %v1732 = vunpack.c.h.b16 %v605
    %v1733 = vunpack.c.l.b16 %v606
    %v1734 = vunpack.c.l.b16 %v607
    %v1735 = vunpack.c.h.b16 %v607
    %v1736 = vunpack.c.l.b16 %v608
    %v1737 = vunpack.c.h.b16 %v608
    %v1738 = vunpack.c.l.b16 %v609
    %v1739 = vunpack.c.h.b16 %v609
    %v1740 = vunpack.c.l.b16 %v610
    %v1741 = vunpack.c.l.b16 %v611
    %v1742 = vunpack.c.h.b16 %v611
    %v1743 = vunpack.c.l.b16 %v612
    %v1744 = vunpack.c.h.b16 %v612
    %v1745 = vunpack.c.l.b16 %v613
    %v1746 = vunpack.c.h.b16 %v613
    %v1747 = vunpack.c.l.b16 %v614
    %v1748 = vunpack.c.l.b16 %v615
    %v1749 = vunpack.c.h.b16 %v615
    %v1750 = vunpack.c.l.b16 %v616
    %v1751 = vunpack.c.h.b16 %v616
    %v1752 = vunpack.c.l.b16 %v617
    %v1753 = vunpack.c.h.b16 %v617
    %v1754 = vunpack.c.l.b16 %v618
    %v1755 = vunpack.c.l.b16 %v619
    %v1756 = vunpack.c.h.b16 %v619
    %v1757 = vunpack.c.l.b16 %v620
    %v1758 = vunpack.c.h.b16 %v620
    %v1759 = vunpack.c.l.b16 %v621
    %v1760 = vunpack.c.h.b16 %v621
    %v1761 = vunpack.c.l.b16 %v622
    %v1762 = vunpack.c.l.b16 %v623
    %v1763 = vunpack.c.h.b16 %v623
    %v1764 = vunpack.c.l.b16 %v624
    %v1765 = vunpack.c.h.b16 %v624
    %v1766 = vunpack.c.l.b16 %v625
    %v1767 = vunpack.c.h.b16 %v625
    %v1768 = vunpack.c.l.b16 %v626
    %v1769 = vunpack.c.l.b16 %v627
    %v1770 = vunpack.c.h.b16 %v627
    %v1771 = vunpack.c.l.b16 %v628
    %v1772 = vunpack.c.h.b16 %v628
    %v1773 = vunpack.c.l.b16 %v629
    %v1774 = vunpack.c.h.b16 %v629
    %v1775 = vunpack.c.l.b16 %v630
    %v1776 = vunpack.c.l.b16 %v631
    %v1777 = vunpack.c.h.b16 %v631
    %v1778 = vunpack.c.l.b16 %v632
    %v1779 = vunpack.c.h.b16 %v632
    %v1780 = vunpack.c.l.b16 %v633
    %v1781 = vunpack.c.h.b16 %v633
    %v1782 = vunpack.c.l.b16 %v634
    %v1783 = vunpack.c.l.b16 %v635
    %v1784 = vunpack.c.h.b16 %v635
    %v1785 = vunpack.c.l.b16 %v636
    %v1786 = vunpack.c.h.b16 %v636
    %v1787 = vunpack.c.l.b16 %v637
    %v1788 = vunpack.c.h.b16 %v637
    %v1789 = vunpack.c.l.b16 %v638
    %v1790 = vunpack.c.l.b16 %v639
    %v1791 = vunpack.c.h.b16 %v639
    %v1792 = vunpack.c.l.b16 %v640
    %v1793 = vunpack.c.h.b16 %v640
    %v1794 = vunpack.c.l.b16 %v641
    %v1795 = vunpack.c.h.b16 %v641
    %v1796 = vunpack.c.l.b16 %v642
    %v1797 = vunpack.c.l.b16 %v643
    %v1798 = vunpack.c.h.b16 %v643
    %v1799 = vunpack.c.l.b16 %v644
    %v1800 = vunpack.c.h.b16 %v644
    %v1801 = vunpack.c.l.b16 %v645
    %v1802 = vunpack.c.h.b16 %v645
    %v1803 = vunpack.c.l.b16 %v646
    %v1804 = vunpack.c.l.b16 %v647
    %v1805 = vunpack.c.h.b16 %v647
    %v1806 = vunpack.c.l.b16 %v648
    %v1807 = vunpack.c.h.b16 %v648
    %v1808 = vunpack.c.l.b16 %v649
    %v1809 = vunpack.c.h.b16 %v649
    %v1810 = vunpack.c.l.b16 %v650
    %v1811 = vunpack.c.l.b16 %v651
    %v1812 = vunpack.c.h.b16 %v651
    %v1813 = vunpack.c.l.b16 %v652
    %v1814 = vunpack.c.h.b16 %v652
    %v1815 = vunpack.c.l.b16 %v653
    %v1816 = vunpack.c.h.b16 %v653
    %v1817 = vunpack.c.l.b16 %v654
    %v1818 = vunpack.c.l.b16 %v655
    %v1819 = vunpack.c.h.b16 %v655
    %v1820 = vunpack.c.l.b16 %v656
    %v1821 = vunpack.c.h.b16 %v656
    %v1822 = vunpack.c.l.b16 %v657
    %v1823 = vunpack.c.h.b16 %v657
    %v1824 = vunpack.c.l.b16 %v658
    %v1825 = vunpack.c.l.b16 %v659
    %v1826 = vunpack.c.h.b16 %v659
    %v1827 = vunpack.c.l.b16 %v660
    %v1828 = vunpack.c.h.b16 %v660
    %v1829 = vunpack.c.l.b16 %v661
    %v1830 = vunpack.c.h.b16 %v661
    %v1831 = vunpack.c.l.b16 %v662
    %v1832 = vunpack.c.l.b16 %v663
    %v1833 = vunpack.c.h.b16 %v663
    %v1834 = vunpack.c.l.b16 %v664
    %v1835 = vunpack.c.h.b16 %v664
    %v1836 = vunpack.c.l.b16 %v665
    %v1837 = vunpack.c.h.b16 %v665
    %v1838 = vunpack.c.l.b16 %v666
    %v1839 = vunpack.c.l.b16 %v667
    %v1840 = vunpack.c.h.b16 %v667
    %v1841 = vunpack.c.l.b16 %v668
    %v1842 = vunpack.c.h.b16 %v668
    %v1843 = vunpack.c.l.b16 %v669
    %v1844 = vunpack.c.h.b16 %v669
    %v1845 = vunpack.c.l.b16 %v670
    %v1846 = vunpack.c.l.b16 %v671
    %v1847 = vunpack.c.h.b16 %v671
    %v1848 = vunpack.c.l.b16 %v672
    %v1849 = vunpack.c.h.b16 %v672
    %v1850 = vunpack.c.l.b16 %v673
    %v1851 = vunpack.c.h.b16 %v673
    %v1852 = vunpack.c.l.b16 %v674
    %v1853 = vunpack.c.l.b16 %v675
    %v1854 = vunpack.c.h.b16 %v675
    %v1855 = vunpack.c.l.b16 %v676
    %v1856 = vunpack.c.h.b16 %v676
    %v1857 = vunpack.c.l.b16 %v677
    %v1858 = vunpack.c.h.b16 %v677
    %v1859 = vunpack.c.l.b16 %v678
    %v1860 = vunpack.c.l.b16 %v679
    %v1861 = vunpack.c.h.b16 %v679
    %v1862 = vunpack.c.l.b16 %v680
    %v1863 = vunpack.c.h.b16 %v680
    %v1864 = vunpack.c.l.b16 %v681
    %v1865 = vunpack.c.h.b16 %v681
    %v1866 = vunpack.c.l.b16 %v682
    %v1867 = vunpack.c.l.b16 %v683
    %v1868 = vunpack.c.h.b16 %v683
    %v1869 = vunpack.c.l.b16 %v684
    %v1870 = vunpack.c.h.b16 %v684
    %v1871 = vunpack.c.l.b16 %v685
    %v1872 = vunpack.c.h.b16 %v685
    %v1873 = vunpack.c.l.b16 %v686
    %v1874 = vunpack.c.l.b16 %v687
    %v1875 = vunpack.c.h.b16 %v687
    %v1876 = vunpack.c.l.b16 %v688
    %v1877 = vunpack.c.h.b16 %v688
    %v1878 = vunpack.c.l.b16 %v689
    %v1879 = vunpack.c.h.b16 %v689
    %v1880 = vunpack.c.l.b16 %v690
    %v1881 = vunpack.c.l.b16 %v691
    %v1882 = vunpack.c.h.b16 %v691
    %v1883 = vunpack.c.l.b16 %v692
    %v1884 = vunpack.c.h.b16 %v692
    %v1885 = vunpack.c.l.b16 %v693
    %v1886 = vunpack.c.h.b16 %v693
    %v1887 = vunpack.c.l.b16 %v694
    %v1888 = vunpack.c.l.b16 %v695
    %v1889 = vunpack.c.h.b16 %v695
    %v1890 = vunpack.c.l.b16 %v696
    %v1891 = vunpack.c.h.b16 %v696
    %v1892 = vunpack.c.l.b16 %v697
    %v1893 = vunpack.c.h.b16 %v697
    %v1894 = vunpack.c.l.b16 %v698
    %v1895 = vunpack.c.l.b16 %v699
    %v1896 = vunpack.c.h.b16 %v699
    %v1897 = vunpack.c.l.b16 %v700
    %v1898 = vunpack.c.h.b16 %v700
    %v1899 = vunpack.c.l.b16 %v701
    %v1900 = vunpack.c.h.b16 %v701
    %v1901 = vunpack.c.l.b16 %v702
    %v1902 = vunpack.c.l.b16 %v703
    %v1903 = vunpack.c.h.b16 %v703
    %v1904 = vunpack.c.l.b16 %v704
    %v1905 = vunpack.c.h.b16 %v704
    %v1906 = vunpack.c.l.b16 %v705
    %v1907 = vunpack.c.h.b16 %v705
    %v1908 = vunpack.c.l.b16 %v706
    %v1909 = vunpack.c.l.b16 %v707
    %v1910 = vunpack.c.h.b16 %v707
    %v1911 = vunpack.c.l.b16 %v708
    %v1912 = vunpack.c.h.b16 %v708
    %v1913 = vunpack.c.l.b16 %v709
    %v1914 = vunpack.c.h.b16 %v709
    %v1915 = vunpack.c.l.b16 %v710
    %v1916 = vunpack.c.l.b16 %v711
    %v1917 = vunpack.c.h.b16 %v711
    %v1918 = vunpack.c.l.b16 %v712
    %v1919 = vunpack.c.h.b16 %v712
    %v1920 = vunpack.c.l.b16 %v713
    %v1921 = vunpack.c.h.b16 %v713
    %v1922 = vunpack.c.l.b16 %v714
    %v1923 = vunpack.c.l.b16 %v715
    %v1924 = vunpack.c.h.b16 %v715
    %v1925 = vunpack.c.l.b16 %v716
    %v1926 = vunpack.c.h.b16 %v716
    %v1927 = vunpack.c.l.b16 %v717
    %v1928 = vunpack.c.h.b16 %v717
    %v1929 = vunpack.c.l.b16 %v718
    %v1930 = vunpack.c.l.b16 %v719
    %v1931 = vunpack.c.h.b16 %v719
    %v1932 = vunpack.c.l.b16 %v720
    %v1933 = vunpack.c.h.b16 %v720
    %v1934 = vunpack.c.l.b16 %v721
    %v1935 = vunpack.c.h.b16 %v721
    %v1936 = vunpack.c.l.b16 %v722
    %v1937 = vunpack.c.l.b16 %v723
    %v1938 = vunpack.c.h.b16 %v723
    %v1939 = vunpack.c.l.b16 %v724
    %v1940 = vunpack.c.h.b16 %v724
    %v1941 = vunpack.c.l.b16 %v725
    %v1942 = vunpack.c.h.b16 %v725
    %v1943 = vunpack.c.l.b16 %v726
    %v1944 = vunpack.c.l.b16 %v727
    %v1945 = vunpack.c.h.b16 %v727
    %v1946 = vunpack.c.l.b16 %v728
    %v1947 = vunpack.c.h.b16 %v728
    %v1948 = vunpack.c.l.b16 %v729
    %v1949 = vunpack.c.h.b16 %v729
    %v1950 = vunpack.c.l.b16 %v730
    %v1951 = vunpack.c.l.b16 %v731
    %v1952 = vunpack.c.h.b16 %v731
    %v1953 = vunpack.c.l.b16 %v732
    %v1954 = vunpack.c.h.b16 %v732
    %v1955 = vunpack.c.l.b16 %v733
    %v1956 = vunpack.c.h.b16 %v733
    %v1957 = vunpack.c.l.b16 %v734
    %v1958 = vunpack.c.l.b16 %v735
    %v1959 = vunpack.c.h.b16 %v735
    %v1960 = vunpack.c.l.b16 %v736
    %v1961 = vunpack.c.h.b16 %v736
    %v1962 = vunpack.c.l.b16 %v737
    %v1963 = vunpack.c.h.b16 %v737
    %v1964 = vunpack.c.l.b16 %v738
    %v1965 = vunpack.c.l.b16 %v739
    %v1966 = vunpack.c.h.b16 %v739
    %v1967 = vunpack.c.l.b16 %v740
    %v1968 = vunpack.c.h.b16 %v740
    %v1969 = vunpack.c.l.b16 %v741
    %v1970 = vunpack.c.h.b16 %v741
    %v1971 = vunpack.c.l.b16 %v742
    %v1972 = vunpack.c.l.b16 %v743
    %v1973 = vunpack.c.h.b16 %v743
    %v1974 = vunpack.c.l.b16 %v744
    %v1975 = vunpack.c.h.b16 %v744
    %v1976 = vunpack.c.l.b16 %v745
    %v1977 = vunpack.c.h.b16 %v745
    %v1978 = vunpack.c.l.b16 %v746
    %v1979 = vpack.c.b16 %v1202, %v1195
    %v1980 = vpack.c.b16 %v1203, %v1196
    %v1981 = vpack.c.b16 %v1204, %v1197
    %v1982 = vpack.c.b16 %v1205, %v1198
    %v1983 = vpack.c.b16 %v1206, %v1199
    %v1984 = vpack.c.b16 %v1207, %v1200
    %v1985 = vpack.c.b16 %v1208, %v1201
    %v1986 = vpack.c.b16 %v1216, %v1209
    %v1987 = vpack.c.b16 %v1217, %v1210
    %v1988 = vpack.c.b16 %v1218, %v1211
    %v1989 = vpack.c.b16 %v1219, %v1212
    %v1990 = vpack.c.b16 %v1220, %v1213
    %v1991 = vpack.c.b16 %v1221, %v1214
    %v1992 = vpack.c.b16 %v1222, %v1215
    %v1993 = vpack.c.b16 %v1230, %v1223
    %v1994 = vpack.c.b16 %v1231, %v1224
    %v1995 = vpack.c.b16 %v1232, %v1225
    %v1996 = vpack.c.b16 %v1233, %v1226
    %v1997 = vpack.c.b16 %v1234, %v1227
    %v1998 = vpack.c.b16 %v1235, %v1228
    %v1999 = vpack.c.b16 %v1236, %v1229
    %v2000 = vpack.c.b16 %v1244, %v1237
    %v2001 = vpack.c.b16 %v1245, %v1238
    %v2002 = vpack.c.b16 %v1246, %v1239
    %v2003 = vpack.c.b16 %v1247, %v1240
    %v2004 = vpack.c.b16 %v1248, %v1241
    %v2005 = vpack.c.b16 %v1249, %v1242
    %v2006 = vpack.c.b16 %v1250, %v1243
    %v2007 = vpack.c.b16 %v1258, %v1251
    %v2008 = vpack.c.b16 %v1259, %v1252
    %v2009 = vpack.c.b16 %v1260, %v1253
    %v2010 = vpack.c.b16 %v1261, %v1254
    %v2011 = vpack.c.b16 %v1262, %v1255
    %v2012 = vpack.c.b16 %v1263, %v1256
    %v2013 = vpack.c.b16 %v1264, %v1257
    %v2014 = vpack.c.b16 %v1272, %v1265
    %v2015 = vpack.c.b16 %v1273, %v1266
    %v2016 = vpack.c.b16 %v1274, %v1267
    %v2017 = vpack.c.b16 %v1275, %v1268
    %v2018 = vpack.c.b16 %v1276, %v1269
    %v2019 = vpack.c.b16 %v1277, %v1270
    %v2020 = vpack.c.b16 %v1278, %v1271
    %v2021 = vpack.c.b16 %v1286, %v1279
    %v2022 = vpack.c.b16 %v1287, %v1280
    %v2023 = vpack.c.b16 %v1288, %v1281
    %v2024 = vpack.c.b16 %v1289, %v1282
    %v2025 = vpack.c.b16 %v1290, %v1283
    %v2026 = vpack.c.b16 %v1291, %v1284
    %v2027 = vpack.c.b16 %v1292, %v1285
    %v2028 = vpack.c.b16 %v1300, %v1293
    %v2029 = vpack.c.b16 %v1301, %v1294
    %v2030 = vpack.c.b16 %v1302, %v1295
    %v2031 = vpack.c.b16 %v1303, %v1296
    %v2032 = vpack.c.b16 %v1304, %v1297
    %v2033 = vpack.c.b16 %v1305, %v1298
    %v2034 = vpack.c.b16 %v1306, %v1299
    %v2035 = vpack.c.b16 %v1314, %v1307
    %v2036 = vpack.c.b16 %v1315, %v1308
    %v2037 = vpack.c.b16 %v1316, %v1309
    %v2038 = vpack.c.b16 %v1317, %v1310
    %v2039 = vpack.c.b16 %v1318, %v1311
    %v2040 = vpack.c.b16 %v1319, %v1312
    %v2041 = vpack.c.b16 %v1320, %v1313
    %v2042 = vpack.c.b16 %v1328, %v1321
    %v2043 = vpack.c.b16 %v1329, %v1322
    %v2044 = vpack.c.b16 %v1330, %v1323
    %v2045 = vpack.c.b16 %v1331, %v1324
    %v2046 = vpack.c.b16 %v1332, %v1325
    %v2047 = vpack.c.b16 %v1333, %v1326
    %v2048 = vpack.c.b16 %v1334, %v1327
    %v2049 = vpack.c.b16 %v1342, %v1335
    %v2050 = vpack.c.b16 %v1343, %v1336
    %v2051 = vpack.c.b16 %v1344, %v1337
    %v2052 = vpack.c.b16 %v1345, %v1338
    %v2053 = vpack.c.b16 %v1346, %v1339
    %v2054 = vpack.c.b16 %v1347, %v1340
    %v2055 = vpack.c.b16 %v1348, %v1341
    %v2056 = vpack.c.b16 %v1356, %v1349
    %v2057 = vpack.c.b16 %v1357, %v1350
    %v2058 = vpack.c.b16 %v1358, %v1351
    %v2059 = vpack.c.b16 %v1359, %v1352
    %v2060 = vpack.c.b16 %v1360, %v1353
    %v2061 = vpack.c.b16 %v1361, %v1354
    %v2062 = vpack.c.b16 %v1362, %v1355
    %v2063 = vpack.c.b16 %v1370, %v1363
    %v2064 = vpack.c.b16 %v1371, %v1364
    %v2065 = vpack.c.b16 %v1372, %v1365
    %v2066 = vpack.c.b16 %v1373, %v1366
    %v2067 = vpack.c.b16 %v1374, %v1367
    %v2068 = vpack.c.b16 %v1375, %v1368
    %v2069 = vpack.c.b16 %v1376, %v1369
    %v2070 = vpack.c.b16 %v1384, %v1377
    %v2071 = vpack.c.b16 %v1385, %v1378
    %v2072 = vpack.c.b16 %v1386, %v1379
    %v2073 = vpack.c.b16 %v1387, %v1380
    %v2074 = vpack.c.b16 %v1388, %v1381
    %v2075 = vpack.c.b16 %v1389, %v1382
    %v2076 = vpack.c.b16 %v1390, %v1383
    %v2077 = vpack.c.b16 %v1398, %v1391
    %v2078 = vpack.c.b16 %v1399, %v1392
    %v2079 = vpack.c.b16 %v1400, %v1393
    %v2080 = vpack.c.b16 %v1401, %v1394
    %v2081 = vpack.c.b16 %v1402, %v1395
    %v2082 = vpack.c.b16 %v1403, %v1396
    %v2083 = vpack.c.b16 %v1404, %v1397
    %v2084 = vpack.c.b16 %v1412, %v1405
    %v2085 = vpack.c.b16 %v1413, %v1406
    %v2086 = vpack.c.b16 %v1414, %v1407
    %v2087 = vpack.c.b16 %v1415, %v1408
    %v2088 = vpack.c.b16 %v1416, %v1409
    %v2089 = vpack.c.b16 %v1417, %v1410
    %v2090 = vpack.c.b16 %v1418, %v1411
    %v2091 = vpack.c.b16 %v1426, %v1419
    %v2092 = vpack.c.b16 %v1427, %v1420
    %v2093 = vpack.c.b16 %v1428, %v1421
    %v2094 = vpack.c.b16 %v1429, %v1422
    %v2095 = vpack.c.b16 %v1430, %v1423
    %v2096 = vpack.c.b16 %v1431, %v1424
    %v2097 = vpack.c.b16 %v1432, %v1425
    %v2098 = vpack.c.b16 %v1440, %v1433
    %v2099 = vpack.c.b16 %v1441, %v1434
    %v2100 = vpack.c.b16 %v1442, %v1435
    %v2101 = vpack.c.b16 %v1443, %v1436
    %v2102 = vpack.c.b16 %v1444, %v1437
    %v2103 = vpack.c.b16 %v1445, %v1438
    %v2104 = vpack.c.b16 %v1446, %v1439
    %v2105 = vpack.c.b16 %v1454, %v1447
    %v2106 = vpack.c.b16 %v1455, %v1448
    %v2107 = vpack.c.b16 %v1456, %v1449
    %v2108 = vpack.c.b16 %v1457, %v1450
    %v2109 = vpack.c.b16 %v1458, %v1451
    %v2110 = vpack.c.b16 %v1459, %v1452
    %v2111 = vpack.c.b16 %v1460, %v1453
    %v2112 = vpack.c.b16 %v1468, %v1461
    %v2113 = vpack.c.b16 %v1469, %v1462
    %v2114 = vpack.c.b16 %v1470, %v1463
    %v2115 = vpack.c.b16 %v1471, %v1464
    %v2116 = vpack.c.b16 %v1472, %v1465
    %v2117 = vpack.c.b16 %v1473, %v1466
    %v2118 = vpack.c.b16 %v1474, %v1467
    %v2119 = vpack.c.b16 %v1482, %v1475
    %v2120 = vpack.c.b16 %v1483, %v1476
    %v2121 = vpack.c.b16 %v1484, %v1477
    %v2122 = vpack.c.b16 %v1485, %v1478
    %v2123 = vpack.c.b16 %v1486, %v1479
    %v2124 = vpack.c.b16 %v1487, %v1480
    %v2125 = vpack.c.b16 %v1488, %v1481
    %v2126 = vpack.c.b16 %v1496, %v1489
    %v2127 = vpack.c.b16 %v1497, %v1490
    %v2128 = vpack.c.b16 %v1498, %v1491
    %v2129 = vpack.c.b16 %v1499, %v1492
    %v2130 = vpack.c.b16 %v1500, %v1493
    %v2131 = vpack.c.b16 %v1501, %v1494
    %v2132 = vpack.c.b16 %v1502, %v1495
    %v2133 = vpack.c.b16 %v1510, %v1503
    %v2134 = vpack.c.b16 %v1511, %v1504
    %v2135 = vpack.c.b16 %v1512, %v1505
    %v2136 = vpack.c.b16 %v1513, %v1506
    %v2137 = vpack.c.b16 %v1514, %v1507
    %v2138 = vpack.c.b16 %v1515, %v1508
    %v2139 = vpack.c.b16 %v1516, %v1509
    %v2140 = vpack.c.b16 %v1524, %v1517
    %v2141 = vpack.c.b16 %v1525, %v1518
    %v2142 = vpack.c.b16 %v1526, %v1519
    %v2143 = vpack.c.b16 %v1527, %v1520
    %v2144 = vpack.c.b16 %v1528, %v1521
    %v2145 = vpack.c.b16 %v1529, %v1522
    %v2146 = vpack.c.b16 %v1530, %v1523
    %v2147 = vpack.c.b16 %v1538, %v1531
    %v2148 = vpack.c.b16 %v1539, %v1532
    %v2149 = vpack.c.b16 %v1540, %v1533
    %v2150 = vpack.c.b16 %v1541, %v1534
    %v2151 = vpack.c.b16 %v1542, %v1535
    %v2152 = vpack.c.b16 %v1543, %v1536
    %v2153 = vpack.c.b16 %v1544, %v1537
    %v2154 = vpack.c.b16 %v1552, %v1545
    %v2155 = vpack.c.b16 %v1553, %v1546
    %v2156 = vpack.c.b16 %v1554, %v1547
    %v2157 = vpack.c.b16 %v1555, %v1548
    %v2158 = vpack.c.b16 %v1556, %v1549
    %v2159 = vpack.c.b16 %v1557, %v1550
    %v2160 = vpack.c.b16 %v1558, %v1551
    %v2161 = vpack.c.b16 %v1566, %v1559
    %v2162 = vpack.c.b16 %v1567, %v1560
    %v2163 = vpack.c.b16 %v1568, %v1561
    %v2164 = vpack.c.b16 %v1569, %v1562
    %v2165 = vpack.c.b16 %v1570, %v1563
    %v2166 = vpack.c.b16 %v1571, %v1564
    %v2167 = vpack.c.b16 %v1572, %v1565
    %v2168 = vpack.c.b16 %v1580, %v1573
    %v2169 = vpack.c.b16 %v1581, %v1574
    %v2170 = vpack.c.b16 %v1582, %v1575
    %v2171 = vpack.c.b16 %v1583, %v1576
    %v2172 = vpack.c.b16 %v1584, %v1577
    %v2173 = vpack.c.b16 %v1585, %v1578
    %v2174 = vpack.c.b16 %v1586, %v1579
    %v2175 = vpack.c.b16 %v1594, %v1587
    %v2176 = vpack.c.b16 %v1595, %v1588
    %v2177 = vpack.c.b16 %v1596, %v1589
    %v2178 = vpack.c.b16 %v1597, %v1590
    %v2179 = vpack.c.b16 %v1598, %v1591
    %v2180 = vpack.c.b16 %v1599, %v1592
    %v2181 = vpack.c.b16 %v1600, %v1593
    %v2182 = vpack.c.b16 %v1608, %v1601
    %v2183 = vpack.c.b16 %v1609, %v1602
    %v2184 = vpack.c.b16 %v1610, %v1603
    %v2185 = vpack.c.b16 %v1611, %v1604
    %v2186 = vpack.c.b16 %v1612, %v1605
    %v2187 = vpack.c.b16 %v1613, %v1606
    %v2188 = vpack.c.b16 %v1614, %v1607
    %v2189 = vpack.c.b16 %v1622, %v1615
    %v2190 = vpack.c.b16 %v1623, %v1616
    %v2191 = vpack.c.b16 %v1624, %v1617
    %v2192 = vpack.c.b16 %v1625, %v1618
    %v2193 = vpack.c.b16 %v1626, %v1619
    %v2194 = vpack.c.b16 %v1627, %v1620
    %v2195 = vpack.c.b16 %v1628, %v1621
    %v2196 = vpack.c.b16 %v1636, %v1629
    %v2197 = vpack.c.b16 %v1637, %v1630
    %v2198 = vpack.c.b16 %v1638, %v1631
    %v2199 = vpack.c.b16 %v1639, %v1632
    %v2200 = vpack.c.b16 %v1640, %v1633
    %v2201 = vpack.c.b16 %v1641, %v1634
    %v2202 = vpack.c.b16 %v1642, %v1635
    %v2203 = vpack.c.b16 %v1650, %v1643
    %v2204 = vpack.c.b16 %v1651, %v1644
    %v2205 = vpack.c.b16 %v1652, %v1645
    %v2206 = vpack.c.b16 %v1653, %v1646
    %v2207 = vpack.c.b16 %v1654, %v1647
    %v2208 = vpack.c.b16 %v1655, %v1648
    %v2209 = vpack.c.b16 %v1656, %v1649
    %v2210 = vpack.c.b16 %v1664, %v1657
    %v2211 = vpack.c.b16 %v1665, %v1658
    %v2212 = vpack.c.b16 %v1666, %v1659
    %v2213 = vpack.c.b16 %v1667, %v1660
    %v2214 = vpack.c.b16 %v1668, %v1661
    %v2215 = vpack.c.b16 %v1669, %v1662
    %v2216 = vpack.c.b16 %v1670, %v1663
    %v2217 = vpack.c.b16 %v1678, %v1671
    %v2218 = vpack.c.b16 %v1679, %v1672
    %v2219 = vpack.c.b16 %v1680, %v1673
    %v2220 = vpack.c.b16 %v1681, %v1674
    %v2221 = vpack.c.b16 %v1682, %v1675
    %v2222 = vpack.c.b16 %v1683, %v1676
    %v2223 = vpack.c.b16 %v1684, %v1677
    %v2224 = vpack.c.b16 %v1692, %v1685
    %v2225 = vpack.c.b16 %v1693, %v1686
    %v2226 = vpack.c.b16 %v1694, %v1687
    %v2227 = vpack.c.b16 %v1695, %v1688
    %v2228 = vpack.c.b16 %v1696, %v1689
    %v2229 = vpack.c.b16 %v1697, %v1690
    %v2230 = vpack.c.b16 %v1698, %v1691
    %v2231 = vpack.c.b16 %v1706, %v1699
    %v2232 = vpack.c.b16 %v1707, %v1700
    %v2233 = vpack.c.b16 %v1708, %v1701
    %v2234 = vpack.c.b16 %v1709, %v1702
    %v2235 = vpack.c.b16 %v1710, %v1703
    %v2236 = vpack.c.b16 %v1711, %v1704
    %v2237 = vpack.c.b16 %v1712, %v1705
    %v2238 = vpack.c.b16 %v1720, %v1713
    %v2239 = vpack.c.b16 %v1721, %v1714
    %v2240 = vpack.c.b16 %v1722, %v1715
    %v2241 = vpack.c.b16 %v1723, %v1716
    %v2242 = vpack.c.b16 %v1724, %v1717
    %v2243 = vpack.c.b16 %v1725, %v1718
    %v2244 = vpack.c.b16 %v1726, %v1719
    %v2245 = vpack.c.b16 %v1734, %v1727
    %v2246 = vpack.c.b16 %v1735, %v1728
    %v2247 = vpack.c.b16 %v1736, %v1729
    %v2248 = vpack.c.b16 %v1737, %v1730
    %v2249 = vpack.c.b16 %v1738, %v1731
    %v2250 = vpack.c.b16 %v1739, %v1732
    %v2251 = vpack.c.b16 %v1740, %v1733
    %v2252 = vpack.c.b16 %v1748, %v1741
    %v2253 = vpack.c.b16 %v1749, %v1742
    %v2254 = vpack.c.b16 %v1750, %v1743
    %v2255 = vpack.c.b16 %v1751, %v1744
    %v2256 = vpack.c.b16 %v1752, %v1745
    %v2257 = vpack.c.b16 %v1753, %v1746
    %v2258 = vpack.c.b16 %v1754, %v1747
    %v2259 = vpack.c.b16 %v1762, %v1755
    %v2260 = vpack.c.b16 %v1763, %v1756
    %v2261 = vpack.c.b16 %v1764, %v1757
    %v2262 = vpack.c.b16 %v1765, %v1758
    %v2263 = vpack.c.b16 %v1766, %v1759
    %v2264 = vpack.c.b16 %v1767, %v1760
    %v2265 = vpack.c.b16 %v1768, %v1761
    %v2266 = vpack.c.b16 %v1776, %v1769
    %v2267 = vpack.c.b16 %v1777, %v1770
    %v2268 = vpack.c.b16 %v1778, %v1771
    %v2269 = vpack.c.b16 %v1779, %v1772
    %v2270 = vpack.c.b16 %v1780, %v1773
    %v2271 = vpack.c.b16 %v1781, %v1774
    %v2272 = vpack.c.b16 %v1782, %v1775
    %v2273 = vpack.c.b16 %v1790, %v1783
    %v2274 = vpack.c.b16 %v1791, %v1784
    %v2275 = vpack.c.b16 %v1792, %v1785
    %v2276 = vpack.c.b16 %v1793, %v1786
    %v2277 = vpack.c.b16 %v1794, %v1787
    %v2278 = vpack.c.b16 %v1795, %v1788
    %v2279 = vpack.c.b16 %v1796, %v1789
    %v2280 = vpack.c.b16 %v1804, %v1797
    %v2281 = vpack.c.b16 %v1805, %v1798
    %v2282 = vpack.c.b16 %v1806, %v1799
    %v2283 = vpack.c.b16 %v1807, %v1800
    %v2284 = vpack.c.b16 %v1808, %v1801
    %v2285 = vpack.c.b16 %v1809, %v1802
    %v2286 = vpack.c.b16 %v1810, %v1803
    %v2287 = vpack.c.b16 %v1818, %v1811
    %v2288 = vpack.c.b16 %v1819, %v1812
    %v2289 = vpack.c.b16 %v1820, %v1813
    %v2290 = vpack.c.b16 %v1821, %v1814
    %v2291 = vpack.c.b16 %v1822, %v1815
    %v2292 = vpack.c.b16 %v1823, %v1816
    %v2293 = vpack.c.b16 %v1824, %v1817
    %v2294 = vpack.c.b16 %v1832, %v1825
    %v2295 = vpack.c.b16 %v1833, %v1826
    %v2296 = vpack.c.b16 %v1834, %v1827
    %v2297 = vpack.c.b16 %v1835, %v1828
    %v2298 = vpack.c.b16 %v1836, %v1829
    %v2299 = vpack.c.b16 %v1837, %v1830
    %v2300 = vpack.c.b16 %v1838, %v1831
    %v2301 = vpack.c.b16 %v1846, %v1839
    %v2302 = vpack.c.b16 %v1847, %v1840
    %v2303 = vpack.c.b16 %v1848, %v1841
    %v2304 = vpack.c.b16 %v1849, %v1842
    %v2305 = vpack.c.b16 %v1850, %v1843
    %v2306 = vpack.c.b16 %v1851, %v1844
    %v2307 = vpack.c.b16 %v1852, %v1845
    %v2308 = vpack.c.b16 %v1860, %v1853
    %v2309 = vpack.c.b16 %v1861, %v1854
    %v2310 = vpack.c.b16 %v1862, %v1855
    %v2311 = vpack.c.b16 %v1863, %v1856
    %v2312 = vpack.c.b16 %v1864, %v1857
    %v2313 = vpack.c.b16 %v1865, %v1858
    %v2314 = vpack.c.b16 %v1866, %v1859
    %v2315 = vpack.c.b16 %v1874, %v1867
    %v2316 = vpack.c.b16 %v1875, %v1868
    %v2317 = vpack.c.b16 %v1876, %v1869
    %v2318 = vpack.c.b16 %v1877, %v1870
    %v2319 = vpack.c.b16 %v1878, %v1871
    %v2320 = vpack.c.b16 %v1879, %v1872
    %v2321 = vpack.c.b16 %v1880, %v1873
    %v2322 = vpack.c.b16 %v1888, %v1881
    %v2323 = vpack.c.b16 %v1889, %v1882
    %v2324 = vpack.c.b16 %v1890, %v1883
    %v2325 = vpack.c.b16 %v1891, %v1884
    %v2326 = vpack.c.b16 %v1892, %v1885
    %v2327 = vpack.c.b16 %v1893, %v1886
    %v2328 = vpack.c.b16 %v1894, %v1887
    %v2329 = vpack.c.b16 %v1902, %v1895
    %v2330 = vpack.c.b16 %v1903, %v1896
    %v2331 = vpack.c.b16 %v1904, %v1897
    %v2332 = vpack.c.b16 %v1905, %v1898
    %v2333 = vpack.c.b16 %v1906, %v1899
    %v2334 = vpack.c.b16 %v1907, %v1900
    %v2335 = vpack.c.b16 %v1908, %v1901
    %v2336 = vpack.c.b16 %v1916, %v1909
    %v2337 = vpack.c.b16 %v1917, %v1910
    %v2338 = vpack.c.b16 %v1918, %v1911
    %v2339 = vpack.c.b16 %v1919, %v1912
    %v2340 = vpack.c.b16 %v1920, %v1913
    %v2341 = vpack.c.b16 %v1921, %v1914
    %v2342 = vpack.c.b16 %v1922, %v1915
    %v2343 = vpack.c.b16 %v1930, %v1923
    %v2344 = vpack.c.b16 %v1931, %v1924
    %v2345 = vpack.c.b16 %v1932, %v1925
    %v2346 = vpack.c.b16 %v1933, %v1926
    %v2347 = vpack.c.b16 %v1934, %v1927
    %v2348 = vpack.c.b16 %v1935, %v1928
    %v2349 = vpack.c.b16 %v1936, %v1929
    %v2350 = vpack.c.b16 %v1944, %v1937
    %v2351 = vpack.c.b16 %v1945, %v1938
    %v2352 = vpack.c.b16 %v1946, %v1939
    %v2353 = vpack.c.b16 %v1947, %v1940
    %v2354 = vpack.c.b16 %v1948, %v1941
    %v2355 = vpack.c.b16 %v1949, %v1942
    %v2356 = vpack.c.b16 %v1950, %v1943
    %v2357 = vpack.c.b16 %v1958, %v1951
    %v2358 = vpack.c.b16 %v1959, %v1952
    %v2359 = vpack.c.b16 %v1960, %v1953
    %v2360 = vpack.c.b16 %v1961, %v1954
    %v2361 = vpack.c.b16 %v1962, %v1955
    %v2362 = vpack.c.b16 %v1963, %v1956
    %v2363 = vpack.c.b16 %v1964, %v1957
    %v2364 = vpack.c.b16 %v1972, %v1965
    %v2365 = vpack.c.b16 %v1973, %v1966
    %v2366 = vpack.c.b16 %v1974, %v1967
    %v2367 = vpack.c.b16 %v1975, %v1968
    %v2368 = vpack.c.b16 %v1976, %v1969
    %v2369 = vpack.c.b16 %v1977, %v1970
    %v2370 = vpack.c.b16 %v1978, %v1971
    %2763 = vmatprep.subr.bf16.mxu0 %v2029
    %2764 = vmatpush1.bf16.msra.mxu0 %v2028
    %2765 = vmatprep.subr.bf16.mxu0 %v2022
    %2766 = vmatpush1.bf16.msra.mxu0 %v2021
    %2767 = vmatprep.subr.bf16.mxu0 %v2015
    %2768 = vmatpush1.bf16.msra.mxu0 %v2014
    %2769 = vmatprep.subr.bf16.mxu0 %v2008
    %2770 = vmatpush1.bf16.msra.mxu0 %v2007
    %2771 = vmatprep.subr.bf16.mxu0 %v2001
    %2772 = vmatpush1.bf16.msra.mxu0 %v2000
    %2773 = vmatprep.subr.bf16.mxu0 %v1994
    %2774 = vmatpush1.bf16.msra.mxu0 %v1993
    %2775 = vmatprep.subr.bf16.mxu0 %v1987
    %2776 = vmatpush1.bf16.msra.mxu0 %v1986
    %2777 = vmatprep.subr.bf16.mxu0 %v1980
    %2778 = vmatpush1.bf16.msra.mxu0 %v1979
    %2779 = vmatprep.subr.bf16.mxu0 %v2085
    %2780 = vmatpush2.bf16.msra.mxu0 %v2084
    %2781 = vmatprep.subr.bf16.mxu0 %v2078
    %2782 = vmatpush2.bf16.msra.mxu0 %v2077
    %2783 = vmatprep.subr.bf16.mxu0 %v2071
    %2784 = vmatpush2.bf16.msra.mxu0 %v2070
    %2785 = vmatprep.subr.bf16.mxu0 %v2064
    %2786 = vmatpush2.bf16.msra.mxu0 %v2063
    %2787 = vmatprep.subr.bf16.mxu0 %v2057
    %2788 = vmatpush2.bf16.msra.mxu0 %v2056
    %2789 = vmatprep.subr.bf16.mxu0 %v2050
    %2790 = vmatpush2.bf16.msra.mxu0 %v2049
    %2791 = vmatprep.subr.bf16.mxu0 %v2043
    %2792 = vmatpush2.bf16.msra.mxu0 %v2042
    %2793 = vmatprep.subr.bf16.mxu0 %v2036
    %2794 = vmatpush2.bf16.msra.mxu0 %v2035
    %2795 = vmatprep.mubr.bf16.mxu0 %v293
    %2796 = vmatmul.mubr.bf16.gmra.mxu0 %v292
    %v2797 = vpop.f32.mrf.mxu0
    %v2798 = vadd.f32 0.0, %v2797
    %v2799 = vpop.f32.mrf.mxu0
    %v2800 = vadd.f32 0.0, %v2799
    %v2801 = vpop.f32.mrf.mxu0
    %v2802 = vpop.f32.mrf.mxu0
    %2803 = vdwg.mxu0
    %2804 = vmatprep.subr.bf16.mxu0 %v2141
    %2805 = vmatpush1.bf16.msra.mxu0 %v2140
    %2806 = vmatprep.subr.bf16.mxu0 %v2134
    %2807 = vmatpush1.bf16.msra.mxu0 %v2133
    %2808 = vmatprep.subr.bf16.mxu0 %v2127
    %2809 = vmatpush1.bf16.msra.mxu0 %v2126
    %2810 = vmatprep.subr.bf16.mxu0 %v2120
    %2811 = vmatpush1.bf16.msra.mxu0 %v2119
    %2812 = vmatprep.subr.bf16.mxu0 %v2113
    %2813 = vmatpush1.bf16.msra.mxu0 %v2112
    %2814 = vmatprep.subr.bf16.mxu0 %v2106
    %2815 = vmatpush1.bf16.msra.mxu0 %v2105
    %2816 = vmatprep.subr.bf16.mxu0 %v2099
    %2817 = vmatpush1.bf16.msra.mxu0 %v2098
    %2818 = vmatprep.subr.bf16.mxu0 %v2092
    %2819 = vmatpush1.bf16.msra.mxu0 %v2091
    %2820 = vmatprep.subr.bf16.mxu0 %v2197
    %2821 = vmatpush2.bf16.msra.mxu0 %v2196
    %2822 = vmatprep.subr.bf16.mxu0 %v2190
    %2823 = vmatpush2.bf16.msra.mxu0 %v2189
    %2824 = vmatprep.subr.bf16.mxu0 %v2183
    %2825 = vmatpush2.bf16.msra.mxu0 %v2182
    %2826 = vmatprep.subr.bf16.mxu0 %v2176
    %2827 = vmatpush2.bf16.msra.mxu0 %v2175
    %2828 = vmatprep.subr.bf16.mxu0 %v2169
    %2829 = vmatpush2.bf16.msra.mxu0 %v2168
    %2830 = vmatprep.subr.bf16.mxu0 %v2162
    %2831 = vmatpush2.bf16.msra.mxu0 %v2161
    %2832 = vmatprep.subr.bf16.mxu0 %v2155
    %2833 = vmatpush2.bf16.msra.mxu0 %v2154
    %2834 = vmatprep.subr.bf16.mxu0 %v2148
    %2835 = vmatpush2.bf16.msra.mxu0 %v2147
    %2836 = vmatprep.mubr.bf16.mxu0 %v295
    %2837 = vmatmul.mubr.bf16.gmra.mxu0 %v294
    %v2838 = vpop.f32.mrf.mxu0
    %v2839 = vadd.f32 %v2798, %v2838
    %v2840 = vpop.f32.mrf.mxu0
    %v2841 = vadd.f32 %v2800, %v2840
    %v2842 = vpop.f32.mrf.mxu0
    %v2843 = vpop.f32.mrf.mxu0
    %2844 = vdwg.mxu0
    %2845 = vmatprep.subr.bf16.mxu0 %v2253
    %2846 = vmatpush1.bf16.msra.mxu0 %v2252
    %2847 = vmatprep.subr.bf16.mxu0 %v2246
    %2848 = vmatpush1.bf16.msra.mxu0 %v2245
    %2849 = vmatprep.subr.bf16.mxu0 %v2239
    %2850 = vmatpush1.bf16.msra.mxu0 %v2238
    %2851 = vmatprep.subr.bf16.mxu0 %v2232
    %2852 = vmatpush1.bf16.msra.mxu0 %v2231
    %2853 = vmatprep.subr.bf16.mxu0 %v2225
    %2854 = vmatpush1.bf16.msra.mxu0 %v2224
    %2855 = vmatprep.subr.bf16.mxu0 %v2218
    %2856 = vmatpush1.bf16.msra.mxu0 %v2217
    %2857 = vmatprep.subr.bf16.mxu0 %v2211
    %2858 = vmatpush1.bf16.msra.mxu0 %v2210
    %2859 = vmatprep.subr.bf16.mxu0 %v2204
    %2860 = vmatpush1.bf16.msra.mxu0 %v2203
    %2861 = vmatprep.subr.bf16.mxu0 %v2309
    %2862 = vmatpush2.bf16.msra.mxu0 %v2308
    %2863 = vmatprep.subr.bf16.mxu0 %v2302
    %2864 = vmatpush2.bf16.msra.mxu0 %v2301
    %2865 = vmatprep.subr.bf16.mxu0 %v2295
    %2866 = vmatpush2.bf16.msra.mxu0 %v2294
    %2867 = vmatprep.subr.bf16.mxu0 %v2288
    %2868 = vmatpush2.bf16.msra.mxu0 %v2287
    %2869 = vmatprep.subr.bf16.mxu0 %v2281
    %2870 = vmatpush2.bf16.msra.mxu0 %v2280
    %2871 = vmatprep.subr.bf16.mxu0 %v2274
    %2872 = vmatpush2.bf16.msra.mxu0 %v2273
    %2873 = vmatprep.subr.bf16.mxu0 %v2267
    %2874 = vmatpush2.bf16.msra.mxu0 %v2266
    %2875 = vmatprep.subr.bf16.mxu0 %v2260
    %2876 = vmatpush2.bf16.msra.mxu0 %v2259
    %2877 = vmatprep.mubr.bf16.mxu0 %v297
    %2878 = vmatmul.mubr.bf16.gmra.mxu0 %v296
    %v2879 = vpop.f32.mrf.mxu0
    %v2880 = vadd.f32 %v2839, %v2879
    %v2881 = vpop.f32.mrf.mxu0
    %v2882 = vadd.f32 %v2841, %v2881
    %v2883 = vpop.f32.mrf.mxu0
    %v2884 = vpop.f32.mrf.mxu0
    %2885 = vdwg.mxu0
    %2886 = vmatprep.subr.bf16.mxu0 %v2365
    %2887 = vmatpush1.bf16.msra.mxu0 %v2364
    %2888 = vmatprep.subr.bf16.mxu0 %v2358
    %2889 = vmatpush1.bf16.msra.mxu0 %v2357
    %2890 = vmatprep.subr.bf16.mxu0 %v2351
    %2891 = vmatpush1.bf16.msra.mxu0 %v2350
    %2892 = vmatprep.subr.bf16.mxu0 %v2344
    %2893 = vmatpush1.bf16.msra.mxu0 %v2343
    %2894 = vmatprep.subr.bf16.mxu0 %v2337
    %2895 = vmatpush1.bf16.msra.mxu0 %v2336
    %2896 = vmatprep.subr.bf16.mxu0 %v2330
    %2897 = vmatpush1.bf16.msra.mxu0 %v2329
    %2898 = vmatprep.subr.bf16.mxu0 %v2323
    %2899 = vmatpush1.bf16.msra.mxu0 %v2322
    %2900 = vmatprep.subr.bf16.mxu0 %v2316
    %2901 = vmatpush1.bf16.msra.mxu0 %v2315
    %2902 = vmatprep.subr.bf16.mxu0 0
    %2903 = vmatpush2.bf16.msra.mxu0 0
    %2904 = vmatprep.subr.bf16.mxu0 0
    %2905 = vmatpush2.bf16.msra.mxu0 0
    %2906 = vmatprep.subr.bf16.mxu0 0
    %2907 = vmatpush2.bf16.msra.mxu0 0
    %2908 = vmatprep.subr.bf16.mxu0 0
    %2909 = vmatpush2.bf16.msra.mxu0 0
    %2910 = vmatprep.subr.bf16.mxu0 0
    %2911 = vmatpush2.bf16.msra.mxu0 0
    %2912 = vmatprep.subr.bf16.mxu0 0
    %2913 = vmatpush2.bf16.msra.mxu0 0
    %2914 = vmatprep.subr.bf16.mxu0 0
    %2915 = vmatpush2.bf16.msra.mxu0 0
    %2916 = vmatprep.subr.bf16.mxu0 0
    %2917 = vmatpush2.bf16.msra.mxu0 0
    %2918 = vmatprep.mubr.bf16.mxu0 0
    %2919 = vmatmul.mubr.bf16.gmra.mxu0 %v298
    %v2920 = vpop.f32.mrf.mxu0
    %v2921 = vadd.f32 %v2880, %v2920
    %v2922 = vpop.f32.mrf.mxu0
    %v2923 = vadd.f32 %v2882, %v2922
    %v2924 = vpop.f32.mrf.mxu0
    %v2925 = vpop.f32.mrf.mxu0
    %2926 = vdwg.mxu0
    %2927 = vmatprep.subr.bf16.mxu0 %v2031
    %2928 = vmatpush1.bf16.msra.mxu0 %v2030
    %2929 = vmatprep.subr.bf16.mxu0 %v2024
    %2930 = vmatpush1.bf16.msra.mxu0 %v2023
    %2931 = vmatprep.subr.bf16.mxu0 %v2017
    %2932 = vmatpush1.bf16.msra.mxu0 %v2016
    %2933 = vmatprep.subr.bf16.mxu0 %v2010
    %2934 = vmatpush1.bf16.msra.mxu0 %v2009
    %2935 = vmatprep.subr.bf16.mxu0 %v2003
    %2936 = vmatpush1.bf16.msra.mxu0 %v2002
    %2937 = vmatprep.subr.bf16.mxu0 %v1996
    %2938 = vmatpush1.bf16.msra.mxu0 %v1995
    %2939 = vmatprep.subr.bf16.mxu0 %v1989
    %2940 = vmatpush1.bf16.msra.mxu0 %v1988
    %2941 = vmatprep.subr.bf16.mxu0 %v1982
    %2942 = vmatpush1.bf16.msra.mxu0 %v1981
    %2943 = vmatprep.subr.bf16.mxu0 %v2087
    %2944 = vmatpush2.bf16.msra.mxu0 %v2086
    %2945 = vmatprep.subr.bf16.mxu0 %v2080
    %2946 = vmatpush2.bf16.msra.mxu0 %v2079
    %2947 = vmatprep.subr.bf16.mxu0 %v2073
    %2948 = vmatpush2.bf16.msra.mxu0 %v2072
    %2949 = vmatprep.subr.bf16.mxu0 %v2066
    %2950 = vmatpush2.bf16.msra.mxu0 %v2065
    %2951 = vmatprep.subr.bf16.mxu0 %v2059
    %2952 = vmatpush2.bf16.msra.mxu0 %v2058
    %2953 = vmatprep.subr.bf16.mxu0 %v2052
    %2954 = vmatpush2.bf16.msra.mxu0 %v2051
    %2955 = vmatprep.subr.bf16.mxu0 %v2045
    %2956 = vmatpush2.bf16.msra.mxu0 %v2044
    %2957 = vmatprep.subr.bf16.mxu0 %v2038
    %2958 = vmatpush2.bf16.msra.mxu0 %v2037
    %2959 = vmatprep.mubr.bf16.mxu0 %v293
    %2960 = vmatmul.mubr.bf16.gmra.mxu0 %v292
    %v2961 = vpop.f32.mrf.mxu0
    %v2962 = vadd.f32 0.0, %v2961
    %v2963 = vpop.f32.mrf.mxu0
    %v2964 = vadd.f32 0.0, %v2963
    %v2965 = vpop.f32.mrf.mxu0
    %v2966 = vpop.f32.mrf.mxu0
    %2967 = vdwg.mxu0
    %2968 = vmatprep.subr.bf16.mxu0 %v2143
    %2969 = vmatpush1.bf16.msra.mxu0 %v2142
    %2970 = vmatprep.subr.bf16.mxu0 %v2136
    %2971 = vmatpush1.bf16.msra.mxu0 %v2135
    %2972 = vmatprep.subr.bf16.mxu0 %v2129
    %2973 = vmatpush1.bf16.msra.mxu0 %v2128
    %2974 = vmatprep.subr.bf16.mxu0 %v2122
    %2975 = vmatpush1.bf16.msra.mxu0 %v2121
    %2976 = vmatprep.subr.bf16.mxu0 %v2115
    %2977 = vmatpush1.bf16.msra.mxu0 %v2114
    %2978 = vmatprep.subr.bf16.mxu0 %v2108
    %2979 = vmatpush1.bf16.msra.mxu0 %v2107
    %2980 = vmatprep.subr.bf16.mxu0 %v2101
    %2981 = vmatpush1.bf16.msra.mxu0 %v2100
    %2982 = vmatprep.subr.bf16.mxu0 %v2094
    %2983 = vmatpush1.bf16.msra.mxu0 %v2093
    %2984 = vmatprep.subr.bf16.mxu0 %v2199
    %2985 = vmatpush2.bf16.msra.mxu0 %v2198
    %2986 = vmatprep.subr.bf16.mxu0 %v2192
    %2987 = vmatpush2.bf16.msra.mxu0 %v2191
    %2988 = vmatprep.subr.bf16.mxu0 %v2185
    %2989 = vmatpush2.bf16.msra.mxu0 %v2184
    %2990 = vmatprep.subr.bf16.mxu0 %v2178
    %2991 = vmatpush2.bf16.msra.mxu0 %v2177
    %2992 = vmatprep.subr.bf16.mxu0 %v2171
    %2993 = vmatpush2.bf16.msra.mxu0 %v2170
    %2994 = vmatprep.subr.bf16.mxu0 %v2164
    %2995 = vmatpush2.bf16.msra.mxu0 %v2163
    %2996 = vmatprep.subr.bf16.mxu0 %v2157
    %2997 = vmatpush2.bf16.msra.mxu0 %v2156
    %2998 = vmatprep.subr.bf16.mxu0 %v2150
    %2999 = vmatpush2.bf16.msra.mxu0 %v2149
    %3000 = vmatprep.mubr.bf16.mxu0 %v295
    %3001 = vmatmul.mubr.bf16.gmra.mxu0 %v294
    %v3002 = vpop.f32.mrf.mxu0
    %v3003 = vadd.f32 %v2962, %v3002
    %v3004 = vpop.f32.mrf.mxu0
    %v3005 = vadd.f32 %v2964, %v3004
    %v3006 = vpop.f32.mrf.mxu0
    %v3007 = vpop.f32.mrf.mxu0
    %3008 = vdwg.mxu0
    %3009 = vmatprep.subr.bf16.mxu0 %v2255
    %3010 = vmatpush1.bf16.msra.mxu0 %v2254
    %3011 = vmatprep.subr.bf16.mxu0 %v2248
    %3012 = vmatpush1.bf16.msra.mxu0 %v2247
    %3013 = vmatprep.subr.bf16.mxu0 %v2241
    %3014 = vmatpush1.bf16.msra.mxu0 %v2240
    %3015 = vmatprep.subr.bf16.mxu0 %v2234
    %3016 = vmatpush1.bf16.msra.mxu0 %v2233
    %3017 = vmatprep.subr.bf16.mxu0 %v2227
    %3018 = vmatpush1.bf16.msra.mxu0 %v2226
    %3019 = vmatprep.subr.bf16.mxu0 %v2220
    %3020 = vmatpush1.bf16.msra.mxu0 %v2219
    %3021 = vmatprep.subr.bf16.mxu0 %v2213
    %3022 = vmatpush1.bf16.msra.mxu0 %v2212
    %3023 = vmatprep.subr.bf16.mxu0 %v2206
    %3024 = vmatpush1.bf16.msra.mxu0 %v2205
    %3025 = vmatprep.subr.bf16.mxu0 %v2311
    %3026 = vmatpush2.bf16.msra.mxu0 %v2310
    %3027 = vmatprep.subr.bf16.mxu0 %v2304
    %3028 = vmatpush2.bf16.msra.mxu0 %v2303
    %3029 = vmatprep.subr.bf16.mxu0 %v2297
    %3030 = vmatpush2.bf16.msra.mxu0 %v2296
    %3031 = vmatprep.subr.bf16.mxu0 %v2290
    %3032 = vmatpush2.bf16.msra.mxu0 %v2289
    %3033 = vmatprep.subr.bf16.mxu0 %v2283
    %3034 = vmatpush2.bf16.msra.mxu0 %v2282
    %3035 = vmatprep.subr.bf16.mxu0 %v2276
    %3036 = vmatpush2.bf16.msra.mxu0 %v2275
    %3037 = vmatprep.subr.bf16.mxu0 %v2269
    %3038 = vmatpush2.bf16.msra.mxu0 %v2268
    %3039 = vmatprep.subr.bf16.mxu0 %v2262
    %3040 = vmatpush2.bf16.msra.mxu0 %v2261
    %3041 = vmatprep.mubr.bf16.mxu0 %v297
    %3042 = vmatmul.mubr.bf16.gmra.mxu0 %v296
    %v3043 = vpop.f32.mrf.mxu0
    %v3044 = vadd.f32 %v3003, %v3043
    %v3045 = vpop.f32.mrf.mxu0
    %v3046 = vadd.f32 %v3005, %v3045
    %v3047 = vpop.f32.mrf.mxu0
    %v3048 = vpop.f32.mrf.mxu0
    %3049 = vdwg.mxu0
    %3050 = vmatprep.subr.bf16.mxu0 %v2367
    %3051 = vmatpush1.bf16.msra.mxu0 %v2366
    %3052 = vmatprep.subr.bf16.mxu0 %v2360
    %3053 = vmatpush1.bf16.msra.mxu0 %v2359
    %3054 = vmatprep.subr.bf16.mxu0 %v2353
    %3055 = vmatpush1.bf16.msra.mxu0 %v2352
    %3056 = vmatprep.subr.bf16.mxu0 %v2346
    %3057 = vmatpush1.bf16.msra.mxu0 %v2345
    %3058 = vmatprep.subr.bf16.mxu0 %v2339
    %3059 = vmatpush1.bf16.msra.mxu0 %v2338
    %3060 = vmatprep.subr.bf16.mxu0 %v2332
    %3061 = vmatpush1.bf16.msra.mxu0 %v2331
    %3062 = vmatprep.subr.bf16.mxu0 %v2325
    %3063 = vmatpush1.bf16.msra.mxu0 %v2324
    %3064 = vmatprep.subr.bf16.mxu0 %v2318
    %3065 = vmatpush1.bf16.msra.mxu0 %v2317
    %3066 = vmatprep.subr.bf16.mxu0 0
    %3067 = vmatpush2.bf16.msra.mxu0 0
    %3068 = vmatprep.subr.bf16.mxu0 0
    %3069 = vmatpush2.bf16.msra.mxu0 0
    %3070 = vmatprep.subr.bf16.mxu0 0
    %3071 = vmatpush2.bf16.msra.mxu0 0
    %3072 = vmatprep.subr.bf16.mxu0 0
    %3073 = vmatpush2.bf16.msra.mxu0 0
    %3074 = vmatprep.subr.bf16.mxu0 0
    %3075 = vmatpush2.bf16.msra.mxu0 0
    %3076 = vmatprep.subr.bf16.mxu0 0
    %3077 = vmatpush2.bf16.msra.mxu0 0
    %3078 = vmatprep.subr.bf16.mxu0 0
    %3079 = vmatpush2.bf16.msra.mxu0 0
    %3080 = vmatprep.subr.bf16.mxu0 0
    %3081 = vmatpush2.bf16.msra.mxu0 0
    %3082 = vmatprep.mubr.bf16.mxu0 0
    %3083 = vmatmul.mubr.bf16.gmra.mxu0 %v298
    %v3084 = vpop.f32.mrf.mxu0
    %v3085 = vadd.f32 %v3044, %v3084
    %v3086 = vpop.f32.mrf.mxu0
    %v3087 = vadd.f32 %v3046, %v3086
    %v3088 = vpop.f32.mrf.mxu0
    %v3089 = vpop.f32.mrf.mxu0
    %3090 = vdwg.mxu0
    %3091 = vmatprep.subr.bf16.mxu0 %v2033
    %3092 = vmatpush1.bf16.msra.mxu0 %v2032
    %3093 = vmatprep.subr.bf16.mxu0 %v2026
    %3094 = vmatpush1.bf16.msra.mxu0 %v2025
    %3095 = vmatprep.subr.bf16.mxu0 %v2019
    %3096 = vmatpush1.bf16.msra.mxu0 %v2018
    %3097 = vmatprep.subr.bf16.mxu0 %v2012
    %3098 = vmatpush1.bf16.msra.mxu0 %v2011
    %3099 = vmatprep.subr.bf16.mxu0 %v2005
    %3100 = vmatpush1.bf16.msra.mxu0 %v2004
    %3101 = vmatprep.subr.bf16.mxu0 %v1998
    %3102 = vmatpush1.bf16.msra.mxu0 %v1997
    %3103 = vmatprep.subr.bf16.mxu0 %v1991
    %3104 = vmatpush1.bf16.msra.mxu0 %v1990
    %3105 = vmatprep.subr.bf16.mxu0 %v1984
    %3106 = vmatpush1.bf16.msra.mxu0 %v1983
    %3107 = vmatprep.subr.bf16.mxu0 %v2089
    %3108 = vmatpush2.bf16.msra.mxu0 %v2088
    %3109 = vmatprep.subr.bf16.mxu0 %v2082
    %3110 = vmatpush2.bf16.msra.mxu0 %v2081
    %3111 = vmatprep.subr.bf16.mxu0 %v2075
    %3112 = vmatpush2.bf16.msra.mxu0 %v2074
    %3113 = vmatprep.subr.bf16.mxu0 %v2068
    %3114 = vmatpush2.bf16.msra.mxu0 %v2067
    %3115 = vmatprep.subr.bf16.mxu0 %v2061
    %3116 = vmatpush2.bf16.msra.mxu0 %v2060
    %3117 = vmatprep.subr.bf16.mxu0 %v2054
    %3118 = vmatpush2.bf16.msra.mxu0 %v2053
    %3119 = vmatprep.subr.bf16.mxu0 %v2047
    %3120 = vmatpush2.bf16.msra.mxu0 %v2046
    %3121 = vmatprep.subr.bf16.mxu0 %v2040
    %3122 = vmatpush2.bf16.msra.mxu0 %v2039
    %3123 = vmatprep.mubr.bf16.mxu0 %v293
    %3124 = vmatmul.mubr.bf16.gmra.mxu0 %v292
    %v3125 = vpop.f32.mrf.mxu0
    %v3126 = vadd.f32 0.0, %v3125
    %v3127 = vpop.f32.mrf.mxu0
    %v3128 = vadd.f32 0.0, %v3127
    %v3129 = vpop.f32.mrf.mxu0
    %v3130 = vpop.f32.mrf.mxu0
    %3131 = vdwg.mxu0
    %3132 = vmatprep.subr.bf16.mxu0 %v2145
    %3133 = vmatpush1.bf16.msra.mxu0 %v2144
    %3134 = vmatprep.subr.bf16.mxu0 %v2138
    %3135 = vmatpush1.bf16.msra.mxu0 %v2137
    %3136 = vmatprep.subr.bf16.mxu0 %v2131
    %3137 = vmatpush1.bf16.msra.mxu0 %v2130
    %3138 = vmatprep.subr.bf16.mxu0 %v2124
    %3139 = vmatpush1.bf16.msra.mxu0 %v2123
    %3140 = vmatprep.subr.bf16.mxu0 %v2117
    %3141 = vmatpush1.bf16.msra.mxu0 %v2116
    %3142 = vmatprep.subr.bf16.mxu0 %v2110
    %3143 = vmatpush1.bf16.msra.mxu0 %v2109
    %3144 = vmatprep.subr.bf16.mxu0 %v2103
    %3145 = vmatpush1.bf16.msra.mxu0 %v2102
    %3146 = vmatprep.subr.bf16.mxu0 %v2096
    %3147 = vmatpush1.bf16.msra.mxu0 %v2095
    %3148 = vmatprep.subr.bf16.mxu0 %v2201
    %3149 = vmatpush2.bf16.msra.mxu0 %v2200
    %3150 = vmatprep.subr.bf16.mxu0 %v2194
    %3151 = vmatpush2.bf16.msra.mxu0 %v2193
    %3152 = vmatprep.subr.bf16.mxu0 %v2187
    %3153 = vmatpush2.bf16.msra.mxu0 %v2186
    %3154 = vmatprep.subr.bf16.mxu0 %v2180
    %3155 = vmatpush2.bf16.msra.mxu0 %v2179
    %3156 = vmatprep.subr.bf16.mxu0 %v2173
    %3157 = vmatpush2.bf16.msra.mxu0 %v2172
    %3158 = vmatprep.subr.bf16.mxu0 %v2166
    %3159 = vmatpush2.bf16.msra.mxu0 %v2165
    %3160 = vmatprep.subr.bf16.mxu0 %v2159
    %3161 = vmatpush2.bf16.msra.mxu0 %v2158
    %3162 = vmatprep.subr.bf16.mxu0 %v2152
    %3163 = vmatpush2.bf16.msra.mxu0 %v2151
    %3164 = vmatprep.mubr.bf16.mxu0 %v295
    %3165 = vmatmul.mubr.bf16.gmra.mxu0 %v294
    %v3166 = vpop.f32.mrf.mxu0
    %v3167 = vadd.f32 %v3126, %v3166
    %v3168 = vpop.f32.mrf.mxu0
    %v3169 = vadd.f32 %v3128, %v3168
    %v3170 = vpop.f32.mrf.mxu0
    %v3171 = vpop.f32.mrf.mxu0
    %3172 = vdwg.mxu0
    %3173 = vmatprep.subr.bf16.mxu0 %v2257
    %3174 = vmatpush1.bf16.msra.mxu0 %v2256
    %3175 = vmatprep.subr.bf16.mxu0 %v2250
    %3176 = vmatpush1.bf16.msra.mxu0 %v2249
    %3177 = vmatprep.subr.bf16.mxu0 %v2243
    %3178 = vmatpush1.bf16.msra.mxu0 %v2242
    %3179 = vmatprep.subr.bf16.mxu0 %v2236
    %3180 = vmatpush1.bf16.msra.mxu0 %v2235
    %3181 = vmatprep.subr.bf16.mxu0 %v2229
    %3182 = vmatpush1.bf16.msra.mxu0 %v2228
    %3183 = vmatprep.subr.bf16.mxu0 %v2222
    %3184 = vmatpush1.bf16.msra.mxu0 %v2221
    %3185 = vmatprep.subr.bf16.mxu0 %v2215
    %3186 = vmatpush1.bf16.msra.mxu0 %v2214
    %3187 = vmatprep.subr.bf16.mxu0 %v2208
    %3188 = vmatpush1.bf16.msra.mxu0 %v2207
    %3189 = vmatprep.subr.bf16.mxu0 %v2313
    %3190 = vmatpush2.bf16.msra.mxu0 %v2312
    %3191 = vmatprep.subr.bf16.mxu0 %v2306
    %3192 = vmatpush2.bf16.msra.mxu0 %v2305
    %3193 = vmatprep.subr.bf16.mxu0 %v2299
    %3194 = vmatpush2.bf16.msra.mxu0 %v2298
    %3195 = vmatprep.subr.bf16.mxu0 %v2292
    %3196 = vmatpush2.bf16.msra.mxu0 %v2291
    %3197 = vmatprep.subr.bf16.mxu0 %v2285
    %3198 = vmatpush2.bf16.msra.mxu0 %v2284
    %3199 = vmatprep.subr.bf16.mxu0 %v2278
    %3200 = vmatpush2.bf16.msra.mxu0 %v2277
    %3201 = vmatprep.subr.bf16.mxu0 %v2271
    %3202 = vmatpush2.bf16.msra.mxu0 %v2270
    %3203 = vmatprep.subr.bf16.mxu0 %v2264
    %3204 = vmatpush2.bf16.msra.mxu0 %v2263
    %3205 = vmatprep.mubr.bf16.mxu0 %v297
    %3206 = vmatmul.mubr.bf16.gmra.mxu0 %v296
    %v3207 = vpop.f32.mrf.mxu0
    %v3208 = vadd.f32 %v3167, %v3207
    %v3209 = vpop.f32.mrf.mxu0
    %v3210 = vadd.f32 %v3169, %v3209
    %v3211 = vpop.f32.mrf.mxu0
    %v3212 = vpop.f32.mrf.mxu0
    %3213 = vdwg.mxu0
    %3214 = vmatprep.subr.bf16.mxu0 %v2369
    %3215 = vmatpush1.bf16.msra.mxu0 %v2368
    %3216 = vmatprep.subr.bf16.mxu0 %v2362
    %3217 = vmatpush1.bf16.msra.mxu0 %v2361
    %3218 = vmatprep.subr.bf16.mxu0 %v2355
    %3219 = vmatpush1.bf16.msra.mxu0 %v2354
    %3220 = vmatprep.subr.bf16.mxu0 %v2348
    %3221 = vmatpush1.bf16.msra.mxu0 %v2347
    %3222 = vmatprep.subr.bf16.mxu0 %v2341
    %3223 = vmatpush1.bf16.msra.mxu0 %v2340
    %3224 = vmatprep.subr.bf16.mxu0 %v2334
    %3225 = vmatpush1.bf16.msra.mxu0 %v2333
    %3226 = vmatprep.subr.bf16.mxu0 %v2327
    %3227 = vmatpush1.bf16.msra.mxu0 %v2326
    %3228 = vmatprep.subr.bf16.mxu0 %v2320
    %3229 = vmatpush1.bf16.msra.mxu0 %v2319
    %3230 = vmatprep.subr.bf16.mxu0 0
    %3231 = vmatpush2.bf16.msra.mxu0 0
    %3232 = vmatprep.subr.bf16.mxu0 0
    %3233 = vmatpush2.bf16.msra.mxu0 0
    %3234 = vmatprep.subr.bf16.mxu0 0
    %3235 = vmatpush2.bf16.msra.mxu0 0
    %3236 = vmatprep.subr.bf16.mxu0 0
    %3237 = vmatpush2.bf16.msra.mxu0 0
    %3238 = vmatprep.subr.bf16.mxu0 0
    %3239 = vmatpush2.bf16.msra.mxu0 0
    %3240 = vmatprep.subr.bf16.mxu0 0
    %3241 = vmatpush2.bf16.msra.mxu0 0
    %3242 = vmatprep.subr.bf16.mxu0 0
    %3243 = vmatpush2.bf16.msra.mxu0 0
    %3244 = vmatprep.subr.bf16.mxu0 0
    %3245 = vmatpush2.bf16.msra.mxu0 0
    %3246 = vmatprep.mubr.bf16.mxu0 0
    %3247 = vmatmul.mubr.bf16.gmra.mxu0 %v298
    %v3248 = vpop.f32.mrf.mxu0
    %v3249 = vadd.f32 %v3208, %v3248
    %v3250 = vpop.f32.mrf.mxu0
    %v3251 = vadd.f32 %v3210, %v3250
    %v3252 = vpop.f32.mrf.mxu0
    %v3253 = vpop.f32.mrf.mxu0
    %3254 = vdwg.mxu0
    %3255 = vmatprep.subr.bf16.mxu0 0
    %3256 = vmatpush1.bf16.msra.mxu0 %v2034
    %3257 = vmatprep.subr.bf16.mxu0 0
    %3258 = vmatpush1.bf16.msra.mxu0 %v2027
    %3259 = vmatprep.subr.bf16.mxu0 0
    %3260 = vmatpush1.bf16.msra.mxu0 %v2020
    %3261 = vmatprep.subr.bf16.mxu0 0
    %3262 = vmatpush1.bf16.msra.mxu0 %v2013
    %3263 = vmatprep.subr.bf16.mxu0 0
    %3264 = vmatpush1.bf16.msra.mxu0 %v2006
    %3265 = vmatprep.subr.bf16.mxu0 0
    %3266 = vmatpush1.bf16.msra.mxu0 %v1999
    %3267 = vmatprep.subr.bf16.mxu0 0
    %3268 = vmatpush1.bf16.msra.mxu0 %v1992
    %3269 = vmatprep.subr.bf16.mxu0 0
    %3270 = vmatpush1.bf16.msra.mxu0 %v1985
    %3271 = vmatprep.subr.bf16.mxu0 0
    %3272 = vmatpush2.bf16.msra.mxu0 %v2090
    %3273 = vmatprep.subr.bf16.mxu0 0
    %3274 = vmatpush2.bf16.msra.mxu0 %v2083
    %3275 = vmatprep.subr.bf16.mxu0 0
    %3276 = vmatpush2.bf16.msra.mxu0 %v2076
    %3277 = vmatprep.subr.bf16.mxu0 0
    %3278 = vmatpush2.bf16.msra.mxu0 %v2069
    %3279 = vmatprep.subr.bf16.mxu0 0
    %3280 = vmatpush2.bf16.msra.mxu0 %v2062
    %3281 = vmatprep.subr.bf16.mxu0 0
    %3282 = vmatpush2.bf16.msra.mxu0 %v2055
    %3283 = vmatprep.subr.bf16.mxu0 0
    %3284 = vmatpush2.bf16.msra.mxu0 %v2048
    %3285 = vmatprep.subr.bf16.mxu0 0
    %3286 = vmatpush2.bf16.msra.mxu0 %v2041
    %3287 = vmatprep.mubr.bf16.mxu0 %v293
    %3288 = vmatmul.mubr.bf16.gmra.mxu0 %v292
    %v3289 = vpop.f32.mrf.mxu0
    %v3290 = vadd.f32 0.0, %v3289
    %v3291 = vpop.f32.mrf.mxu0
    %v3292 = vpop.f32.mrf.mxu0
    %v3293 = vpop.f32.mrf.mxu0
    %3294 = vdwg.mxu0
    %3295 = vmatprep.subr.bf16.mxu0 0
    %3296 = vmatpush1.bf16.msra.mxu0 %v2146
    %3297 = vmatprep.subr.bf16.mxu0 0
    %3298 = vmatpush1.bf16.msra.mxu0 %v2139
    %3299 = vmatprep.subr.bf16.mxu0 0
    %3300 = vmatpush1.bf16.msra.mxu0 %v2132
    %3301 = vmatprep.subr.bf16.mxu0 0
    %3302 = vmatpush1.bf16.msra.mxu0 %v2125
    %3303 = vmatprep.subr.bf16.mxu0 0
    %3304 = vmatpush1.bf16.msra.mxu0 %v2118
    %3305 = vmatprep.subr.bf16.mxu0 0
    %3306 = vmatpush1.bf16.msra.mxu0 %v2111
    %3307 = vmatprep.subr.bf16.mxu0 0
    %3308 = vmatpush1.bf16.msra.mxu0 %v2104
    %3309 = vmatprep.subr.bf16.mxu0 0
    %3310 = vmatpush1.bf16.msra.mxu0 %v2097
    %3311 = vmatprep.subr.bf16.mxu0 0
    %3312 = vmatpush2.bf16.msra.mxu0 %v2202
    %3313 = vmatprep.subr.bf16.mxu0 0
    %3314 = vmatpush2.bf16.msra.mxu0 %v2195
    %3315 = vmatprep.subr.bf16.mxu0 0
    %3316 = vmatpush2.bf16.msra.mxu0 %v2188
    %3317 = vmatprep.subr.bf16.mxu0 0
    %3318 = vmatpush2.bf16.msra.mxu0 %v2181
    %3319 = vmatprep.subr.bf16.mxu0 0
    %3320 = vmatpush2.bf16.msra.mxu0 %v2174
    %3321 = vmatprep.subr.bf16.mxu0 0
    %3322 = vmatpush2.bf16.msra.mxu0 %v2167
    %3323 = vmatprep.subr.bf16.mxu0 0
    %3324 = vmatpush2.bf16.msra.mxu0 %v2160
    %3325 = vmatprep.subr.bf16.mxu0 0
    %3326 = vmatpush2.bf16.msra.mxu0 %v2153
    %3327 = vmatprep.mubr.bf16.mxu0 %v295
    %3328 = vmatmul.mubr.bf16.gmra.mxu0 %v294
    %v3329 = vpop.f32.mrf.mxu0
    %v3330 = vadd.f32 %v3290, %v3329
    %v3331 = vpop.f32.mrf.mxu0
    %v3332 = vpop.f32.mrf.mxu0
    %v3333 = vpop.f32.mrf.mxu0
    %3334 = vdwg.mxu0
    %3335 = vmatprep.subr.bf16.mxu0 0
    %3336 = vmatpush1.bf16.msra.mxu0 %v2258
    %3337 = vmatprep.subr.bf16.mxu0 0
    %3338 = vmatpush1.bf16.msra.mxu0 %v2251
    %3339 = vmatprep.subr.bf16.mxu0 0
    %3340 = vmatpush1.bf16.msra.mxu0 %v2244
    %3341 = vmatprep.subr.bf16.mxu0 0
    %3342 = vmatpush1.bf16.msra.mxu0 %v2237
    %3343 = vmatprep.subr.bf16.mxu0 0
    %3344 = vmatpush1.bf16.msra.mxu0 %v2230
    %3345 = vmatprep.subr.bf16.mxu0 0
    %3346 = vmatpush1.bf16.msra.mxu0 %v2223
    %3347 = vmatprep.subr.bf16.mxu0 0
    %3348 = vmatpush1.bf16.msra.mxu0 %v2216
    %3349 = vmatprep.subr.bf16.mxu0 0
    %3350 = vmatpush1.bf16.msra.mxu0 %v2209
    %3351 = vmatprep.subr.bf16.mxu0 0
    %3352 = vmatpush2.bf16.msra.mxu0 %v2314
    %3353 = vmatprep.subr.bf16.mxu0 0
    %3354 = vmatpush2.bf16.msra.mxu0 %v2307
    %3355 = vmatprep.subr.bf16.mxu0 0
    %3356 = vmatpush2.bf16.msra.mxu0 %v2300
    %3357 = vmatprep.subr.bf16.mxu0 0
    %3358 = vmatpush2.bf16.msra.mxu0 %v2293
    %3359 = vmatprep.subr.bf16.mxu0 0
    %3360 = vmatpush2.bf16.msra.mxu0 %v2286
    %3361 = vmatprep.subr.bf16.mxu0 0
    %3362 = vmatpush2.bf16.msra.mxu0 %v2279
    %3363 = vmatprep.subr.bf16.mxu0 0
    %3364 = vmatpush2.bf16.msra.mxu0 %v2272
    %3365 = vmatprep.subr.bf16.mxu0 0
    %3366 = vmatpush2.bf16.msra.mxu0 %v2265
    %3367 = vmatprep.mubr.bf16.mxu0 %v297
    %3368 = vmatmul.mubr.bf16.gmra.mxu0 %v296
    %v3369 = vpop.f32.mrf.mxu0
    %v3370 = vadd.f32 %v3330, %v3369
    %v3371 = vpop.f32.mrf.mxu0
    %v3372 = vpop.f32.mrf.mxu0
    %v3373 = vpop.f32.mrf.mxu0
    %3374 = vdwg.mxu0
    %3375 = vmatprep.subr.bf16.mxu0 0
    %3376 = vmatpush1.bf16.msra.mxu0 %v2370
    %3377 = vmatprep.subr.bf16.mxu0 0
    %3378 = vmatpush1.bf16.msra.mxu0 %v2363
    %3379 = vmatprep.subr.bf16.mxu0 0
    %3380 = vmatpush1.bf16.msra.mxu0 %v2356
    %3381 = vmatprep.subr.bf16.mxu0 0
    %3382 = vmatpush1.bf16.msra.mxu0 %v2349
    %3383 = vmatprep.subr.bf16.mxu0 0
    %3384 = vmatpush1.bf16.msra.mxu0 %v2342
    %3385 = vmatprep.subr.bf16.mxu0 0
    %3386 = vmatpush1.bf16.msra.mxu0 %v2335
    %3387 = vmatprep.subr.bf16.mxu0 0
    %3388 = vmatpush1.bf16.msra.mxu0 %v2328
    %3389 = vmatprep.subr.bf16.mxu0 0
    %3390 = vmatpush1.bf16.msra.mxu0 %v2321
    %3391 = vmatprep.subr.bf16.mxu0 0
    %3392 = vmatpush2.bf16.msra.mxu0 0
    %3393 = vmatprep.subr.bf16.mxu0 0
    %3394 = vmatpush2.bf16.msra.mxu0 0
    %3395 = vmatprep.subr.bf16.mxu0 0
    %3396 = vmatpush2.bf16.msra.mxu0 0
    %3397 = vmatprep.subr.bf16.mxu0 0
    %3398 = vmatpush2.bf16.msra.mxu0 0
    %3399 = vmatprep.subr.bf16.mxu0 0
    %3400 = vmatpush2.bf16.msra.mxu0 0
    %3401 = vmatprep.subr.bf16.mxu0 0
    %3402 = vmatpush2.bf16.msra.mxu0 0
    %3403 = vmatprep.subr.bf16.mxu0 0
    %3404 = vmatpush2.bf16.msra.mxu0 0
    %3405 = vmatprep.subr.bf16.mxu0 0
    %3406 = vmatpush2.bf16.msra.mxu0 0
    %3407 = vmatprep.mubr.bf16.mxu0 0
    %3408 = vmatmul.mubr.bf16.gmra.mxu0 %v298
    %v3409 = vpop.f32.mrf.mxu0
    %v3410 = vadd.f32 %v3370, %v3409
    %v3411 = vpop.f32.mrf.mxu0
    %v3412 = vpop.f32.mrf.mxu0
    %v3413 = vpop.f32.mrf.mxu0
    %3414 = vdwg.mxu0
    %v3415 = vmax.f32 %v2921, 0.0
    %v3416 = vmax.f32 %v2923, 0.0
    %v3417 = vmax.f32 %v3085, 0.0
    %v3418 = vmax.f32 %v3087, 0.0
    %v3419 = vmax.f32 %v3249, 0.0
    %v3420 = vmax.f32 %v3251, 0.0
    %v3421 = vmax.f32 %v3410, 0.0
    %v3422 = vpack.c.bf16 %v3415, %v3415
    %v3423 = vpack.c.bf16 %v3416, %v3416
    %v3424 = vpack.c.bf16 %v3417, %v3417
    %v3425 = vpack.c.bf16 %v3418, %v3418
    %v3426 = vpack.c.bf16 %v3419, %v3419
    %v3427 = vpack.c.bf16 %v3420, %v3420
    %v3428 = vpack.c.bf16 %v3421, %v3421
    %v3429 = vld [vmem:[#allocation2 + $0xcb0] sm:$0xf]
    %v3430 = vld [vmem:[#allocation2 + $0xccc] sm:$0xf]
    %v3431 = vld [vmem:[#allocation2 + $0xce8] sm:$0xf]
    %v3432 = vld [vmem:[#allocation2 + $0xd04] sm:$0xf]
    %v3433 = vld [vmem:[#allocation2 + $0xd20] sm:$0xf]
    %v3434 = vld [vmem:[#allocation2 + $0xd3c] sm:$0xf]
    %v3435 = vld [vmem:[#allocation2 + $0xd58] sm:$0xf]
    %v3436 = vld [vmem:[#allocation2 + $0xd74] sm:$0xf]
    %v3437 = vld [vmem:[#allocation2 + $0xd90] sm:$0xf]
    %v3438 = vld [vmem:[#allocation2 + $0xdac] sm:$0xf]
    %v3439 = vld [vmem:[#allocation2 + $0xdc8] sm:$0xf]
    %v3440 = vld [vmem:[#allocation2 + $0xde4] sm:$0xf]
    %v3441 = vld [vmem:[#allocation2 + $0xe00] sm:$0xf]
    %v3442 = vld [vmem:[#allocation2 + $0xe1c] sm:$0xf]
    %v3443 = vld [vmem:[#allocation2 + $0xe38] sm:$0xf]
    %v3444 = vld [vmem:[#allocation2 + $0xe54] sm:$0xf]
    %v3445 = vld [vmem:[#allocation2 + $0xe70] sm:$0xf]
    %v3446 = vld [vmem:[#allocation2 + $0xe8c] sm:$0xf]
    %v3447 = vld [vmem:[#allocation2 + $0xea8] sm:$0xf]
    %v3448 = vld [vmem:[#allocation2 + $0xec4] sm:$0xf]
    %v3449 = vld [vmem:[#allocation2 + $0xee0] sm:$0xf]
    %v3450 = vld [vmem:[#allocation2 + $0xefc] sm:$0xf]
    %v3451 = vld [vmem:[#allocation2 + $0xf18] sm:$0xf]
    %v3452 = vld [vmem:[#allocation2 + $0xf34] sm:$0xf]
    %v3453 = vld [vmem:[#allocation2 + $0xf50] sm:$0xf]
    %v3454 = vld [vmem:[#allocation2 + $0xf6c] sm:$0xf]
    %v3455 = vld [vmem:[#allocation2 + $0xf88] sm:$0xf]
    %v3456 = vld [vmem:[#allocation2 + $0xfa4] sm:$0xf]
    %v3457 = vld [vmem:[#allocation2 + $0xfc0] sm:$0xf]
    %v3458 = vld [vmem:[#allocation2 + $0xfdc] sm:$0xf]
    %v3459 = vld [vmem:[#allocation2 + $0xff8] sm:$0xf]
    %v3460 = vld [vmem:[#allocation2 + $0x1014] sm:$0xf]
    %v3461 = vld [vmem:[#allocation2 + $0x1030] sm:$0xf]
    %v3462 = vld [vmem:[#allocation2 + $0x104c] sm:$0xf]
    %v3463 = vld [vmem:[#allocation2 + $0x1068] sm:$0xf]
    %v3464 = vld [vmem:[#allocation2 + $0x1084] sm:$0xf]
    %v3465 = vld [vmem:[#allocation2 + $0x10a0] sm:$0xf]
    %v3466 = vld [vmem:[#allocation2 + $0x10bc] sm:$0xf]
    %v3467 = vld [vmem:[#allocation2 + $0x10d8] sm:$0xf]
    %v3468 = vld [vmem:[#allocation2 + $0x10f4] sm:$0xf]
    %v3469 = vld [vmem:[#allocation2 + $0x1110] sm:$0xf]
    %v3470 = vld [vmem:[#allocation2 + $0x112c] sm:$0xf]
    %v3471 = vld [vmem:[#allocation2 + $0x1148] sm:$0xf]
    %v3472 = vld [vmem:[#allocation2 + $0x1164] sm:$0xf]
    %v3473 = vld [vmem:[#allocation2 + $0x1180] sm:$0xf]
    %v3474 = vld [vmem:[#allocation2 + $0x119c] sm:$0xf]
    %v3475 = vld [vmem:[#allocation2 + $0x11b8] sm:$0xf]
    %v3476 = vld [vmem:[#allocation2 + $0x11d4] sm:$0xf]
    %v3477 = vld [vmem:[#allocation2 + $0x11f0] sm:$0xf]
    %v3478 = vld [vmem:[#allocation2 + $0x120c] sm:$0xf]
    %v3479 = vld [vmem:[#allocation2 + $0x1228] sm:$0xf]
    %v3480 = vld [vmem:[#allocation2 + $0x1244] sm:$0xf]
    %v3481 = vld [vmem:[#allocation2 + $0x1260] sm:$0xf]
    %v3482 = vld [vmem:[#allocation2 + $0x127c] sm:$0xf]
    %v3483 = vld [vmem:[#allocation2 + $0x1298] sm:$0xf]
    %v3484 = vld [vmem:[#allocation2 + $0x12b4] sm:$0xf]
    %v3485 = vld [vmem:[#allocation2 + $0x12d0] sm:$0xf]
    %v3486 = vld [vmem:[#allocation2 + $0x12ec] sm:$0xf]
    %v3487 = vld [vmem:[#allocation2 + $0x1308] sm:$0xf]
    %v3488 = vld [vmem:[#allocation2 + $0x1324] sm:$0xf]
    %v3489 = vld [vmem:[#allocation2 + $0x1340] sm:$0xf]
    %v3490 = vld [vmem:[#allocation2 + $0x135c] sm:$0xf]
    %v3491 = vld [vmem:[#allocation2 + $0x1378] sm:$0xf]
    %v3492 = vld [vmem:[#allocation2 + $0x1394] sm:$0xf]
    %v3493 = vld [vmem:[#allocation2 + $0x13b0] sm:$0xf]
    %v3494 = vld [vmem:[#allocation2 + $0x13cc] sm:$0xf]
    %v3495 = vld [vmem:[#allocation2 + $0x13e8] sm:$0xf]
    %v3496 = vld [vmem:[#allocation2 + $0x1404] sm:$0xf]
    %v3497 = vld [vmem:[#allocation2 + $0x1420] sm:$0xf]
    %v3498 = vld [vmem:[#allocation2 + $0x143c] sm:$0xf]
    %v3499 = vld [vmem:[#allocation2 + $0x1458] sm:$0xf]
    %v3500 = vld [vmem:[#allocation2 + $0x1474] sm:$0xf]
    %v3501 = vld [vmem:[#allocation2 + $0x1490] sm:$0xf]
    %v3502 = vld [vmem:[#allocation2 + $0x14ac] sm:$0xf]
    %v3503 = vld [vmem:[#allocation2 + $0x14c8] sm:$0xf]
    %v3504 = vld [vmem:[#allocation2 + $0x14e4] sm:$0xf]
    %v3505 = vld [vmem:[#allocation2 + $0x1500] sm:$0xf]
    %v3506 = vld [vmem:[#allocation2 + $0x151c] sm:$0xf]
    %v3507 = vld [vmem:[#allocation2 + $0x1538] sm:$0xf]
    %v3508 = vld [vmem:[#allocation2 + $0x1554] sm:$0xf]
    %v3509 = vld [vmem:[#allocation2 + $0x1570] sm:$0xf]
    %v3510 = vld [vmem:[#allocation2 + $0x158c] sm:$0xf]
    %v3511 = vld [vmem:[#allocation2 + $0x15a8] sm:$0xf]
    %v3512 = vld [vmem:[#allocation2 + $0x15c4] sm:$0xf]
    %v3513 = vld [vmem:[#allocation2 + $0x15e0] sm:$0xf]
    %v3514 = vld [vmem:[#allocation2 + $0x15fc] sm:$0xf]
    %v3515 = vld [vmem:[#allocation2 + $0x1618] sm:$0xf]
    %v3516 = vld [vmem:[#allocation2 + $0x1634] sm:$0xf]
    %v3517 = vld [vmem:[#allocation2 + $0x1650] sm:$0xf]
    %v3518 = vld [vmem:[#allocation2 + $0x166c] sm:$0xf]
    %v3519 = vld [vmem:[#allocation2 + $0x1688] sm:$0xf]
    %v3520 = vld [vmem:[#allocation2 + $0x16a4] sm:$0xf]
    %v3521 = vld [vmem:[#allocation2 + $0x16c0] sm:$0xf]
    %v3522 = vld [vmem:[#allocation2 + $0x16dc] sm:$0xf]
    %v3523 = vld [vmem:[#allocation2 + $0x16f8] sm:$0xf]
    %v3524 = vld [vmem:[#allocation2 + $0x1714] sm:$0xf]
    %v3525 = vld [vmem:[#allocation2 + $0x1730] sm:$0xf]
    %v3526 = vld [vmem:[#allocation2 + $0x174c] sm:$0xf]
    %v3527 = vld [vmem:[#allocation2 + $0x1768] sm:$0xf]
    %v3528 = vld [vmem:[#allocation2 + $0x1784] sm:$0xf]
    %v3529 = vld [vmem:[#allocation2 + $0x17a0] sm:$0xf]
    %v3530 = vld [vmem:[#allocation2 + $0x17bc] sm:$0xf]
    %v3531 = vld [vmem:[#allocation2 + $0x17d8] sm:$0xf]
    %v3532 = vld [vmem:[#allocation2 + $0x17f4] sm:$0xf]
    %v3533 = vld [vmem:[#allocation2 + $0x1810] sm:$0xf]
    %v3534 = vld [vmem:[#allocation2 + $0x182c] sm:$0xf]
    %v3535 = vld [vmem:[#allocation2 + $0x1848] sm:$0xf]
    %v3536 = vld [vmem:[#allocation2 + $0x1864] sm:$0xf]
    %v3537 = vld [vmem:[#allocation2 + $0x1880] sm:$0xf]
    %v3538 = vld [vmem:[#allocation2 + $0x189c] sm:$0xf]
    %v3539 = vld [vmem:[#allocation2 + $0x18b8] sm:$0xf]
    %v3540 = vld [vmem:[#allocation2 + $0x18d4] sm:$0xf]
    %v3653 = vunpack.c.l.b16 %v3429
    %v3654 = vunpack.c.l.b16 %v3430
    %v3655 = vunpack.c.l.b16 %v3431
    %v3656 = vunpack.c.l.b16 %v3432
    %v3657 = vunpack.c.l.b16 %v3433
    %v3658 = vunpack.c.l.b16 %v3434
    %v3659 = vunpack.c.l.b16 %v3435
    %v3660 = vunpack.c.l.b16 %v3436
    %v3661 = vunpack.c.l.b16 %v3437
    %v3662 = vunpack.c.l.b16 %v3438
    %v3663 = vunpack.c.l.b16 %v3439
    %v3664 = vunpack.c.l.b16 %v3440
    %v3665 = vunpack.c.l.b16 %v3441
    %v3666 = vunpack.c.l.b16 %v3442
    %v3667 = vunpack.c.l.b16 %v3443
    %v3668 = vunpack.c.l.b16 %v3444
    %v3669 = vunpack.c.l.b16 %v3445
    %v3670 = vunpack.c.l.b16 %v3446
    %v3671 = vunpack.c.l.b16 %v3447
    %v3672 = vunpack.c.l.b16 %v3448
    %v3673 = vunpack.c.l.b16 %v3449
    %v3674 = vunpack.c.l.b16 %v3450
    %v3675 = vunpack.c.l.b16 %v3451
    %v3676 = vunpack.c.l.b16 %v3452
    %v3677 = vunpack.c.l.b16 %v3453
    %v3678 = vunpack.c.l.b16 %v3454
    %v3679 = vunpack.c.l.b16 %v3455
    %v3680 = vunpack.c.l.b16 %v3456
    %v3681 = vunpack.c.l.b16 %v3457
    %v3682 = vunpack.c.l.b16 %v3458
    %v3683 = vunpack.c.l.b16 %v3459
    %v3684 = vunpack.c.l.b16 %v3460
    %v3685 = vunpack.c.l.b16 %v3461
    %v3686 = vunpack.c.l.b16 %v3462
    %v3687 = vunpack.c.l.b16 %v3463
    %v3688 = vunpack.c.l.b16 %v3464
    %v3689 = vunpack.c.l.b16 %v3465
    %v3690 = vunpack.c.l.b16 %v3466
    %v3691 = vunpack.c.l.b16 %v3467
    %v3692 = vunpack.c.l.b16 %v3468
    %v3693 = vunpack.c.l.b16 %v3469
    %v3694 = vunpack.c.l.b16 %v3470
    %v3695 = vunpack.c.l.b16 %v3471
    %v3696 = vunpack.c.l.b16 %v3472
    %v3697 = vunpack.c.l.b16 %v3473
    %v3698 = vunpack.c.l.b16 %v3474
    %v3699 = vunpack.c.l.b16 %v3475
    %v3700 = vunpack.c.l.b16 %v3476
    %v3701 = vunpack.c.l.b16 %v3477
    %v3702 = vunpack.c.l.b16 %v3478
    %v3703 = vunpack.c.l.b16 %v3479
    %v3704 = vunpack.c.l.b16 %v3480
    %v3705 = vunpack.c.l.b16 %v3481
    %v3706 = vunpack.c.l.b16 %v3482
    %v3707 = vunpack.c.l.b16 %v3483
    %v3708 = vunpack.c.l.b16 %v3484
    %v3709 = vunpack.c.l.b16 %v3485
    %v3710 = vunpack.c.l.b16 %v3486
    %v3711 = vunpack.c.l.b16 %v3487
    %v3712 = vunpack.c.l.b16 %v3488
    %v3713 = vunpack.c.l.b16 %v3489
    %v3714 = vunpack.c.l.b16 %v3490
    %v3715 = vunpack.c.l.b16 %v3491
    %v3716 = vunpack.c.l.b16 %v3492
    %v3717 = vunpack.c.l.b16 %v3493
    %v3718 = vunpack.c.l.b16 %v3494
    %v3719 = vunpack.c.l.b16 %v3495
    %v3720 = vunpack.c.l.b16 %v3496
    %v3721 = vunpack.c.l.b16 %v3497
    %v3722 = vunpack.c.l.b16 %v3498
    %v3723 = vunpack.c.l.b16 %v3499
    %v3724 = vunpack.c.l.b16 %v3500
    %v3725 = vunpack.c.l.b16 %v3501
    %v3726 = vunpack.c.l.b16 %v3502
    %v3727 = vunpack.c.l.b16 %v3503
    %v3728 = vunpack.c.l.b16 %v3504
    %v3729 = vunpack.c.l.b16 %v3505
    %v3730 = vunpack.c.l.b16 %v3506
    %v3731 = vunpack.c.l.b16 %v3507
    %v3732 = vunpack.c.l.b16 %v3508
    %v3733 = vunpack.c.l.b16 %v3509
    %v3734 = vunpack.c.l.b16 %v3510
    %v3735 = vunpack.c.l.b16 %v3511
    %v3736 = vunpack.c.l.b16 %v3512
    %v3737 = vunpack.c.l.b16 %v3513
    %v3738 = vunpack.c.l.b16 %v3514
    %v3739 = vunpack.c.l.b16 %v3515
    %v3740 = vunpack.c.l.b16 %v3516
    %v3741 = vunpack.c.l.b16 %v3517
    %v3742 = vunpack.c.l.b16 %v3518
    %v3743 = vunpack.c.l.b16 %v3519
    %v3744 = vunpack.c.l.b16 %v3520
    %v3745 = vunpack.c.l.b16 %v3521
    %v3746 = vunpack.c.l.b16 %v3522
    %v3747 = vunpack.c.l.b16 %v3523
    %v3748 = vunpack.c.l.b16 %v3524
    %v3749 = vunpack.c.l.b16 %v3525
    %v3750 = vunpack.c.l.b16 %v3526
    %v3751 = vunpack.c.l.b16 %v3527
    %v3752 = vunpack.c.l.b16 %v3528
    %v3753 = vunpack.c.l.b16 %v3529
    %v3754 = vunpack.c.l.b16 %v3530
    %v3755 = vunpack.c.l.b16 %v3531
    %v3756 = vunpack.c.l.b16 %v3532
    %v3757 = vunpack.c.l.b16 %v3533
    %v3758 = vunpack.c.l.b16 %v3534
    %v3759 = vunpack.c.l.b16 %v3535
    %v3760 = vunpack.c.l.b16 %v3536
    %v3761 = vunpack.c.l.b16 %v3537
    %v3762 = vunpack.c.l.b16 %v3538
    %v3763 = vunpack.c.l.b16 %v3539
    %v3764 = vunpack.c.l.b16 %v3540
    %v3765 = vpack.c.b16 %v3654, %v3653
    %v3766 = vpack.c.b16 %v3656, %v3655
    %v3767 = vpack.c.b16 %v3658, %v3657
    %v3768 = vpack.c.b16 %v3660, %v3659
    %v3769 = vpack.c.b16 %v3662, %v3661
    %v3770 = vpack.c.b16 %v3664, %v3663
    %v3771 = vpack.c.b16 %v3666, %v3665
    %v3772 = vpack.c.b16 %v3668, %v3667
    %v3773 = vpack.c.b16 %v3670, %v3669
    %v3774 = vpack.c.b16 %v3672, %v3671
    %v3775 = vpack.c.b16 %v3674, %v3673
    %v3776 = vpack.c.b16 %v3676, %v3675
    %v3777 = vpack.c.b16 %v3678, %v3677
    %v3778 = vpack.c.b16 %v3680, %v3679
    %v3779 = vpack.c.b16 %v3682, %v3681
    %v3780 = vpack.c.b16 %v3684, %v3683
    %v3781 = vpack.c.b16 %v3686, %v3685
    %v3782 = vpack.c.b16 %v3688, %v3687
    %v3783 = vpack.c.b16 %v3690, %v3689
    %v3784 = vpack.c.b16 %v3692, %v3691
    %v3785 = vpack.c.b16 %v3694, %v3693
    %v3786 = vpack.c.b16 %v3696, %v3695
    %v3787 = vpack.c.b16 %v3698, %v3697
    %v3788 = vpack.c.b16 %v3700, %v3699
    %v3789 = vpack.c.b16 %v3702, %v3701
    %v3790 = vpack.c.b16 %v3704, %v3703
    %v3791 = vpack.c.b16 %v3706, %v3705
    %v3792 = vpack.c.b16 %v3708, %v3707
    %v3793 = vpack.c.b16 %v3710, %v3709
    %v3794 = vpack.c.b16 %v3712, %v3711
    %v3795 = vpack.c.b16 %v3714, %v3713
    %v3796 = vpack.c.b16 %v3716, %v3715
    %v3797 = vpack.c.b16 %v3718, %v3717
    %v3798 = vpack.c.b16 %v3720, %v3719
    %v3799 = vpack.c.b16 %v3722, %v3721
    %v3800 = vpack.c.b16 %v3724, %v3723
    %v3801 = vpack.c.b16 %v3726, %v3725
    %v3802 = vpack.c.b16 %v3728, %v3727
    %v3803 = vpack.c.b16 %v3730, %v3729
    %v3804 = vpack.c.b16 %v3732, %v3731
    %v3805 = vpack.c.b16 %v3734, %v3733
    %v3806 = vpack.c.b16 %v3736, %v3735
    %v3807 = vpack.c.b16 %v3738, %v3737
    %v3808 = vpack.c.b16 %v3740, %v3739
    %v3809 = vpack.c.b16 %v3742, %v3741
    %v3810 = vpack.c.b16 %v3744, %v3743
    %v3811 = vpack.c.b16 %v3746, %v3745
    %v3812 = vpack.c.b16 %v3748, %v3747
    %v3813 = vpack.c.b16 %v3750, %v3749
    %v3814 = vpack.c.b16 %v3752, %v3751
    %v3815 = vpack.c.b16 %v3754, %v3753
    %v3816 = vpack.c.b16 %v3756, %v3755
    %v3817 = vpack.c.b16 %v3758, %v3757
    %v3818 = vpack.c.b16 %v3760, %v3759
    %v3819 = vpack.c.b16 %v3762, %v3761
    %v3820 = vpack.c.b16 %v3764, %v3763
    %3877 = vmatprep.subr.bf16.mxu0 0
    %3878 = vmatpush1.bf16.msra.mxu0 %v3772
    %3879 = vmatprep.subr.bf16.mxu0 0
    %3880 = vmatpush1.bf16.msra.mxu0 %v3771
    %3881 = vmatprep.subr.bf16.mxu0 0
    %3882 = vmatpush1.bf16.msra.mxu0 %v3770
    %3883 = vmatprep.subr.bf16.mxu0 0
    %3884 = vmatpush1.bf16.msra.mxu0 %v3769
    %3885 = vmatprep.subr.bf16.mxu0 0
    %3886 = vmatpush1.bf16.msra.mxu0 %v3768
    %3887 = vmatprep.subr.bf16.mxu0 0
    %3888 = vmatpush1.bf16.msra.mxu0 %v3767
    %3889 = vmatprep.subr.bf16.mxu0 0
    %3890 = vmatpush1.bf16.msra.mxu0 %v3766
    %3891 = vmatprep.subr.bf16.mxu0 0
    %3892 = vmatpush1.bf16.msra.mxu0 %v3765
    %3893 = vmatprep.subr.bf16.mxu0 0
    %3894 = vmatpush2.bf16.msra.mxu0 %v3780
    %3895 = vmatprep.subr.bf16.mxu0 0
    %3896 = vmatpush2.bf16.msra.mxu0 %v3779
    %3897 = vmatprep.subr.bf16.mxu0 0
    %3898 = vmatpush2.bf16.msra.mxu0 %v3778
    %3899 = vmatprep.subr.bf16.mxu0 0
    %3900 = vmatpush2.bf16.msra.mxu0 %v3777
    %3901 = vmatprep.subr.bf16.mxu0 0
    %3902 = vmatpush2.bf16.msra.mxu0 %v3776
    %3903 = vmatprep.subr.bf16.mxu0 0
    %3904 = vmatpush2.bf16.msra.mxu0 %v3775
    %3905 = vmatprep.subr.bf16.mxu0 0
    %3906 = vmatpush2.bf16.msra.mxu0 %v3774
    %3907 = vmatprep.subr.bf16.mxu0 0
    %3908 = vmatpush2.bf16.msra.mxu0 %v3773
    %3909 = vmatprep.mubr.bf16.mxu0 %v3423
    %3910 = vmatmul.mubr.bf16.gmra.mxu0 %v3422
    %v3911 = vpop.f32.mrf.mxu0
    %v3912 = vadd.f32 0.0, %v3911
    %v3913 = vpop.f32.mrf.mxu0
    %v3914 = vpop.f32.mrf.mxu0
    %v3915 = vpop.f32.mrf.mxu0
    %3916 = vdwg.mxu0
    %3917 = vmatprep.subr.bf16.mxu0 0
    %3918 = vmatpush1.bf16.msra.mxu0 %v3788
    %3919 = vmatprep.subr.bf16.mxu0 0
    %3920 = vmatpush1.bf16.msra.mxu0 %v3787
    %3921 = vmatprep.subr.bf16.mxu0 0
    %3922 = vmatpush1.bf16.msra.mxu0 %v3786
    %3923 = vmatprep.subr.bf16.mxu0 0
    %3924 = vmatpush1.bf16.msra.mxu0 %v3785
    %3925 = vmatprep.subr.bf16.mxu0 0
    %3926 = vmatpush1.bf16.msra.mxu0 %v3784
    %3927 = vmatprep.subr.bf16.mxu0 0
    %3928 = vmatpush1.bf16.msra.mxu0 %v3783
    %3929 = vmatprep.subr.bf16.mxu0 0
    %3930 = vmatpush1.bf16.msra.mxu0 %v3782
    %3931 = vmatprep.subr.bf16.mxu0 0
    %3932 = vmatpush1.bf16.msra.mxu0 %v3781
    %3933 = vmatprep.subr.bf16.mxu0 0
    %3934 = vmatpush2.bf16.msra.mxu0 %v3796
    %3935 = vmatprep.subr.bf16.mxu0 0
    %3936 = vmatpush2.bf16.msra.mxu0 %v3795
    %3937 = vmatprep.subr.bf16.mxu0 0
    %3938 = vmatpush2.bf16.msra.mxu0 %v3794
    %3939 = vmatprep.subr.bf16.mxu0 0
    %3940 = vmatpush2.bf16.msra.mxu0 %v3793
    %3941 = vmatprep.subr.bf16.mxu0 0
    %3942 = vmatpush2.bf16.msra.mxu0 %v3792
    %3943 = vmatprep.subr.bf16.mxu0 0
    %3944 = vmatpush2.bf16.msra.mxu0 %v3791
    %3945 = vmatprep.subr.bf16.mxu0 0
    %3946 = vmatpush2.bf16.msra.mxu0 %v3790
    %3947 = vmatprep.subr.bf16.mxu0 0
    %3948 = vmatpush2.bf16.msra.mxu0 %v3789
    %3949 = vmatprep.mubr.bf16.mxu0 %v3425
    %3950 = vmatmul.mubr.bf16.gmra.mxu0 %v3424
    %v3951 = vpop.f32.mrf.mxu0
    %v3952 = vadd.f32 %v3912, %v3951
    %v3953 = vpop.f32.mrf.mxu0
    %v3954 = vpop.f32.mrf.mxu0
    %v3955 = vpop.f32.mrf.mxu0
    %3956 = vdwg.mxu0
    %3957 = vmatprep.subr.bf16.mxu0 0
    %3958 = vmatpush1.bf16.msra.mxu0 %v3804
    %3959 = vmatprep.subr.bf16.mxu0 0
    %3960 = vmatpush1.bf16.msra.mxu0 %v3803
    %3961 = vmatprep.subr.bf16.mxu0 0
    %3962 = vmatpush1.bf16.msra.mxu0 %v3802
    %3963 = vmatprep.subr.bf16.mxu0 0
    %3964 = vmatpush1.bf16.msra.mxu0 %v3801
    %3965 = vmatprep.subr.bf16.mxu0 0
    %3966 = vmatpush1.bf16.msra.mxu0 %v3800
    %3967 = vmatprep.subr.bf16.mxu0 0
    %3968 = vmatpush1.bf16.msra.mxu0 %v3799
    %3969 = vmatprep.subr.bf16.mxu0 0
    %3970 = vmatpush1.bf16.msra.mxu0 %v3798
    %3971 = vmatprep.subr.bf16.mxu0 0
    %3972 = vmatpush1.bf16.msra.mxu0 %v3797
    %3973 = vmatprep.subr.bf16.mxu0 0
    %3974 = vmatpush2.bf16.msra.mxu0 %v3812
    %3975 = vmatprep.subr.bf16.mxu0 0
    %3976 = vmatpush2.bf16.msra.mxu0 %v3811
    %3977 = vmatprep.subr.bf16.mxu0 0
    %3978 = vmatpush2.bf16.msra.mxu0 %v3810
    %3979 = vmatprep.subr.bf16.mxu0 0
    %3980 = vmatpush2.bf16.msra.mxu0 %v3809
    %3981 = vmatprep.subr.bf16.mxu0 0
    %3982 = vmatpush2.bf16.msra.mxu0 %v3808
    %3983 = vmatprep.subr.bf16.mxu0 0
    %3984 = vmatpush2.bf16.msra.mxu0 %v3807
    %3985 = vmatprep.subr.bf16.mxu0 0
    %3986 = vmatpush2.bf16.msra.mxu0 %v3806
    %3987 = vmatprep.subr.bf16.mxu0 0
    %3988 = vmatpush2.bf16.msra.mxu0 %v3805
    %3989 = vmatprep.mubr.bf16.mxu0 %v3427
    %3990 = vmatmul.mubr.bf16.gmra.mxu0 %v3426
    %v3991 = vpop.f32.mrf.mxu0
    %v3992 = vadd.f32 %v3952, %v3991
    %v3993 = vpop.f32.mrf.mxu0
    %v3994 = vpop.f32.mrf.mxu0
    %v3995 = vpop.f32.mrf.mxu0
    %3996 = vdwg.mxu0
    %3997 = vmatprep.subr.bf16.mxu0 0
    %3998 = vmatpush1.bf16.msra.mxu0 %v3820
    %3999 = vmatprep.subr.bf16.mxu0 0
    %4000 = vmatpush1.bf16.msra.mxu0 %v3819
    %4001 = vmatprep.subr.bf16.mxu0 0
    %4002 = vmatpush1.bf16.msra.mxu0 %v3818
    %4003 = vmatprep.subr.bf16.mxu0 0
    %4004 = vmatpush1.bf16.msra.mxu0 %v3817
    %4005 = vmatprep.subr.bf16.mxu0 0
    %4006 = vmatpush1.bf16.msra.mxu0 %v3816
    %4007 = vmatprep.subr.bf16.mxu0 0
    %4008 = vmatpush1.bf16.msra.mxu0 %v3815
    %4009 = vmatprep.subr.bf16.mxu0 0
    %4010 = vmatpush1.bf16.msra.mxu0 %v3814
    %4011 = vmatprep.subr.bf16.mxu0 0
    %4012 = vmatpush1.bf16.msra.mxu0 %v3813
    %4013 = vmatprep.subr.bf16.mxu0 0
    %4014 = vmatpush2.bf16.msra.mxu0 0
    %4015 = vmatprep.subr.bf16.mxu0 0
    %4016 = vmatpush2.bf16.msra.mxu0 0
    %4017 = vmatprep.subr.bf16.mxu0 0
    %4018 = vmatpush2.bf16.msra.mxu0 0
    %4019 = vmatprep.subr.bf16.mxu0 0
    %4020 = vmatpush2.bf16.msra.mxu0 0
    %4021 = vmatprep.subr.bf16.mxu0 0
    %4022 = vmatpush2.bf16.msra.mxu0 0
    %4023 = vmatprep.subr.bf16.mxu0 0
    %4024 = vmatpush2.bf16.msra.mxu0 0
    %4025 = vmatprep.subr.bf16.mxu0 0
    %4026 = vmatpush2.bf16.msra.mxu0 0
    %4027 = vmatprep.subr.bf16.mxu0 0
    %4028 = vmatpush2.bf16.msra.mxu0 0
    %4029 = vmatprep.mubr.bf16.mxu0 0
    %4030 = vmatmul.mubr.bf16.gmra.mxu0 %v3428
    %v4031 = vpop.f32.mrf.mxu0
    %v4032 = vadd.f32 %v3992, %v4031
    %v4033 = vpop.f32.mrf.mxu0
    %v4034 = vpop.f32.mrf.mxu0
    %v4035 = vpop.f32.mrf.mxu0
    %4036 = vdwg.mxu0
    %v4037 = vmax.f32 %v4032, 0.0
    %v4038 = vpack.c.bf16 %v4037, %v4037
    %v4039 = vld [vmem:[#allocation2 + $0x18f0] sm:$0xf]
    %v4040 = vld [vmem:[#allocation2 + $0x190c] sm:$0xf]
    %v4041 = vld [vmem:[#allocation2 + $0x1928] sm:$0xf]
    %v4042 = vld [vmem:[#allocation2 + $0x1944] sm:$0xf]
    %v4043 = vld [vmem:[#allocation2 + $0x1960] sm:$0xf]
    %v4044 = vld [vmem:[#allocation2 + $0x197c] sm:$0xf]
    %v4045 = vld [vmem:[#allocation2 + $0x1998] sm:$0xf]
    %v4046 = vld [vmem:[#allocation2 + $0x19b4] sm:$0xf]
    %v4047 = vld [vmem:[#allocation2 + $0x19d0] sm:$0xf]
    %v4048 = vld [vmem:[#allocation2 + $0x19ec] sm:$0xf]
    %v4049 = vld [vmem:[#allocation2 + $0x1a08] sm:$0xf]
    %v4050 = vld [vmem:[#allocation2 + $0x1a24] sm:$0xf]
    %v4051 = vld [vmem:[#allocation2 + $0x1a40] sm:$0xf]
    %v4052 = vld [vmem:[#allocation2 + $0x1a5c] sm:$0xf]
    %v4053 = vld [vmem:[#allocation2 + $0x1a78] sm:$0xf]
    %v4054 = vld [vmem:[#allocation2 + $0x1a94] sm:$0xf]
    %v4071 = vunpack.c.l.b16 %v4039
    %v4072 = vunpack.c.l.b16 %v4040
    %v4073 = vunpack.c.l.b16 %v4041
    %v4074 = vunpack.c.l.b16 %v4042
    %v4075 = vunpack.c.l.b16 %v4043
    %v4076 = vunpack.c.l.b16 %v4044
    %v4077 = vunpack.c.l.b16 %v4045
    %v4078 = vunpack.c.l.b16 %v4046
    %v4079 = vunpack.c.l.b16 %v4047
    %v4080 = vunpack.c.l.b16 %v4048
    %v4081 = vunpack.c.l.b16 %v4049
    %v4082 = vunpack.c.l.b16 %v4050
    %v4083 = vunpack.c.l.b16 %v4051
    %v4084 = vunpack.c.l.b16 %v4052
    %v4085 = vunpack.c.l.b16 %v4053
    %v4086 = vunpack.c.l.b16 %v4054
    %v4087 = vpack.c.b16 %v4072, %v4071
    %v4088 = vpack.c.b16 %v4074, %v4073
    %v4089 = vpack.c.b16 %v4076, %v4075
    %v4090 = vpack.c.b16 %v4078, %v4077
    %v4091 = vpack.c.b16 %v4080, %v4079
    %v4092 = vpack.c.b16 %v4082, %v4081
    %v4093 = vpack.c.b16 %v4084, %v4083
    %v4094 = vpack.c.b16 %v4086, %v4085
    %4103 = vmatprep.subr.bf16.mxu0 0
    %4104 = vmatpush1.bf16.msra.mxu0 %v4094
    %4105 = vmatprep.subr.bf16.mxu0 0
    %4106 = vmatpush1.bf16.msra.mxu0 %v4093
    %4107 = vmatprep.subr.bf16.mxu0 0
    %4108 = vmatpush1.bf16.msra.mxu0 %v4092
    %4109 = vmatprep.subr.bf16.mxu0 0
    %4110 = vmatpush1.bf16.msra.mxu0 %v4091
    %4111 = vmatprep.subr.bf16.mxu0 0
    %4112 = vmatpush1.bf16.msra.mxu0 %v4090
    %4113 = vmatprep.subr.bf16.mxu0 0
    %4114 = vmatpush1.bf16.msra.mxu0 %v4089
    %4115 = vmatprep.subr.bf16.mxu0 0
    %4116 = vmatpush1.bf16.msra.mxu0 %v4088
    %4117 = vmatprep.subr.bf16.mxu0 0
    %4118 = vmatpush1.bf16.msra.mxu0 %v4087
    %4119 = vmatprep.subr.bf16.mxu0 0
    %4120 = vmatpush2.bf16.msra.mxu0 0
    %4121 = vmatprep.subr.bf16.mxu0 0
    %4122 = vmatpush2.bf16.msra.mxu0 0
    %4123 = vmatprep.subr.bf16.mxu0 0
    %4124 = vmatpush2.bf16.msra.mxu0 0
    %4125 = vmatprep.subr.bf16.mxu0 0
    %4126 = vmatpush2.bf16.msra.mxu0 0
    %4127 = vmatprep.subr.bf16.mxu0 0
    %4128 = vmatpush2.bf16.msra.mxu0 0
    %4129 = vmatprep.subr.bf16.mxu0 0
    %4130 = vmatpush2.bf16.msra.mxu0 0
    %4131 = vmatprep.subr.bf16.mxu0 0
    %4132 = vmatpush2.bf16.msra.mxu0 0
    %4133 = vmatprep.subr.bf16.mxu0 0
    %4134 = vmatpush2.bf16.msra.mxu0 0
    %4135 = vmatprep.mubr.bf16.mxu0 0
    %4136 = vmatmul.mubr.bf16.gmra.mxu0 %v4038
    %v4137 = vpop.f32.mrf.mxu0
    %v4138 = vadd.f32 0.0, %v4137
    %v4139 = vpop.f32.mrf.mxu0
    %v4140 = vpop.f32.mrf.mxu0
    %v4141 = vpop.f32.mrf.mxu0
    %4142 = vdwg.mxu0
    %v4143 = vmax.f32 %v4138, 0.0
    %v4144 = vpack.c.bf16 %v4143, %v4143
    %v4145 = vld [vmem:[#allocation2 + $0x1ab0] sm:$0xf]
    %v4146 = vld [vmem:[#allocation2 + $0x1acc] sm:$0xf]
    %v4147 = vld [vmem:[#allocation2 + $0x1ae8] sm:$0xf]
    %v4148 = vld [vmem:[#allocation2 + $0x1b04] sm:$0xf]
    %v4149 = vld [vmem:[#allocation2 + $0x1b20] sm:$0xf]
    %v4150 = vld [vmem:[#allocation2 + $0x1b3c] sm:$0xf]
    %v4151 = vld [vmem:[#allocation2 + $0x1b58] sm:$0xf]
    %v4152 = vld [vmem:[#allocation2 + $0x1b74] sm:$0xf]
    %v4153 = vld [vmem:[#allocation2 + $0x1b90] sm:$0xf]
    %v4154 = vld [vmem:[#allocation2 + $0x1bac] sm:$0xf]
    %v4155 = vld [vmem:[#allocation2 + $0x1bc8] sm:$0xf]
    %v4156 = vld [vmem:[#allocation2 + $0x1be4] sm:$0xf]
    %v4157 = vld [vmem:[#allocation2 + $0x1c00] sm:$0xf]
    %v4158 = vld [vmem:[#allocation2 + $0x1c1c] sm:$0xf]
    %v4159 = vld [vmem:[#allocation2 + $0x1c38] sm:$0xf]
    %v4160 = vld [vmem:[#allocation2 + $0x1c54] sm:$0xf]
    %v4177 = vunpack.c.l.b16 %v4145
    %v4178 = vunpack.c.l.b16 %v4146
    %v4179 = vunpack.c.l.b16 %v4147
    %v4180 = vunpack.c.l.b16 %v4148
    %v4181 = vunpack.c.l.b16 %v4149
    %v4182 = vunpack.c.l.b16 %v4150
    %v4183 = vunpack.c.l.b16 %v4151
    %v4184 = vunpack.c.l.b16 %v4152
    %v4185 = vunpack.c.l.b16 %v4153
    %v4186 = vunpack.c.l.b16 %v4154
    %v4187 = vunpack.c.l.b16 %v4155
    %v4188 = vunpack.c.l.b16 %v4156
    %v4189 = vunpack.c.l.b16 %v4157
    %v4190 = vunpack.c.l.b16 %v4158
    %v4191 = vunpack.c.l.b16 %v4159
    %v4192 = vunpack.c.l.b16 %v4160
    %v4193 = vpack.c.b16 %v4178, %v4177
    %v4194 = vpack.c.b16 %v4180, %v4179
    %v4195 = vpack.c.b16 %v4182, %v4181
    %v4196 = vpack.c.b16 %v4184, %v4183
    %v4197 = vpack.c.b16 %v4186, %v4185
    %v4198 = vpack.c.b16 %v4188, %v4187
    %v4199 = vpack.c.b16 %v4190, %v4189
    %v4200 = vpack.c.b16 %v4192, %v4191
    %4209 = vmatprep.subr.bf16.mxu0 0
    %4210 = vmatpush1.bf16.msra.mxu0 %v4200
    %4211 = vmatprep.subr.bf16.mxu0 0
    %4212 = vmatpush1.bf16.msra.mxu0 %v4199
    %4213 = vmatprep.subr.bf16.mxu0 0
    %4214 = vmatpush1.bf16.msra.mxu0 %v4198
    %4215 = vmatprep.subr.bf16.mxu0 0
    %4216 = vmatpush1.bf16.msra.mxu0 %v4197
    %4217 = vmatprep.subr.bf16.mxu0 0
    %4218 = vmatpush1.bf16.msra.mxu0 %v4196
    %4219 = vmatprep.subr.bf16.mxu0 0
    %4220 = vmatpush1.bf16.msra.mxu0 %v4195
    %4221 = vmatprep.subr.bf16.mxu0 0
    %4222 = vmatpush1.bf16.msra.mxu0 %v4194
    %4223 = vmatprep.subr.bf16.mxu0 0
    %4224 = vmatpush1.bf16.msra.mxu0 %v4193
    %4225 = vmatprep.subr.bf16.mxu0 0
    %4226 = vmatpush2.bf16.msra.mxu0 0
    %4227 = vmatprep.subr.bf16.mxu0 0
    %4228 = vmatpush2.bf16.msra.mxu0 0
    %4229 = vmatprep.subr.bf16.mxu0 0
    %4230 = vmatpush2.bf16.msra.mxu0 0
    %4231 = vmatprep.subr.bf16.mxu0 0
    %4232 = vmatpush2.bf16.msra.mxu0 0
    %4233 = vmatprep.subr.bf16.mxu0 0
    %4234 = vmatpush2.bf16.msra.mxu0 0
    %4235 = vmatprep.subr.bf16.mxu0 0
    %4236 = vmatpush2.bf16.msra.mxu0 0
    %4237 = vmatprep.subr.bf16.mxu0 0
    %4238 = vmatpush2.bf16.msra.mxu0 0
    %4239 = vmatprep.subr.bf16.mxu0 0
    %4240 = vmatpush2.bf16.msra.mxu0 0
    %4241 = vmatprep.mubr.bf16.mxu0 0
    %4242 = vmatmul.mubr.bf16.gmra.mxu0 %v4144
    %v4243 = vpop.f32.mrf.mxu0
    %v4244 = vadd.f32 0.0, %v4243
    %v4245 = vpop.f32.mrf.mxu0
    %v4246 = vpop.f32.mrf.mxu0
    %v4247 = vpop.f32.mrf.mxu0
    %4248 = vdwg.mxu0
    %v4249 = vlaneseq
    %v4250 = vand.u32 %v4249, 127
    %vm4251 = vcmp.lt.s32.totalorder %v4250, 9
    %v4252 = vsel %vm4251, %v4244, -1e+30
    %4253 = vmax.xlane.f32.xlu0 %v4252
    %v4254 = vpop.xlane.xlu0 %4253
    %v4255 = vsub.f32 %v4252, %v4254
    %v4256 = vmul.f32 %v4255, 1.442695
    %v4257 = vpow.pop %v4256
    %4258 = vadd.xlane.f32.xlu0 %v4257
    %v4259 = vpop.xlane.xlu0 %4258
    %v4260 = vlog2.pop %v4259
    %v4261 = vmul.f32 %v4260, 0.6931472
    %v4262 = vadd.f32 %v4261, %v4254
    %v4263 = vsub.f32 %v4244, %v4262
    %vm4264 = vcmp.eq.s32.totalorder %v4250, 9
    %v4265 = vtanh.pop %v4244
    %v4266 = vsel %vm4264, %v4265, 0.0
    %v4267 = vsel %vm4251, %v4263, %v4266
    %4268 = vst [vmem:[%s2] sm:$0xff] %v4267
    // Predicated region
    $region14: #{fused_forward.1} parent=1 // pred_check
      _
    $region15: #{fused_forward.1} parent=1 // pred_check_branch
      %4270 = sbr.rel (0) target = $region17
    $region16: #{fused_forward.1} parent=1 // pred_region
      _
    $region17: #{fused_forward.1} parent=1 // pred_fallthru
      _
    // Predicated region
    $region18: #{fused_forward.1} parent=1 // pred_check
      _
    $region19: #{fused_forward.1} parent=1 // pred_check_branch
      %4272 = sbr.rel (0) target = $region21
    $region20: #{fused_forward.1} parent=1 // pred_region
      _
    $region21: #{fused_forward.1} parent=1 // pred_fallthru
      _
    %4273 = vsyncpa [#allocation3], 1

</llo_original>
